<compile_context>
chip_gen: v6e
topology: v6e:2x2x1
jax: 0.10.0
libtpu: 0.0.40
codegen_flags: <defaults>
</compile_context>

<pallas_src>
import jax
import jax.numpy as jnp
import numpy as np
from jax.experimental import pallas as pl
from jax.experimental.pallas import tpu as pltpu

NODE_INPUT_DIM = 15
EDGE_INPUT_DIM = 5
NODE_HIDDEN_DIM = 64
EDGE_HIDDEN_DIM = 32
NUM_STEPS = 4          # num_step_message_passing
OUT_PAD = 128          # lane-dense output width (multiple of 128, >= NODE_HIDDEN_DIM)


def dmpnn_kernel(nfeat_ref, efe_ref, efo_ref, srce_ref, srco_ref, dste_ref, dsto_ref,
                 w_init_n_ref, w_init_e_ref, w_e_ref, w_last_n_ref, w_last_f_ref,
                 out_ref):
    # One graph per grid step (leading "parallel" grid axis).
    h0 = nfeat_ref[...]                               # [N, 15]  f32
    ef_e = efe_ref[...]                               # [E/2, 5] f32 (edges 0,2,4,...)
    ef_o = efo_ref[...]                               # [E/2, 5] f32 (edges 1,3,5,...)
    # 0/1 structure matrices arrive as bf16 (exact); upcast once for f32-accumulated dots.
    src_e = srce_ref[...].astype(jnp.float32)         # [E/2, N] one-hot of edge source
    src_o = srco_ref[...].astype(jnp.float32)
    dst_e = dste_ref[...].astype(jnp.float32)         # [N, E/2] scatter-sum onto edge dst
    dst_o = dsto_ref[...].astype(jnp.float32)

    # Weights: read once, reused across the unrolled message-passing loop.
    w_init_n = w_init_n_ref[...]                      # [15, 32]
    w_init_e = w_init_e_ref[...]                      # [5, 32]
    w_e = w_e_ref[...]                                # [32, 32]
    w_last_n = w_last_n_ref[...]                      # [15, OUT_PAD]
    w_last_f = w_last_f_ref[...]                      # [32, OUT_PAD]

    # init_message: ReLU( cat(h0[src(e)], e_feat[e]) @ W_init^T ), concat folded into 2 dots
    def init_msg(src_oh_half, ef_half):
        src_h = jnp.dot(src_oh_half, h0, preferred_element_type=jnp.float32)   # [E/2, 15]
        return jnp.maximum(
            jnp.dot(src_h, w_init_n, preferred_element_type=jnp.float32)
            + jnp.dot(ef_half, w_init_e, preferred_element_type=jnp.float32),
            0.0)                                                                # [E/2, 32]

    e0_e = init_msg(src_e, ef_e)
    e0_o = init_msg(src_o, ef_o)

    et_e, et_o = e0_e, e0_o
    # num_step_message_passing is a static hyper-parameter -> unrolled at trace time.
    for _ in range(NUM_STEPS):
        # EDGE_CONV with aggregator_type='sum':
        #   neigh[v] = sum_{e: dst(e)=v} e_t[e]
        neigh = (jnp.dot(dst_e, et_e, preferred_element_type=jnp.float32)
                 + jnp.dot(dst_o, et_o, preferred_element_type=jnp.float32))    # [N, 32]
        #   t[e] = neigh[src(e)]   (fn.copy_u)
        t_e = jnp.dot(src_e, neigh, preferred_element_type=jnp.float32)         # [E/2, 32]
        t_o = jnp.dot(src_o, neigh, preferred_element_type=jnp.float32)
        #   rm[e] = e_t[rev(e)] -- reverse pair (2k <-> 2k+1) is a free even/odd rename here
        m_e = t_e - et_o
        m_o = t_o - et_e
        # e_t = ReLU(e0 + dropout(e_update(m_t)))   (dropout(0.1) is identity in eval mode)
        et_e = jnp.maximum(
            e0_e + jnp.dot(m_e, w_e, preferred_element_type=jnp.float32), 0.0)
        et_o = jnp.maximum(
            e0_o + jnp.dot(m_o, w_e, preferred_element_type=jnp.float32), 0.0)
    # TODO(synk): nn.Dropout(0.1) training-mode stochastic drop not implemented (eval identity).

    # readout: ff[v] = sum_{e: dst(e)=v} e_t[e];  out = ReLU( cat(h0, ff) @ W_last^T )
    ff = (jnp.dot(dst_e, et_e, preferred_element_type=jnp.float32)
          + jnp.dot(dst_o, et_o, preferred_element_type=jnp.float32))           # [N, 32]
    out = jnp.maximum(
        jnp.dot(h0, w_last_n, preferred_element_type=jnp.float32)
        + jnp.dot(ff, w_last_f, preferred_element_type=jnp.float32),
        0.0)                                                                     # [N, OUT_PAD]
    out_ref[...] = out.astype(out_ref.dtype)                                     # lane-dense store


def dmpnn_forward(n_feat, e_feat, src_oh, dst_sc, w_init, w_e, w_last):
    """Batched DMPNN forward (one graph per grid step).

    n_feat: [G, N, 15] f32, e_feat: [G, E, 5] f32 (directed edges stored as reverse pairs)
    src_oh: [G, E, N] one-hot of edge source node; dst_sc: [G, N, E] scatter-sum matrix
    w_*:    PyTorch-layout [out, in] weights, shared across graphs.
    """
    G, N, _ = n_feat.shape
    E = e_feat.shape[1]
    assert E % 2 == 0
    Eh = E // 2

    # Even/odd (reverse-pair) split done outside the kernel, so the in-kernel
    # reverse-edge gather is a pure rename (no [E,E] matmul, no in-kernel shuffles).
    ef_e, ef_o = e_feat[:, 0::2], e_feat[:, 1::2]
    # 0/1 structure matrices are exact in bf16 -> half the HBM/DMA + VMEM footprint.
    src_e = src_oh[:, 0::2].astype(jnp.bfloat16)
    src_o = src_oh[:, 1::2].astype(jnp.bfloat16)
    dst_e = dst_sc[:, :, 0::2].astype(jnp.bfloat16)
    dst_o = dst_sc[:, :, 1::2].astype(jnp.bfloat16)

    # Split / transpose PyTorch-layout weights so in-kernel concats become sums of matmuls.
    w_init_n = jnp.transpose(w_init[:, :NODE_INPUT_DIM])       # [15, 32]
    w_init_e = jnp.transpose(w_init[:, NODE_INPUT_DIM:])       # [5, 32]
    w_e_t = jnp.transpose(w_e)                                  # [32, 32]
    # Zero-pad the output projection to 128 lanes -> unmasked (lane-dense) stores.
    w_last_t = jnp.pad(jnp.transpose(w_last),
                       ((0, 0), (0, OUT_PAD - NODE_HIDDEN_DIM)))  # [47, 128]
    w_last_n = w_last_t[:NODE_INPUT_DIM]                         # [15, 128]
    w_last_f = w_last_t[NODE_INPUT_DIM:]                         # [32, 128]

    out = pl.pallas_call(
        dmpnn_kernel,
        out_shape=jax.ShapeDtypeStruct((G, N, OUT_PAD), jnp.float32),
        grid=(G,),
        in_specs=[
            pl.BlockSpec((None, N, NODE_INPUT_DIM), lambda g: (g, 0, 0)),
            pl.BlockSpec((None, Eh, EDGE_INPUT_DIM), lambda g: (g, 0, 0)),
            pl.BlockSpec((None, Eh, EDGE_INPUT_DIM), lambda g: (g, 0, 0)),
            pl.BlockSpec((None, Eh, N), lambda g: (g, 0, 0)),
            pl.BlockSpec((None, Eh, N), lambda g: (g, 0, 0)),
            pl.BlockSpec((None, N, Eh), lambda g: (g, 0, 0)),
            pl.BlockSpec((None, N, Eh), lambda g: (g, 0, 0)),
            # Weights: constant index_map -> fetched once, kept resident across the grid.
            pl.BlockSpec((NODE_INPUT_DIM, EDGE_HIDDEN_DIM), lambda g: (0, 0)),
            pl.BlockSpec((EDGE_INPUT_DIM, EDGE_HIDDEN_DIM), lambda g: (0, 0)),
            pl.BlockSpec((EDGE_HIDDEN_DIM, EDGE_HIDDEN_DIM), lambda g: (0, 0)),
            pl.BlockSpec((NODE_INPUT_DIM, OUT_PAD), lambda g: (0, 0)),
            pl.BlockSpec((EDGE_HIDDEN_DIM, OUT_PAD), lambda g: (0, 0)),
        ],
        out_specs=pl.BlockSpec((None, N, OUT_PAD), lambda g: (g, 0, 0)),
        compiler_params=pltpu.CompilerParams(
            dimension_semantics=("parallel",),          # per-graph axis -> megacore on v7x
            vmem_limit_bytes=32 * 1024 * 1024),         # explicit, safe on v5e/v6e/v7x
    )(n_feat, ef_e, ef_o, src_e, src_o, dst_e, dst_o,
      w_init_n, w_init_e, w_e_t, w_last_n, w_last_f)
    return out[:, :, :NODE_HIDDEN_DIM]


def dmpnn_ref(n_feat, e_feat, src, dst, rev_idx, w_init, w_e, w_last):
    """Pure numpy reference mirroring the PyTorch/DGL forward (eval mode), one graph."""
    N = n_feat.shape[0]
    src_h = n_feat[src]
    e0 = np.maximum(np.concatenate([src_h, e_feat], 1) @ w_init.T, 0.0)
    e_t = e0
    for _ in range(NUM_STEPS):
        neigh = np.zeros((N, EDGE_HIDDEN_DIM), np.float32)
        np.add.at(neigh, dst, e_t)
        m_t = neigh[src] - e_t[rev_idx]
        e_t = np.maximum(e0 + m_t @ w_e.T, 0.0)
    ff = np.zeros((N, EDGE_HIDDEN_DIM), np.float32)
    np.add.at(ff, dst, e_t)
    return np.maximum(np.concatenate([n_feat, ff], 1) @ w_last.T, 0.0)


if __name__ == "__main__":
    key = jax.random.PRNGKey(0)
    G = 4           # graphs batched per pallas_call
    N = 8           # nodes per graph
    E_UND = 8       # undirected edges per graph
    E = 2 * E_UND   # directed edges, stored as reverse pairs (2k, 2k+1)

    # Shared weights: PyTorch-style uniform(-1/sqrt(fan_in), 1/sqrt(fan_in)), shape [out, in].
    def uinit(k, shape):
        bound = 1.0 / np.sqrt(shape[1])
        return jax.random.uniform(k, shape, jnp.float32, -bound, bound)

    k_w1, k_w2, k_w3, key = jax.random.split(key, 4)
    w_init = uinit(k_w1, (EDGE_HIDDEN_DIM, NODE_INPUT_DIM + EDGE_INPUT_DIM))   # init_message
    w_e = uinit(k_w2, (EDGE_HIDDEN_DIM, EDGE_HIDDEN_DIM))                       # e_update
    w_last = uinit(k_w3, (NODE_HIDDEN_DIM, NODE_INPUT_DIM + EDGE_HIDDEN_DIM))   # last_update

    rev_idx = np.arange(E)
    rev_idx[0::2] += 1
    rev_idx[1::2] -= 1

    n_feat_l, e_feat_l, src_oh_l, dst_sc_l, src_l, dst_l = [], [], [], [], [], []
    for g in range(G):
        kf, kef, kperm, key = jax.random.split(key, 4)
        # deterministic small graph: undirected edges stored as consecutive reverse pairs
        perm = np.asarray(jax.random.permutation(kperm, N * N))
        src_list, dst_list, cnt = [], [], 0
        for p in perm:
            u, v = int(p) // N, int(p) % N
            if u == v:
                continue
            src_list += [u, v]
            dst_list += [v, u]
            cnt += 1
            if cnt == E_UND:
                break
        src = np.array(src_list, np.int32)
        dst = np.array(dst_list, np.int32)
        src_oh = np.zeros((E, N), np.float32); src_oh[np.arange(E), src] = 1.0
        dst_sc = np.zeros((N, E), np.float32); dst_sc[dst, np.arange(E)] = 1.0

        n_feat_l.append(jax.random.normal(kf, (N, NODE_INPUT_DIM), jnp.float32))
        e_feat_l.append(jax.random.normal(kef, (E, EDGE_INPUT_DIM), jnp.float32))
        src_oh_l.append(src_oh)
        dst_sc_l.append(dst_sc)
        src_l.append(src)
        dst_l.append(dst)

    n_feat = jnp.stack(n_feat_l)                       # [G, N, 15]
    e_feat = jnp.stack(e_feat_l)                       # [G, E, 5]
    src_oh = jnp.asarray(np.stack(src_oh_l))           # [G, E, N]
    dst_sc = jnp.asarray(np.stack(dst_sc_l))           # [G, N, E]

    out = dmpnn_forward(n_feat, e_feat, src_oh, dst_sc, w_init, w_e, w_last)
    out = jax.block_until_ready(out)
    assert out.shape == (G, N, NODE_HIDDEN_DIM)

    for g in range(G):
        ref = dmpnn_ref(np.asarray(n_feat[g]), np.asarray(e_feat[g]),
                        src_l[g], dst_l[g], rev_idx,
                        np.asarray(w_init), np.asarray(w_e), np.asarray(w_last))
        assert np.allclose(np.asarray(out[g]), ref, atol=1e-4, rtol=1e-4), \
            f"mismatch vs reference for graph {g}"
    print("KERNEL_OK")
</pallas_src>

<mosaic_0001>
module attributes {stable_mosaic.version = 11 : i64} {
  func.func @dmpnn_kernel(%arg0: i32, %arg1: memref<1x8x15xf32, #tpu.memory_space<vmem>>, %arg2: memref<1x8x5xf32, #tpu.memory_space<vmem>>, %arg3: memref<1x8x5xf32, #tpu.memory_space<vmem>>, %arg4: memref<1x8x8xbf16, #tpu.memory_space<vmem>>, %arg5: memref<1x8x8xbf16, #tpu.memory_space<vmem>>, %arg6: memref<1x8x8xbf16, #tpu.memory_space<vmem>>, %arg7: memref<1x8x8xbf16, #tpu.memory_space<vmem>>, %arg8: memref<15x32xf32, #tpu.memory_space<vmem>>, %arg9: memref<5x32xf32, #tpu.memory_space<vmem>>, %arg10: memref<32x32xf32, #tpu.memory_space<vmem>>, %arg11: memref<15x128xf32, #tpu.memory_space<vmem>>, %arg12: memref<32x128xf32, #tpu.memory_space<vmem>>, %arg13: memref<1x8x128xf32, #tpu.memory_space<vmem>>) attributes {dimension_semantics = [#tpu.dimension_semantics<parallel>], iteration_bounds = array<i64: 4>, scalar_prefetch = 0 : i64, scratch_operands = 0 : i64, tpu.core_type = #tpu.core_type<tc>, window_params = [{transform_indices = @transform_0, window_bounds = array<i64: 1, 8, 15>}, {transform_indices = @transform_1, window_bounds = array<i64: 1, 8, 5>}, {transform_indices = @transform_2, window_bounds = array<i64: 1, 8, 5>}, {transform_indices = @transform_3, window_bounds = array<i64: 1, 8, 8>}, {transform_indices = @transform_4, window_bounds = array<i64: 1, 8, 8>}, {transform_indices = @transform_5, window_bounds = array<i64: 1, 8, 8>}, {transform_indices = @transform_6, window_bounds = array<i64: 1, 8, 8>}, {pipeline_mode = #tpu.pipeline_mode<synchronous>, transform_indices = @transform_7, window_bounds = array<i64: 15, 32>}, {pipeline_mode = #tpu.pipeline_mode<synchronous>, transform_indices = @transform_8, window_bounds = array<i64: 5, 32>}, {pipeline_mode = #tpu.pipeline_mode<synchronous>, transform_indices = @transform_9, window_bounds = array<i64: 32, 32>}, {pipeline_mode = #tpu.pipeline_mode<synchronous>, transform_indices = @transform_10, window_bounds = array<i64: 15, 128>}, {pipeline_mode = #tpu.pipeline_mode<synchronous>, transform_indices = @transform_11, window_bounds = array<i64: 32, 128>}, {transform_indices = @transform_12, window_bounds = array<i64: 1, 8, 128>}]} {
    %c0 = arith.constant 0 : index
    %c0_0 = arith.constant 0 : index
    %c0_1 = arith.constant 0 : index
    %0 = vector.load %arg1[%c0, %c0_0, %c0_1] : memref<1x8x15xf32, #tpu.memory_space<vmem>>, vector<1x8x15xf32>
    %1 = vector.shape_cast %0 : vector<1x8x15xf32> to vector<8x15xf32>
    %c0_2 = arith.constant 0 : index
    %c0_3 = arith.constant 0 : index
    %c0_4 = arith.constant 0 : index
    %2 = vector.load %arg2[%c0_2, %c0_3, %c0_4] : memref<1x8x5xf32, #tpu.memory_space<vmem>>, vector<1x8x5xf32>
    %3 = vector.shape_cast %2 : vector<1x8x5xf32> to vector<8x5xf32>
    %c0_5 = arith.constant 0 : index
    %c0_6 = arith.constant 0 : index
    %c0_7 = arith.constant 0 : index
    %4 = vector.load %arg3[%c0_5, %c0_6, %c0_7] : memref<1x8x5xf32, #tpu.memory_space<vmem>>, vector<1x8x5xf32>
    %5 = vector.shape_cast %4 : vector<1x8x5xf32> to vector<8x5xf32>
    %c0_8 = arith.constant 0 : index
    %c0_9 = arith.constant 0 : index
    %c0_10 = arith.constant 0 : index
    %6 = vector.load %arg4[%c0_8, %c0_9, %c0_10] : memref<1x8x8xbf16, #tpu.memory_space<vmem>>, vector<1x8x8xbf16>
    %7 = vector.shape_cast %6 : vector<1x8x8xbf16> to vector<8x8xbf16>
    %8 = arith.extf %7 : vector<8x8xbf16> to vector<8x8xf32>
    %c0_11 = arith.constant 0 : index
    %c0_12 = arith.constant 0 : index
    %c0_13 = arith.constant 0 : index
    %9 = vector.load %arg5[%c0_11, %c0_12, %c0_13] : memref<1x8x8xbf16, #tpu.memory_space<vmem>>, vector<1x8x8xbf16>
    %10 = vector.shape_cast %9 : vector<1x8x8xbf16> to vector<8x8xbf16>
    %11 = arith.extf %10 : vector<8x8xbf16> to vector<8x8xf32>
    %c0_14 = arith.constant 0 : index
    %c0_15 = arith.constant 0 : index
    %c0_16 = arith.constant 0 : index
    %12 = vector.load %arg6[%c0_14, %c0_15, %c0_16] : memref<1x8x8xbf16, #tpu.memory_space<vmem>>, vector<1x8x8xbf16>
    %13 = vector.shape_cast %12 : vector<1x8x8xbf16> to vector<8x8xbf16>
    %14 = arith.extf %13 : vector<8x8xbf16> to vector<8x8xf32>
    %c0_17 = arith.constant 0 : index
    %c0_18 = arith.constant 0 : index
    %c0_19 = arith.constant 0 : index
    %15 = vector.load %arg7[%c0_17, %c0_18, %c0_19] : memref<1x8x8xbf16, #tpu.memory_space<vmem>>, vector<1x8x8xbf16>
    %16 = vector.shape_cast %15 : vector<1x8x8xbf16> to vector<8x8xbf16>
    %17 = arith.extf %16 : vector<8x8xbf16> to vector<8x8xf32>
    %c0_20 = arith.constant 0 : index
    %c0_21 = arith.constant 0 : index
    %18 = vector.load %arg8[%c0_20, %c0_21] : memref<15x32xf32, #tpu.memory_space<vmem>>, vector<15x32xf32>
    %c0_22 = arith.constant 0 : index
    %c0_23 = arith.constant 0 : index
    %19 = vector.load %arg9[%c0_22, %c0_23] : memref<5x32xf32, #tpu.memory_space<vmem>>, vector<5x32xf32>
    %c0_24 = arith.constant 0 : index
    %c0_25 = arith.constant 0 : index
    %20 = vector.load %arg10[%c0_24, %c0_25] : memref<32x32xf32, #tpu.memory_space<vmem>>, vector<32x32xf32>
    %c0_26 = arith.constant 0 : index
    %c0_27 = arith.constant 0 : index
    %21 = vector.load %arg11[%c0_26, %c0_27] : memref<15x128xf32, #tpu.memory_space<vmem>>, vector<15x128xf32>
    %c0_28 = arith.constant 0 : index
    %c0_29 = arith.constant 0 : index
    %22 = vector.load %arg12[%c0_28, %c0_29] : memref<32x128xf32, #tpu.memory_space<vmem>>, vector<32x128xf32>
    %cst = arith.constant dense<0.000000e+00> : vector<8x15xf32>
    %23 = tpu.matmul %8, %1, %cst {dimension_numbers = #tpu.dot_dimension_numbers<[1], [0], [0], [1], [0, 0, 1, 1], [], []>} : vector<8x8xf32>, vector<8x15xf32>, vector<8x15xf32> -> vector<8x15xf32>
    %cst_30 = arith.constant dense<0.000000e+00> : vector<8x32xf32>
    %24 = tpu.matmul %23, %18, %cst_30 {dimension_numbers = #tpu.dot_dimension_numbers<[1], [0], [0], [1], [0, 0, 1, 1], [], []>} : vector<8x15xf32>, vector<15x32xf32>, vector<8x32xf32> -> vector<8x32xf32>
    %cst_31 = arith.constant dense<0.000000e+00> : vector<8x32xf32>
    %25 = tpu.matmul %3, %19, %cst_31 {dimension_numbers = #tpu.dot_dimension_numbers<[1], [0], [0], [1], [0, 0, 1, 1], [], []>} : vector<8x5xf32>, vector<5x32xf32>, vector<8x32xf32> -> vector<8x32xf32>
    %26 = arith.addf %24, %25 : vector<8x32xf32>
    %cst_32 = arith.constant 0.000000e+00 : f32
    %27 = vector.broadcast %cst_32 : f32 to vector<8x32xf32>
    %28 = arith.maximumf %26, %27 : vector<8x32xf32>
    %cst_33 = arith.constant dense<0.000000e+00> : vector<8x15xf32>
    %29 = tpu.matmul %11, %1, %cst_33 {dimension_numbers = #tpu.dot_dimension_numbers<[1], [0], [0], [1], [0, 0, 1, 1], [], []>} : vector<8x8xf32>, vector<8x15xf32>, vector<8x15xf32> -> vector<8x15xf32>
    %cst_34 = arith.constant dense<0.000000e+00> : vector<8x32xf32>
    %30 = tpu.matmul %29, %18, %cst_34 {dimension_numbers = #tpu.dot_dimension_numbers<[1], [0], [0], [1], [0, 0, 1, 1], [], []>} : vector<8x15xf32>, vector<15x32xf32>, vector<8x32xf32> -> vector<8x32xf32>
    %cst_35 = arith.constant dense<0.000000e+00> : vector<8x32xf32>
    %31 = tpu.matmul %5, %19, %cst_35 {dimension_numbers = #tpu.dot_dimension_numbers<[1], [0], [0], [1], [0, 0, 1, 1], [], []>} : vector<8x5xf32>, vector<5x32xf32>, vector<8x32xf32> -> vector<8x32xf32>
    %32 = arith.addf %30, %31 : vector<8x32xf32>
    %cst_36 = arith.constant 0.000000e+00 : f32
    %33 = vector.broadcast %cst_36 : f32 to vector<8x32xf32>
    %34 = arith.maximumf %32, %33 : vector<8x32xf32>
    %cst_37 = arith.constant dense<0.000000e+00> : vector<8x32xf32>
    %35 = tpu.matmul %14, %28, %cst_37 {dimension_numbers = #tpu.dot_dimension_numbers<[1], [0], [0], [1], [0, 0, 1, 1], [], []>} : vector<8x8xf32>, vector<8x32xf32>, vector<8x32xf32> -> vector<8x32xf32>
    %cst_38 = arith.constant dense<0.000000e+00> : vector<8x32xf32>
    %36 = tpu.matmul %17, %34, %cst_38 {dimension_numbers = #tpu.dot_dimension_numbers<[1], [0], [0], [1], [0, 0, 1, 1], [], []>} : vector<8x8xf32>, vector<8x32xf32>, vector<8x32xf32> -> vector<8x32xf32>
    %37 = arith.addf %35, %36 : vector<8x32xf32>
    %cst_39 = arith.constant dense<0.000000e+00> : vector<8x32xf32>
    %38 = tpu.matmul %8, %37, %cst_39 {dimension_numbers = #tpu.dot_dimension_numbers<[1], [0], [0], [1], [0, 0, 1, 1], [], []>} : vector<8x8xf32>, vector<8x32xf32>, vector<8x32xf32> -> vector<8x32xf32>
    %cst_40 = arith.constant dense<0.000000e+00> : vector<8x32xf32>
    %39 = tpu.matmul %11, %37, %cst_40 {dimension_numbers = #tpu.dot_dimension_numbers<[1], [0], [0], [1], [0, 0, 1, 1], [], []>} : vector<8x8xf32>, vector<8x32xf32>, vector<8x32xf32> -> vector<8x32xf32>
    %40 = arith.subf %38, %34 : vector<8x32xf32>
    %41 = arith.subf %39, %28 : vector<8x32xf32>
    %cst_41 = arith.constant dense<0.000000e+00> : vector<8x32xf32>
    %42 = tpu.matmul %40, %20, %cst_41 {dimension_numbers = #tpu.dot_dimension_numbers<[1], [0], [0], [1], [0, 0, 1, 1], [], []>} : vector<8x32xf32>, vector<32x32xf32>, vector<8x32xf32> -> vector<8x32xf32>
    %43 = arith.addf %28, %42 : vector<8x32xf32>
    %cst_42 = arith.constant 0.000000e+00 : f32
    %44 = vector.broadcast %cst_42 : f32 to vector<8x32xf32>
    %45 = arith.maximumf %43, %44 : vector<8x32xf32>
    %cst_43 = arith.constant dense<0.000000e+00> : vector<8x32xf32>
    %46 = tpu.matmul %41, %20, %cst_43 {dimension_numbers = #tpu.dot_dimension_numbers<[1], [0], [0], [1], [0, 0, 1, 1], [], []>} : vector<8x32xf32>, vector<32x32xf32>, vector<8x32xf32> -> vector<8x32xf32>
    %47 = arith.addf %34, %46 : vector<8x32xf32>
    %cst_44 = arith.constant 0.000000e+00 : f32
    %48 = vector.broadcast %cst_44 : f32 to vector<8x32xf32>
    %49 = arith.maximumf %47, %48 : vector<8x32xf32>
    %cst_45 = arith.constant dense<0.000000e+00> : vector<8x32xf32>
    %50 = tpu.matmul %14, %45, %cst_45 {dimension_numbers = #tpu.dot_dimension_numbers<[1], [0], [0], [1], [0, 0, 1, 1], [], []>} : vector<8x8xf32>, vector<8x32xf32>, vector<8x32xf32> -> vector<8x32xf32>
    %cst_46 = arith.constant dense<0.000000e+00> : vector<8x32xf32>
    %51 = tpu.matmul %17, %49, %cst_46 {dimension_numbers = #tpu.dot_dimension_numbers<[1], [0], [0], [1], [0, 0, 1, 1], [], []>} : vector<8x8xf32>, vector<8x32xf32>, vector<8x32xf32> -> vector<8x32xf32>
    %52 = arith.addf %50, %51 : vector<8x32xf32>
    %cst_47 = arith.constant dense<0.000000e+00> : vector<8x32xf32>
    %53 = tpu.matmul %8, %52, %cst_47 {dimension_numbers = #tpu.dot_dimension_numbers<[1], [0], [0], [1], [0, 0, 1, 1], [], []>} : vector<8x8xf32>, vector<8x32xf32>, vector<8x32xf32> -> vector<8x32xf32>
    %cst_48 = arith.constant dense<0.000000e+00> : vector<8x32xf32>
    %54 = tpu.matmul %11, %52, %cst_48 {dimension_numbers = #tpu.dot_dimension_numbers<[1], [0], [0], [1], [0, 0, 1, 1], [], []>} : vector<8x8xf32>, vector<8x32xf32>, vector<8x32xf32> -> vector<8x32xf32>
    %55 = arith.subf %53, %49 : vector<8x32xf32>
    %56 = arith.subf %54, %45 : vector<8x32xf32>
    %cst_49 = arith.constant dense<0.000000e+00> : vector<8x32xf32>
    %57 = tpu.matmul %55, %20, %cst_49 {dimension_numbers = #tpu.dot_dimension_numbers<[1], [0], [0], [1], [0, 0, 1, 1], [], []>} : vector<8x32xf32>, vector<32x32xf32>, vector<8x32xf32> -> vector<8x32xf32>
    %58 = arith.addf %28, %57 : vector<8x32xf32>
    %cst_50 = arith.constant 0.000000e+00 : f32
    %59 = vector.broadcast %cst_50 : f32 to vector<8x32xf32>
    %60 = arith.maximumf %58, %59 : vector<8x32xf32>
    %cst_51 = arith.constant dense<0.000000e+00> : vector<8x32xf32>
    %61 = tpu.matmul %56, %20, %cst_51 {dimension_numbers = #tpu.dot_dimension_numbers<[1], [0], [0], [1], [0, 0, 1, 1], [], []>} : vector<8x32xf32>, vector<32x32xf32>, vector<8x32xf32> -> vector<8x32xf32>
    %62 = arith.addf %34, %61 : vector<8x32xf32>
    %cst_52 = arith.constant 0.000000e+00 : f32
    %63 = vector.broadcast %cst_52 : f32 to vector<8x32xf32>
    %64 = arith.maximumf %62, %63 : vector<8x32xf32>
    %cst_53 = arith.constant dense<0.000000e+00> : vector<8x32xf32>
    %65 = tpu.matmul %14, %60, %cst_53 {dimension_numbers = #tpu.dot_dimension_numbers<[1], [0], [0], [1], [0, 0, 1, 1], [], []>} : vector<8x8xf32>, vector<8x32xf32>, vector<8x32xf32> -> vector<8x32xf32>
    %cst_54 = arith.constant dense<0.000000e+00> : vector<8x32xf32>
    %66 = tpu.matmul %17, %64, %cst_54 {dimension_numbers = #tpu.dot_dimension_numbers<[1], [0], [0], [1], [0, 0, 1, 1], [], []>} : vector<8x8xf32>, vector<8x32xf32>, vector<8x32xf32> -> vector<8x32xf32>
    %67 = arith.addf %65, %66 : vector<8x32xf32>
    %cst_55 = arith.constant dense<0.000000e+00> : vector<8x32xf32>
    %68 = tpu.matmul %8, %67, %cst_55 {dimension_numbers = #tpu.dot_dimension_numbers<[1], [0], [0], [1], [0, 0, 1, 1], [], []>} : vector<8x8xf32>, vector<8x32xf32>, vector<8x32xf32> -> vector<8x32xf32>
    %cst_56 = arith.constant dense<0.000000e+00> : vector<8x32xf32>
    %69 = tpu.matmul %11, %67, %cst_56 {dimension_numbers = #tpu.dot_dimension_numbers<[1], [0], [0], [1], [0, 0, 1, 1], [], []>} : vector<8x8xf32>, vector<8x32xf32>, vector<8x32xf32> -> vector<8x32xf32>
    %70 = arith.subf %68, %64 : vector<8x32xf32>
    %71 = arith.subf %69, %60 : vector<8x32xf32>
    %cst_57 = arith.constant dense<0.000000e+00> : vector<8x32xf32>
    %72 = tpu.matmul %70, %20, %cst_57 {dimension_numbers = #tpu.dot_dimension_numbers<[1], [0], [0], [1], [0, 0, 1, 1], [], []>} : vector<8x32xf32>, vector<32x32xf32>, vector<8x32xf32> -> vector<8x32xf32>
    %73 = arith.addf %28, %72 : vector<8x32xf32>
    %cst_58 = arith.constant 0.000000e+00 : f32
    %74 = vector.broadcast %cst_58 : f32 to vector<8x32xf32>
    %75 = arith.maximumf %73, %74 : vector<8x32xf32>
    %cst_59 = arith.constant dense<0.000000e+00> : vector<8x32xf32>
    %76 = tpu.matmul %71, %20, %cst_59 {dimension_numbers = #tpu.dot_dimension_numbers<[1], [0], [0], [1], [0, 0, 1, 1], [], []>} : vector<8x32xf32>, vector<32x32xf32>, vector<8x32xf32> -> vector<8x32xf32>
    %77 = arith.addf %34, %76 : vector<8x32xf32>
    %cst_60 = arith.constant 0.000000e+00 : f32
    %78 = vector.broadcast %cst_60 : f32 to vector<8x32xf32>
    %79 = arith.maximumf %77, %78 : vector<8x32xf32>
    %cst_61 = arith.constant dense<0.000000e+00> : vector<8x32xf32>
    %80 = tpu.matmul %14, %75, %cst_61 {dimension_numbers = #tpu.dot_dimension_numbers<[1], [0], [0], [1], [0, 0, 1, 1], [], []>} : vector<8x8xf32>, vector<8x32xf32>, vector<8x32xf32> -> vector<8x32xf32>
    %cst_62 = arith.constant dense<0.000000e+00> : vector<8x32xf32>
    %81 = tpu.matmul %17, %79, %cst_62 {dimension_numbers = #tpu.dot_dimension_numbers<[1], [0], [0], [1], [0, 0, 1, 1], [], []>} : vector<8x8xf32>, vector<8x32xf32>, vector<8x32xf32> -> vector<8x32xf32>
    %82 = arith.addf %80, %81 : vector<8x32xf32>
    %cst_63 = arith.constant dense<0.000000e+00> : vector<8x32xf32>
    %83 = tpu.matmul %8, %82, %cst_63 {dimension_numbers = #tpu.dot_dimension_numbers<[1], [0], [0], [1], [0, 0, 1, 1], [], []>} : vector<8x8xf32>, vector<8x32xf32>, vector<8x32xf32> -> vector<8x32xf32>
    %cst_64 = arith.constant dense<0.000000e+00> : vector<8x32xf32>
    %84 = tpu.matmul %11, %82, %cst_64 {dimension_numbers = #tpu.dot_dimension_numbers<[1], [0], [0], [1], [0, 0, 1, 1], [], []>} : vector<8x8xf32>, vector<8x32xf32>, vector<8x32xf32> -> vector<8x32xf32>
    %85 = arith.subf %83, %79 : vector<8x32xf32>
    %86 = arith.subf %84, %75 : vector<8x32xf32>
    %cst_65 = arith.constant dense<0.000000e+00> : vector<8x32xf32>
    %87 = tpu.matmul %85, %20, %cst_65 {dimension_numbers = #tpu.dot_dimension_numbers<[1], [0], [0], [1], [0, 0, 1, 1], [], []>} : vector<8x32xf32>, vector<32x32xf32>, vector<8x32xf32> -> vector<8x32xf32>
    %88 = arith.addf %28, %87 : vector<8x32xf32>
    %cst_66 = arith.constant 0.000000e+00 : f32
    %89 = vector.broadcast %cst_66 : f32 to vector<8x32xf32>
    %90 = arith.maximumf %88, %89 : vector<8x32xf32>
    %cst_67 = arith.constant dense<0.000000e+00> : vector<8x32xf32>
    %91 = tpu.matmul %86, %20, %cst_67 {dimension_numbers = #tpu.dot_dimension_numbers<[1], [0], [0], [1], [0, 0, 1, 1], [], []>} : vector<8x32xf32>, vector<32x32xf32>, vector<8x32xf32> -> vector<8x32xf32>
    %92 = arith.addf %34, %91 : vector<8x32xf32>
    %cst_68 = arith.constant 0.000000e+00 : f32
    %93 = vector.broadcast %cst_68 : f32 to vector<8x32xf32>
    %94 = arith.maximumf %92, %93 : vector<8x32xf32>
    %cst_69 = arith.constant dense<0.000000e+00> : vector<8x32xf32>
    %95 = tpu.matmul %14, %90, %cst_69 {dimension_numbers = #tpu.dot_dimension_numbers<[1], [0], [0], [1], [0, 0, 1, 1], [], []>} : vector<8x8xf32>, vector<8x32xf32>, vector<8x32xf32> -> vector<8x32xf32>
    %cst_70 = arith.constant dense<0.000000e+00> : vector<8x32xf32>
    %96 = tpu.matmul %17, %94, %cst_70 {dimension_numbers = #tpu.dot_dimension_numbers<[1], [0], [0], [1], [0, 0, 1, 1], [], []>} : vector<8x8xf32>, vector<8x32xf32>, vector<8x32xf32> -> vector<8x32xf32>
    %97 = arith.addf %95, %96 : vector<8x32xf32>
    %cst_71 = arith.constant dense<0.000000e+00> : vector<8x128xf32>
    %98 = tpu.matmul %1, %21, %cst_71 {dimension_numbers = #tpu.dot_dimension_numbers<[1], [0], [0], [1], [0, 0, 1, 1], [], []>} : vector<8x15xf32>, vector<15x128xf32>, vector<8x128xf32> -> vector<8x128xf32>
    %cst_72 = arith.constant dense<0.000000e+00> : vector<8x128xf32>
    %99 = tpu.matmul %97, %22, %cst_72 {dimension_numbers = #tpu.dot_dimension_numbers<[1], [0], [0], [1], [0, 0, 1, 1], [], []>} : vector<8x32xf32>, vector<32x128xf32>, vector<8x128xf32> -> vector<8x128xf32>
    %100 = arith.addf %98, %99 : vector<8x128xf32>
    %cst_73 = arith.constant 0.000000e+00 : f32
    %101 = vector.broadcast %cst_73 : f32 to vector<8x128xf32>
    %102 = arith.maximumf %100, %101 : vector<8x128xf32>
    %c0_74 = arith.constant 0 : index
    %c0_75 = arith.constant 0 : index
    %c0_76 = arith.constant 0 : index
    %103 = vector.load %arg13[%c0_74, %c0_75, %c0_76] : memref<1x8x128xf32, #tpu.memory_space<vmem>>, vector<1x8x128xf32>
    %104 = vector.shape_cast %103 : vector<1x8x128xf32> to vector<8x128xf32>
    %105 = vector.shape_cast %102 : vector<8x128xf32> to vector<1x8x128xf32>
    tpu.vector_store %arg13[%c0_74, %c0_75, %c0_76], %105 {strides = array<i32>} : memref<1x8x128xf32, #tpu.memory_space<vmem>>, vector<1x8x128xf32>,
    return
  }
  func.func @transform_0(%arg0: i32) -> (i32, i32, i32) {
    %c0_i32 = arith.constant 0 : i32
    %c0_i32_0 = arith.constant 0 : i32
    %c0_i32_1 = arith.constant 0 : i32
    return %arg0, %c0_i32, %c0_i32_0 : i32, i32, i32
  }
  func.func @transform_1(%arg0: i32) -> (i32, i32, i32) {
    %c0_i32 = arith.constant 0 : i32
    %c0_i32_0 = arith.constant 0 : i32
    %c0_i32_1 = arith.constant 0 : i32
    return %arg0, %c0_i32, %c0_i32_0 : i32, i32, i32
  }
  func.func @transform_2(%arg0: i32) -> (i32, i32, i32) {
    %c0_i32 = arith.constant 0 : i32
    %c0_i32_0 = arith.constant 0 : i32
    %c0_i32_1 = arith.constant 0 : i32
    return %arg0, %c0_i32, %c0_i32_0 : i32, i32, i32
  }
  func.func @transform_3(%arg0: i32) -> (i32, i32, i32) {
    %c0_i32 = arith.constant 0 : i32
    %c0_i32_0 = arith.constant 0 : i32
    %c0_i32_1 = arith.constant 0 : i32
    return %arg0, %c0_i32, %c0_i32_0 : i32, i32, i32
  }
  func.func @transform_4(%arg0: i32) -> (i32, i32, i32) {
    %c0_i32 = arith.constant 0 : i32
    %c0_i32_0 = arith.constant 0 : i32
    %c0_i32_1 = arith.constant 0 : i32
    return %arg0, %c0_i32, %c0_i32_0 : i32, i32, i32
  }
  func.func @transform_5(%arg0: i32) -> (i32, i32, i32) {
    %c0_i32 = arith.constant 0 : i32
    %c0_i32_0 = arith.constant 0 : i32
    %c0_i32_1 = arith.constant 0 : i32
    return %arg0, %c0_i32, %c0_i32_0 : i32, i32, i32
  }
  func.func @transform_6(%arg0: i32) -> (i32, i32, i32) {
    %c0_i32 = arith.constant 0 : i32
    %c0_i32_0 = arith.constant 0 : i32
    %c0_i32_1 = arith.constant 0 : i32
    return %arg0, %c0_i32, %c0_i32_0 : i32, i32, i32
  }
  func.func @transform_7(%arg0: i32) -> (i32, i32) {
    %c0_i32 = arith.constant 0 : i32
    %c0_i32_0 = arith.constant 0 : i32
    %c0_i32_1 = arith.constant 0 : i32
    return %c0_i32, %c0_i32_0 : i32, i32
  }
  func.func @transform_8(%arg0: i32) -> (i32, i32) {
    %c0_i32 = arith.constant 0 : i32
    %c0_i32_0 = arith.constant 0 : i32
    %c0_i32_1 = arith.constant 0 : i32
    return %c0_i32, %c0_i32_0 : i32, i32
  }
  func.func @transform_9(%arg0: i32) -> (i32, i32) {
    %c0_i32 = arith.constant 0 : i32
    %c0_i32_0 = arith.constant 0 : i32
    %c0_i32_1 = arith.constant 0 : i32
    return %c0_i32, %c0_i32_0 : i32, i32
  }
  func.func @transform_10(%arg0: i32) -> (i32, i32) {
    %c0_i32 = arith.constant 0 : i32
    %c0_i32_0 = arith.constant 0 : i32
    %c0_i32_1 = arith.constant 0 : i32
    return %c0_i32, %c0_i32_0 : i32, i32
  }
  func.func @transform_11(%arg0: i32) -> (i32, i32) {
    %c0_i32 = arith.constant 0 : i32
    %c0_i32_0 = arith.constant 0 : i32
    %c0_i32_1 = arith.constant 0 : i32
    return %c0_i32, %c0_i32_0 : i32, i32
  }
  func.func @transform_12(%arg0: i32) -> (i32, i32, i32) {
    %c0_i32 = arith.constant 0 : i32
    %c0_i32_0 = arith.constant 0 : i32
    %c0_i32_1 = arith.constant 0 : i32
    return %arg0, %c0_i32, %c0_i32_0 : i32, i32, i32
  }
}

</mosaic_0001>

<llo_original>
// kernel: tpu_custom_call.1
$region0: #{tpu_custom_call.1}
  #allocation0 [shape = 'u32[]', space=smem, size = 0x4, offset = 0x4, fixed_abs, tag = 'smem constant byte address 0x4 - core index']
  #allocation1 [shape = 'u32[144,128]{1,0:T(1,128)}', space=vmem, size = 0x12000, scoped, tag = 'internal scratch']
  %s0 = inlined_call_operand.vmem [shape: f32[4,8,15], index: 0, kind: input, shape index: {}]
  %s1 = inlined_call_operand.vmem [shape: f32[4,8,5], index: 1, kind: input, shape index: {}]
  %s2 = inlined_call_operand.vmem [shape: f32[4,8,5], index: 2, kind: input, shape index: {}]
  %s3 = inlined_call_operand.hbm [shape: bf16[4,8,8], index: 3, kind: input, shape index: {}]
  %s4 = inlined_call_operand.hbm [shape: bf16[4,8,8], index: 4, kind: input, shape index: {}]
  %s5 = inlined_call_operand.vmem [shape: bf16[4,8,8], index: 5, kind: input, shape index: {}]
  %s6 = inlined_call_operand.hbm [shape: bf16[4,8,8], index: 6, kind: input, shape index: {}]
  %s7 = inlined_call_operand.hbm [shape: f32[15,32], index: 7, kind: input, shape index: {}]
  %s8 = inlined_call_operand.hbm [shape: f32[5,32], index: 8, kind: input, shape index: {}]
  %s9 = inlined_call_operand.vmem [shape: f32[32,32], index: 9, kind: input, shape index: {}]
  %s10 = inlined_call_operand.hbm [shape: f32[15,128], index: 10, kind: input, shape index: {}]
  %s11 = inlined_call_operand.vmem [shape: f32[32,128], index: 11, kind: input, shape index: {}]
  %s12 = inlined_call_operand.hbm [shape: f32[4,8,128], index: 12, kind: output, shape index: {}]
  %s13 = sld [smem:[#allocation0]]
  $region105: #{tpu_custom_call.1} parent=0
    _
  %s15 = ssub.s32 1, %s13
  %s16 = scalar_select 0, %s15, %s13
  $region1: #{tpu_custom_call.1} parent=0
    #allocation2 [shape = 'u8[4096]{0}', space=vmem, size = 0x1000, scoped, tag = 'input window, operand 3']
    #allocation3 [shape = 's32[2]{0}', space=sflag, size = 0x8, scoped, tag = 'scoped memory for tpu_custom_call.1']
    #allocation4 [shape = 's32[2]{0}', space=sflag, size = 0x8, scoped, tag = 'scoped memory for tpu_custom_call.1']
    #allocation5 [shape = 'u8[4096]{0}', space=vmem, size = 0x1000, scoped, tag = 'input window, operand 4']
    #allocation6 [shape = 's32[2]{0}', space=sflag, size = 0x8, scoped, tag = 'scoped memory for tpu_custom_call.1']
    #allocation7 [shape = 'u8[4096]{0}', space=vmem, size = 0x1000, scoped, tag = 'input window, operand 6']
    #allocation8 [shape = 'u8[8192]{0}', space=vmem, size = 0x2000, scoped, tag = 'input window, operand 7, single buffered']
    #allocation9 [shape = 's32[1]{0}', space=sflag, size = 0x4, scoped, tag = 'scoped memory for tpu_custom_call.1']
    #allocation10 [shape = 'u8[4096]{0}', space=vmem, size = 0x1000, scoped, tag = 'input window, operand 8, single buffered']
    #allocation11 [shape = 'u8[8192]{0}', space=vmem, size = 0x2000, scoped, tag = 'input window, operand 10, single buffered']
    #allocation12 [shape = 's32[1]{0}', space=sflag, size = 0x4, scoped, tag = 'scoped memory for tpu_custom_call.1']
    #allocation13 [shape = 'u8[8192]{0}', space=vmem, size = 0x2000, scoped, tag = 'output window, operand 0']
    %17 = vsyncpa [#allocation3], 0
    %s18 = scalar_lea.sflag [#allocation3], 1
    %19 = vsyncpa %s18, 0
    %20 = vsyncpa [#allocation6], 0
    %s21 = scalar_lea.sflag [#allocation6], 1
    %22 = vsyncpa %s21, 0
    %23 = vsyncpa [#allocation9], 0
    %24 = vsyncpa [#allocation12], 0
    %25 = vsyncpa [#allocation4], 0
    %s26 = scalar_lea.sflag [#allocation4], 1
    %27 = vsyncpa %s26, 0
    loop: start=0, step=1, limit=6
    $region2: #{tpu_custom_call.1} parent=1 // loop_pre_header
      _
    $region3: #{tpu_custom_call.1} parent=1 // loop_header
      %s29 = sphi 0, %s33
      %p30 = scmp.ge.s32.totalorder %s29, 6
      %s39 = sphi 0, %s41
      %s42 = sphi 0, %s39
      %s43 = sphi 0, %s42
      %s59 = sphi 0, %s43
      %s65 = sphi 0, %s67
      %s68 = sphi 0, %s65
      %s69 = sphi 0, %s68
      %s85 = sphi 0, %s69
      %s91 = sphi 0, %s93
      %s94 = sphi 0, %s91
      %s95 = sphi 0, %s94
      %s111 = sphi 0, %s95
      %s117 = sphi 0, %s119
      %s120 = sphi 0, %s117
      %s121 = sphi 0, %s120
      %s137 = sphi 0, %s121
      %s143 = sphi 0, %s145
      %s146 = sphi 0, %s143
      %s147 = sphi 0, %s146
      %s163 = sphi 0, %s147
      %s169 = sphi 0, %s171
      %s172 = sphi 0, %s169
      %s173 = sphi 0, %s172
      %s189 = sphi 0, %s173
      %s195 = sphi 0, %s197
      %s198 = sphi 0, %s195
      %s199 = sphi 0, %s198
      %s215 = sphi 0, %s199
      %s219 = sphi 0, %s219
      %s221 = sphi 0, %s219
      %s222 = sphi 0, %s221
      %s236 = sphi 0, %s222
      %s240 = sphi 0, %s240
      %s242 = sphi 0, %s240
      %s243 = sphi 0, %s242
      %s257 = sphi 0, %s243
      %s261 = sphi 0, %s261
      %s263 = sphi 0, %s261
      %s264 = sphi 0, %s263
      %s278 = sphi 0, %s264
      %s282 = sphi 0, %s282
      %s284 = sphi 0, %s282
      %s285 = sphi 0, %s284
      %s299 = sphi 0, %s285
      %s303 = sphi 0, %s303
      %s305 = sphi 0, %s303
      %s306 = sphi 0, %s305
      %s320 = sphi 0, %s306
      %s326 = sphi 0, %s328
      %s329 = sphi 0, %s326
      %s330 = sphi 0, %s329
      %s346 = sphi 0, %s330
    $region4: #{tpu_custom_call.1} parent=1 // loop_header_branch
      %32 = sbr.rel (%p30) target = $region8
    $region5: #{tpu_custom_call.1} parent=1 // loop_body
      %s34 = ssub.s32 %s29, 1
      %s35 = ssub.s32 %s29, 2
      %s36 = sadd.s32 %s29, 1
      %s37 = ssub.s32 %s29, %s36
      %p38 = scmp.eq.s32.totalorder %s37, 0
      %s40 = sadd.s32 %s39, 1
      %s41 = scalar_select %p38, %s39, %s40
      %p44 = pneg %p38
      %p45 = scmp.eq.s32.totalorder %s29, 3
      %p46 = por %p44, %p45
      %p47 = scmp.ne.s32.totalorder %s39, %s42
      %p48 = scmp.eq.s32.totalorder %s29, 0
      %p49 = por %p47, %p48
      %p50 = scmp.ne.s32.totalorder %s39, %s42
      %p51 = scmp.eq.s32.totalorder %s34, 3
      %p52 = por %p50, %p51
      %p53 = scmp.ne.s32.totalorder %s42, %s43
      %p54 = scmp.eq.s32.totalorder %s34, 0
      %p55 = por %p53, %p54
      %p56 = scmp.ne.s32.totalorder %s42, %s43
      %p57 = scmp.eq.s32.totalorder %s35, 3
      %p58 = por %p56, %p57
      %p60 = scmp.ne.s32.totalorder %s43, %s59
      %p61 = scmp.eq.s32.totalorder %s35, 0
      %p62 = por %p60, %p61
      %s63 = ssub.s32 %s29, %s36
      %p64 = scmp.eq.s32.totalorder %s63, 0
      %s66 = sadd.s32 %s65, 1
      %s67 = scalar_select %p64, %s65, %s66
      %p70 = pneg %p64
      %p71 = scmp.eq.s32.totalorder %s29, 3
      %p72 = por %p70, %p71
      %p73 = scmp.ne.s32.totalorder %s65, %s68
      %p74 = scmp.eq.s32.totalorder %s29, 0
      %p75 = por %p73, %p74
      %p76 = scmp.ne.s32.totalorder %s65, %s68
      %p77 = scmp.eq.s32.totalorder %s34, 3
      %p78 = por %p76, %p77
      %p79 = scmp.ne.s32.totalorder %s68, %s69
      %p80 = scmp.eq.s32.totalorder %s34, 0
      %p81 = por %p79, %p80
      %p82 = scmp.ne.s32.totalorder %s68, %s69
      %p83 = scmp.eq.s32.totalorder %s35, 3
      %p84 = por %p82, %p83
      %p86 = scmp.ne.s32.totalorder %s69, %s85
      %p87 = scmp.eq.s32.totalorder %s35, 0
      %p88 = por %p86, %p87
      %s89 = ssub.s32 %s29, %s36
      %p90 = scmp.eq.s32.totalorder %s89, 0
      %s92 = sadd.s32 %s91, 1
      %s93 = scalar_select %p90, %s91, %s92
      %p96 = pneg %p90
      %p97 = scmp.eq.s32.totalorder %s29, 3
      %p98 = por %p96, %p97
      %p99 = scmp.ne.s32.totalorder %s91, %s94
      %p100 = scmp.eq.s32.totalorder %s29, 0
      %p101 = por %p99, %p100
      %p102 = scmp.ne.s32.totalorder %s91, %s94
      %p103 = scmp.eq.s32.totalorder %s34, 3
      %p104 = por %p102, %p103
      %p105 = scmp.ne.s32.totalorder %s94, %s95
      %p106 = scmp.eq.s32.totalorder %s34, 0
      %p107 = por %p105, %p106
      %p108 = scmp.ne.s32.totalorder %s94, %s95
      %p109 = scmp.eq.s32.totalorder %s35, 3
      %p110 = por %p108, %p109
      %p112 = scmp.ne.s32.totalorder %s95, %s111
      %p113 = scmp.eq.s32.totalorder %s35, 0
      %p114 = por %p112, %p113
      %s115 = ssub.s32 %s29, %s36
      %p116 = scmp.eq.s32.totalorder %s115, 0
      %s118 = sadd.s32 %s117, 1
      %s119 = scalar_select %p116, %s117, %s118
      %p122 = pneg %p116
      %p123 = scmp.eq.s32.totalorder %s29, 3
      %p124 = por %p122, %p123
      %p125 = scmp.ne.s32.totalorder %s117, %s120
      %p126 = scmp.eq.s32.totalorder %s29, 0
      %p127 = por %p125, %p126
      %p128 = scmp.ne.s32.totalorder %s117, %s120
      %p129 = scmp.eq.s32.totalorder %s34, 3
      %p130 = por %p128, %p129
      %p131 = scmp.ne.s32.totalorder %s120, %s121
      %p132 = scmp.eq.s32.totalorder %s34, 0
      %p133 = por %p131, %p132
      %p134 = scmp.ne.s32.totalorder %s120, %s121
      %p135 = scmp.eq.s32.totalorder %s35, 3
      %p136 = por %p134, %p135
      %p138 = scmp.ne.s32.totalorder %s121, %s137
      %p139 = scmp.eq.s32.totalorder %s35, 0
      %p140 = por %p138, %p139
      %s141 = ssub.s32 %s29, %s36
      %p142 = scmp.eq.s32.totalorder %s141, 0
      %s144 = sadd.s32 %s143, 1
      %s145 = scalar_select %p142, %s143, %s144
      %p148 = pneg %p142
      %p149 = scmp.eq.s32.totalorder %s29, 3
      %p150 = por %p148, %p149
      %p151 = scmp.ne.s32.totalorder %s143, %s146
      %p152 = scmp.eq.s32.totalorder %s29, 0
      %p153 = por %p151, %p152
      %p154 = scmp.ne.s32.totalorder %s143, %s146
      %p155 = scmp.eq.s32.totalorder %s34, 3
      %p156 = por %p154, %p155
      %p157 = scmp.ne.s32.totalorder %s146, %s147
      %p158 = scmp.eq.s32.totalorder %s34, 0
      %p159 = por %p157, %p158
      %p160 = scmp.ne.s32.totalorder %s146, %s147
      %p161 = scmp.eq.s32.totalorder %s35, 3
      %p162 = por %p160, %p161
      %p164 = scmp.ne.s32.totalorder %s147, %s163
      %p165 = scmp.eq.s32.totalorder %s35, 0
      %p166 = por %p164, %p165
      %s167 = ssub.s32 %s29, %s36
      %p168 = scmp.eq.s32.totalorder %s167, 0
      %s170 = sadd.s32 %s169, 1
      %s171 = scalar_select %p168, %s169, %s170
      %p174 = pneg %p168
      %p175 = scmp.eq.s32.totalorder %s29, 3
      %p176 = por %p174, %p175
      %p177 = scmp.ne.s32.totalorder %s169, %s172
      %p178 = scmp.eq.s32.totalorder %s29, 0
      %p179 = por %p177, %p178
      %p180 = scmp.ne.s32.totalorder %s169, %s172
      %p181 = scmp.eq.s32.totalorder %s34, 3
      %p182 = por %p180, %p181
      %p183 = scmp.ne.s32.totalorder %s172, %s173
      %p184 = scmp.eq.s32.totalorder %s34, 0
      %p185 = por %p183, %p184
      %p186 = scmp.ne.s32.totalorder %s172, %s173
      %p187 = scmp.eq.s32.totalorder %s35, 3
      %p188 = por %p186, %p187
      %p190 = scmp.ne.s32.totalorder %s173, %s189
      %p191 = scmp.eq.s32.totalorder %s35, 0
      %p192 = por %p190, %p191
      %s193 = ssub.s32 %s29, %s36
      %p194 = scmp.eq.s32.totalorder %s193, 0
      %s196 = sadd.s32 %s195, 1
      %s197 = scalar_select %p194, %s195, %s196
      %p200 = pneg %p194
      %p201 = scmp.eq.s32.totalorder %s29, 3
      %p202 = por %p200, %p201
      %p203 = scmp.ne.s32.totalorder %s195, %s198
      %p204 = scmp.eq.s32.totalorder %s29, 0
      %p205 = por %p203, %p204
      %p206 = scmp.ne.s32.totalorder %s195, %s198
      %p207 = scmp.eq.s32.totalorder %s34, 3
      %p208 = por %p206, %p207
      %p209 = scmp.ne.s32.totalorder %s198, %s199
      %p210 = scmp.eq.s32.totalorder %s34, 0
      %p211 = por %p209, %p210
      %p212 = scmp.ne.s32.totalorder %s198, %s199
      %p213 = scmp.eq.s32.totalorder %s35, 3
      %p214 = por %p212, %p213
      %p216 = scmp.ne.s32.totalorder %s199, %s215
      %p217 = scmp.eq.s32.totalorder %s35, 0
      %p218 = por %p216, %p217
      %s220 = sadd.s32 %s219, 1
      %p223 = scmp.eq.s32.totalorder %s29, 3
      %p224 = scmp.ne.s32.totalorder %s219, %s221
      %p225 = scmp.eq.s32.totalorder %s29, 0
      %p226 = por %p224, %p225
      %p227 = scmp.ne.s32.totalorder %s219, %s221
      %p228 = scmp.eq.s32.totalorder %s34, 3
      %p229 = por %p227, %p228
      %p230 = scmp.ne.s32.totalorder %s221, %s222
      %p231 = scmp.eq.s32.totalorder %s34, 0
      %p232 = por %p230, %p231
      %p233 = scmp.ne.s32.totalorder %s221, %s222
      %p234 = scmp.eq.s32.totalorder %s35, 3
      %p235 = por %p233, %p234
      %p237 = scmp.ne.s32.totalorder %s222, %s236
      %p238 = scmp.eq.s32.totalorder %s35, 0
      %p239 = por %p237, %p238
      %s241 = sadd.s32 %s240, 1
      %p244 = scmp.eq.s32.totalorder %s29, 3
      %p245 = scmp.ne.s32.totalorder %s240, %s242
      %p246 = scmp.eq.s32.totalorder %s29, 0
      %p247 = por %p245, %p246
      %p248 = scmp.ne.s32.totalorder %s240, %s242
      %p249 = scmp.eq.s32.totalorder %s34, 3
      %p250 = por %p248, %p249
      %p251 = scmp.ne.s32.totalorder %s242, %s243
      %p252 = scmp.eq.s32.totalorder %s34, 0
      %p253 = por %p251, %p252
      %p254 = scmp.ne.s32.totalorder %s242, %s243
      %p255 = scmp.eq.s32.totalorder %s35, 3
      %p256 = por %p254, %p255
      %p258 = scmp.ne.s32.totalorder %s243, %s257
      %p259 = scmp.eq.s32.totalorder %s35, 0
      %p260 = por %p258, %p259
      %s262 = sadd.s32 %s261, 1
      %p265 = scmp.eq.s32.totalorder %s29, 3
      %p266 = scmp.ne.s32.totalorder %s261, %s263
      %p267 = scmp.eq.s32.totalorder %s29, 0
      %p268 = por %p266, %p267
      %p269 = scmp.ne.s32.totalorder %s261, %s263
      %p270 = scmp.eq.s32.totalorder %s34, 3
      %p271 = por %p269, %p270
      %p272 = scmp.ne.s32.totalorder %s263, %s264
      %p273 = scmp.eq.s32.totalorder %s34, 0
      %p274 = por %p272, %p273
      %p275 = scmp.ne.s32.totalorder %s263, %s264
      %p276 = scmp.eq.s32.totalorder %s35, 3
      %p277 = por %p275, %p276
      %p279 = scmp.ne.s32.totalorder %s264, %s278
      %p280 = scmp.eq.s32.totalorder %s35, 0
      %p281 = por %p279, %p280
      %s283 = sadd.s32 %s282, 1
      %p286 = scmp.eq.s32.totalorder %s29, 3
      %p287 = scmp.ne.s32.totalorder %s282, %s284
      %p288 = scmp.eq.s32.totalorder %s29, 0
      %p289 = por %p287, %p288
      %p290 = scmp.ne.s32.totalorder %s282, %s284
      %p291 = scmp.eq.s32.totalorder %s34, 3
      %p292 = por %p290, %p291
      %p293 = scmp.ne.s32.totalorder %s284, %s285
      %p294 = scmp.eq.s32.totalorder %s34, 0
      %p295 = por %p293, %p294
      %p296 = scmp.ne.s32.totalorder %s284, %s285
      %p297 = scmp.eq.s32.totalorder %s35, 3
      %p298 = por %p296, %p297
      %p300 = scmp.ne.s32.totalorder %s285, %s299
      %p301 = scmp.eq.s32.totalorder %s35, 0
      %p302 = por %p300, %p301
      %s304 = sadd.s32 %s303, 1
      %p307 = scmp.eq.s32.totalorder %s29, 3
      %p308 = scmp.ne.s32.totalorder %s303, %s305
      %p309 = scmp.eq.s32.totalorder %s29, 0
      %p310 = por %p308, %p309
      %p311 = scmp.ne.s32.totalorder %s303, %s305
      %p312 = scmp.eq.s32.totalorder %s34, 3
      %p313 = por %p311, %p312
      %p314 = scmp.ne.s32.totalorder %s305, %s306
      %p315 = scmp.eq.s32.totalorder %s34, 0
      %p316 = por %p314, %p315
      %p317 = scmp.ne.s32.totalorder %s305, %s306
      %p318 = scmp.eq.s32.totalorder %s35, 3
      %p319 = por %p317, %p318
      %p321 = scmp.ne.s32.totalorder %s306, %s320
      %p322 = scmp.eq.s32.totalorder %s35, 0
      %p323 = por %p321, %p322
      %s324 = ssub.s32 %s29, %s36
      %p325 = scmp.eq.s32.totalorder %s324, 0
      %s327 = sadd.s32 %s326, 1
      %s328 = scalar_select %p325, %s326, %s327
      %p331 = pneg %p325
      %p332 = scmp.eq.s32.totalorder %s29, 3
      %p333 = por %p331, %p332
      %p334 = scmp.ne.s32.totalorder %s326, %s329
      %p335 = scmp.eq.s32.totalorder %s29, 0
      %p336 = por %p334, %p335
      %p337 = scmp.ne.s32.totalorder %s326, %s329
      %p338 = scmp.eq.s32.totalorder %s34, 3
      %p339 = por %p337, %p338
      %p340 = scmp.ne.s32.totalorder %s329, %s330
      %p341 = scmp.eq.s32.totalorder %s34, 0
      %p342 = por %p340, %p341
      %p343 = scmp.ne.s32.totalorder %s329, %s330
      %p344 = scmp.eq.s32.totalorder %s35, 3
      %p345 = por %p343, %p344
      %p347 = scmp.ne.s32.totalorder %s330, %s346
      %p348 = scmp.eq.s32.totalorder %s35, 0
      %p349 = por %p347, %p348
      %p350 = scmp.le.s32.totalorder 1, %s29
      %p351 = scmp.lt.s32.totalorder %s29, 5
      %p352 = pnand %p350, %p351
      %p353 = pneg %p352
      // Predicated region
      $region9: #{tpu_custom_call.1} parent=5 // pred_check
        _
      $region10: #{tpu_custom_call.1} parent=5 // pred_check_branch
        %355 = sbr.rel (%p352) target = $region12
      $region11: #{tpu_custom_call.1} parent=5 // pred_region
        %s356 = ssub.s32 %s29, 1
        // Predicated region
        $region13: #{tpu_custom_call.1} parent=11 // pred_check
          %p357 = pneg %p232
        $region14: #{tpu_custom_call.1} parent=11 // pred_check_branch
          %359 = sbr.rel (%p357) target = $region16
        $region15: #{tpu_custom_call.1} parent=11 // pred_region
          %s361 = ssub.s32 256, 256
          %362 = vsyncadd [#allocation9], %s361
          %s363 = sshll.u32 [#allocation8], 4
          %s364 = int_to_ptr.vmem [resolvable:$true] %s363
          %369 = dma.hbm_to_vmem [thread:$0]  %s7, 256, %s364, [#allocation9], 128, 128, 8
        $region16: #{tpu_custom_call.1} parent=11 // pred_fallthru
          _
        // Predicated region
        $region17: #{tpu_custom_call.1} parent=11 // pred_check
          %p370 = pneg %p253
        $region18: #{tpu_custom_call.1} parent=11 // pred_check_branch
          %372 = sbr.rel (%p370) target = $region20
        $region19: #{tpu_custom_call.1} parent=11 // pred_region
          %s374 = ssub.s32 128, 128
          %375 = vsyncadd [#allocation9], %s374
          %s377 = sshll.u32 [#allocation10], 4
          %s378 = int_to_ptr.vmem [resolvable:$true] %s377
          %380 = dma.hbm_to_vmem [thread:$0]  %s8, 128, %s378, [#allocation9]
        $region20: #{tpu_custom_call.1} parent=11 // pred_fallthru
          _
        // Predicated region
        $region21: #{tpu_custom_call.1} parent=11 // pred_check
          %p381 = pneg %p274
        $region22: #{tpu_custom_call.1} parent=11 // pred_check_branch
          %383 = sbr.rel (%p381) target = $region24
        $region23: #{tpu_custom_call.1} parent=11 // pred_region
          _
        $region24: #{tpu_custom_call.1} parent=11 // pred_fallthru
          _
        // Predicated region
        $region25: #{tpu_custom_call.1} parent=11 // pred_check
          %p384 = pneg %p295
        $region26: #{tpu_custom_call.1} parent=11 // pred_check_branch
          %386 = sbr.rel (%p384) target = $region28
        $region27: #{tpu_custom_call.1} parent=11 // pred_region
          %s388 = ssub.s32 256, 256
          %389 = vsyncadd [#allocation12], %s388
          %s390 = sshll.u32 [#allocation11], 4
          %s391 = int_to_ptr.vmem [resolvable:$true] %s390
          %396 = dma.hbm_to_vmem [thread:$0]  %s10, 256, %s391, [#allocation12], 128, 128, 8
        $region28: #{tpu_custom_call.1} parent=11 // pred_fallthru
          _
        // Predicated region
        $region29: #{tpu_custom_call.1} parent=11 // pred_check
          %p397 = pneg %p316
        $region30: #{tpu_custom_call.1} parent=11 // pred_check_branch
          %399 = sbr.rel (%p397) target = $region32
        $region31: #{tpu_custom_call.1} parent=11 // pred_region
          _
        $region32: #{tpu_custom_call.1} parent=11 // pred_fallthru
          _
      $region12: #{tpu_custom_call.1} parent=5 // pred_fallthru
        _
      %p400 = scmp.lt.s32.totalorder %s29, 4
      // Predicated region
      $region33: #{tpu_custom_call.1} parent=5 // pred_check
        %p401 = pneg %p400
      $region34: #{tpu_custom_call.1} parent=5 // pred_check_branch
        %403 = sbr.rel (%p401) target = $region36
      $region35: #{tpu_custom_call.1} parent=5 // pred_region
        // Predicated region
        $region37: #{tpu_custom_call.1} parent=35 // pred_check
          %p404 = pneg %p49
        $region38: #{tpu_custom_call.1} parent=35 // pred_check_branch
          %406 = sbr.rel (%p404) target = $region40
        $region39: #{tpu_custom_call.1} parent=35 // pred_region
          %p407 = scmp.lt.s32.totalorder %s29, 3
          %s408 = scalar_select %p407, %s29, 3
          %s409 = smul.addr %s408, 8
          %s410 = scalar_lea.vmem %s0, %s409
        $region40: #{tpu_custom_call.1} parent=35 // pred_fallthru
          _
        // Predicated region
        $region41: #{tpu_custom_call.1} parent=35 // pred_check
          %p411 = pneg %p75
        $region42: #{tpu_custom_call.1} parent=35 // pred_check_branch
          %413 = sbr.rel (%p411) target = $region44
        $region43: #{tpu_custom_call.1} parent=35 // pred_region
          %p414 = scmp.lt.s32.totalorder %s29, 3
          %s415 = scalar_select %p414, %s29, 3
          %s416 = smul.addr %s415, 8
          %s417 = scalar_lea.vmem %s1, %s416
        $region44: #{tpu_custom_call.1} parent=35 // pred_fallthru
          _
        // Predicated region
        $region45: #{tpu_custom_call.1} parent=35 // pred_check
          %p418 = pneg %p101
        $region46: #{tpu_custom_call.1} parent=35 // pred_check_branch
          %420 = sbr.rel (%p418) target = $region48
        $region47: #{tpu_custom_call.1} parent=35 // pred_region
          %p421 = scmp.lt.s32.totalorder %s29, 3
          %s422 = scalar_select %p421, %s29, 3
          %s423 = smul.addr %s422, 8
          %s424 = scalar_lea.vmem %s2, %s423
        $region48: #{tpu_custom_call.1} parent=35 // pred_fallthru
          _
        // Predicated region
        $region49: #{tpu_custom_call.1} parent=35 // pred_check
          %p425 = pneg %p127
        $region50: #{tpu_custom_call.1} parent=35 // pred_check_branch
          %427 = sbr.rel (%p425) target = $region52
        $region51: #{tpu_custom_call.1} parent=35 // pred_region
          %s428 = sand.u32 %s117, 1
          %s429 = scalar_lea.sflag [#allocation3], %s428
          %s430 = sand.u32 %s117, 1
          %s431 = smul.addr %s430, 4
          %s432 = scalar_lea.vmem [#allocation2], %s431
          %s434 = ssub.s32 64, 64
          %435 = vsyncadd %s429, %s434
          %s436 = smul.addr %s29, 64
          %s437 = scalar_lea.hbm %s3, %s436
          %s439 = sshll.u32 %s432, 4
          %s440 = int_to_ptr.vmem [resolvable:$true] %s439
          %442 = dma.hbm_to_vmem [thread:$0]  %s437, 64, %s440, %s429
        $region52: #{tpu_custom_call.1} parent=35 // pred_fallthru
          _
        // Predicated region
        $region53: #{tpu_custom_call.1} parent=35 // pred_check
          %p443 = pneg %p153
        $region54: #{tpu_custom_call.1} parent=35 // pred_check_branch
          %445 = sbr.rel (%p443) target = $region56
        $region55: #{tpu_custom_call.1} parent=35 // pred_region
          %s446 = sand.u32 %s29, 1
          %s447 = scalar_lea.sflag [#allocation6], %s446
          %s448 = sand.u32 %s143, 1
          %s449 = smul.addr %s448, 4
          %s450 = scalar_lea.vmem [#allocation5], %s449
          %s452 = ssub.s32 64, 64
          %453 = vsyncadd %s447, %s452
          %s454 = smul.addr %s29, 64
          %s455 = scalar_lea.hbm %s4, %s454
          %s457 = sshll.u32 %s450, 4
          %s458 = int_to_ptr.vmem [resolvable:$true] %s457
          %460 = dma.hbm_to_vmem [thread:$0]  %s455, 64, %s458, %s447
        $region56: #{tpu_custom_call.1} parent=35 // pred_fallthru
          _
        // Predicated region
        $region57: #{tpu_custom_call.1} parent=35 // pred_check
          %p461 = pneg %p179
        $region58: #{tpu_custom_call.1} parent=35 // pred_check_branch
          %463 = sbr.rel (%p461) target = $region60
        $region59: #{tpu_custom_call.1} parent=35 // pred_region
          %p464 = scmp.lt.s32.totalorder %s29, 3
          %s465 = scalar_select %p464, %s29, 3
          %s466 = smul.addr %s465, 4
          %s467 = scalar_lea.vmem %s5, %s466
        $region60: #{tpu_custom_call.1} parent=35 // pred_fallthru
          _
        // Predicated region
        $region61: #{tpu_custom_call.1} parent=35 // pred_check
          %p468 = pneg %p205
        $region62: #{tpu_custom_call.1} parent=35 // pred_check_branch
          %470 = sbr.rel (%p468) target = $region64
        $region63: #{tpu_custom_call.1} parent=35 // pred_region
          %s471 = sand.u32 %s29, 1
          %s472 = scalar_lea.sflag [#allocation6], %s471
          %s473 = sand.u32 %s195, 1
          %s474 = smul.addr %s473, 4
          %s475 = scalar_lea.vmem [#allocation7], %s474
          %s477 = ssub.s32 64, 64
          %478 = vsyncadd %s472, %s477
          %s479 = smul.addr %s29, 64
          %s480 = scalar_lea.hbm %s6, %s479
          %s482 = sshll.u32 %s475, 4
          %s483 = int_to_ptr.vmem [resolvable:$true] %s482
          %485 = dma.hbm_to_vmem [thread:$0]  %s480, 64, %s483, %s472
        $region64: #{tpu_custom_call.1} parent=35 // pred_fallthru
          _
      $region36: #{tpu_custom_call.1} parent=5 // pred_fallthru
        _
      %p486 = scmp.le.s32.totalorder 1, %s29
      %p487 = scmp.lt.s32.totalorder %s29, 5
      %p488 = pnand %p486, %p487
      %p489 = pneg %p488
      // Predicated region
      $region65: #{tpu_custom_call.1} parent=5 // pred_check
        _
      $region66: #{tpu_custom_call.1} parent=5 // pred_check_branch
        %491 = sbr.rel (%p488) target = $region68
      $region67: #{tpu_custom_call.1} parent=5 // pred_region
        %s492 = ssub.s32 %s29, 1
        %s493 = sand.u32 %s120, 1
        %s494 = scalar_lea.sflag [#allocation3], %s493
        %s495 = sand.u32 %s120, 1
        %s496 = smul.addr %s495, 4
        %s497 = scalar_lea.vmem [#allocation2], %s496
        // Predicated region
        $region69: #{tpu_custom_call.1} parent=67 // pred_check
          %p498 = pneg %p133
        $region70: #{tpu_custom_call.1} parent=67 // pred_check_branch
          %500 = sbr.rel (%p498) target = $region72
        $region71: #{tpu_custom_call.1} parent=67 // pred_region
          %501 = dma.done %s494, 64
        $region72: #{tpu_custom_call.1} parent=67 // pred_fallthru
          _
        %s502 = sand.u32 %s34, 1
        %s503 = scalar_lea.sflag [#allocation6], %s502
        %s504 = sand.u32 %s146, 1
        %s505 = smul.addr %s504, 4
        %s506 = scalar_lea.vmem [#allocation5], %s505
        // Predicated region
        $region73: #{tpu_custom_call.1} parent=67 // pred_check
          %p507 = pneg %p159
        $region74: #{tpu_custom_call.1} parent=67 // pred_check_branch
          %509 = sbr.rel (%p507) target = $region76
        $region75: #{tpu_custom_call.1} parent=67 // pred_region
          %510 = dma.done %s503, 64
        $region76: #{tpu_custom_call.1} parent=67 // pred_fallthru
          _
        %s511 = sand.u32 %s34, 1
        %s512 = scalar_lea.sflag [#allocation6], %s511
        %s513 = sand.u32 %s198, 1
        %s514 = smul.addr %s513, 4
        %s515 = scalar_lea.vmem [#allocation7], %s514
        // Predicated region
        $region77: #{tpu_custom_call.1} parent=67 // pred_check
          %p516 = pneg %p211
        $region78: #{tpu_custom_call.1} parent=67 // pred_check_branch
          %518 = sbr.rel (%p516) target = $region80
        $region79: #{tpu_custom_call.1} parent=67 // pred_region
          %519 = dma.done %s512, 64
        $region80: #{tpu_custom_call.1} parent=67 // pred_fallthru
          _
        // Predicated region
        $region81: #{tpu_custom_call.1} parent=67 // pred_check
          %p520 = pneg %p232
        $region82: #{tpu_custom_call.1} parent=67 // pred_check_branch
          %522 = sbr.rel (%p520) target = $region84
        $region83: #{tpu_custom_call.1} parent=67 // pred_region
          %523 = dma.done [#allocation9], 256
        $region84: #{tpu_custom_call.1} parent=67 // pred_fallthru
          _
        // Predicated region
        $region85: #{tpu_custom_call.1} parent=67 // pred_check
          %p524 = pneg %p253
        $region86: #{tpu_custom_call.1} parent=67 // pred_check_branch
          %526 = sbr.rel (%p524) target = $region88
        $region87: #{tpu_custom_call.1} parent=67 // pred_region
          %527 = dma.done [#allocation9], 128
        $region88: #{tpu_custom_call.1} parent=67 // pred_fallthru
          _
        // Predicated region
        $region89: #{tpu_custom_call.1} parent=67 // pred_check
          %p528 = pneg %p295
        $region90: #{tpu_custom_call.1} parent=67 // pred_check_branch
          %530 = sbr.rel (%p528) target = $region92
        $region91: #{tpu_custom_call.1} parent=67 // pred_region
          %531 = dma.done [#allocation12], 256
        $region92: #{tpu_custom_call.1} parent=67 // pred_fallthru
          _
        %p532 = scmp.lt.s32.totalorder %s34, 3
        %s533 = scalar_select %p532, %s34, 3
        %s534 = smul.addr %s533, 8
        %s535 = scalar_lea.vmem %s0, %s534
        %p536 = pneg %p55
        %p537 = pneg %p52
        %p538 = scmp.lt.s32.totalorder %s34, 3
        %s539 = scalar_select %p538, %s34, 3
        %s540 = smul.addr %s539, 8
        %s541 = scalar_lea.vmem %s1, %s540
        %p542 = pneg %p81
        %p543 = pneg %p78
        %p544 = scmp.lt.s32.totalorder %s34, 3
        %s545 = scalar_select %p544, %s34, 3
        %s546 = smul.addr %s545, 8
        %s547 = scalar_lea.vmem %s2, %s546
        %p548 = pneg %p107
        %p549 = pneg %p104
        %s550 = sand.u32 %s120, 1
        %s551 = scalar_lea.sflag [#allocation3], %s550
        %s552 = sand.u32 %s120, 1
        %s553 = smul.addr %s552, 4
        %s554 = scalar_lea.vmem [#allocation2], %s553
        %p555 = pneg %p133
        %p556 = pneg %p130
        %s557 = sand.u32 %s34, 1
        %s558 = scalar_lea.sflag [#allocation6], %s557
        %s559 = sand.u32 %s146, 1
        %s560 = smul.addr %s559, 4
        %s561 = scalar_lea.vmem [#allocation5], %s560
        %p562 = pneg %p159
        %p563 = pneg %p156
        %p564 = scmp.lt.s32.totalorder %s34, 3
        %s565 = scalar_select %p564, %s34, 3
        %s566 = smul.addr %s565, 4
        %s567 = scalar_lea.vmem %s5, %s566
        %p568 = pneg %p185
        %p569 = pneg %p182
        %s570 = sand.u32 %s34, 1
        %s571 = scalar_lea.sflag [#allocation6], %s570
        %s572 = sand.u32 %s198, 1
        %s573 = smul.addr %s572, 4
        %s574 = scalar_lea.vmem [#allocation7], %s573
        %p575 = pneg %p211
        %p576 = pneg %p208
        %p577 = pneg %p232
        %p578 = pneg %p229
        %p579 = pneg %p253
        %p580 = pneg %p250
        %p581 = pneg %p274
        %p582 = pneg %p271
        %p583 = pneg %p295
        %p584 = pneg %p292
        %p585 = pneg %p316
        %p586 = pneg %p313
        %p587 = pneg %p342
        %p588 = pneg %p339
        %s589 = sand.u32 %s329, 1
        %s590 = scalar_lea.sflag [#allocation4], %s589
        %s591 = sand.u32 %s329, 1
        %s592 = smul.addr %s591, 8
        %s593 = scalar_lea.vmem [#allocation13], %s592
        %p594 = scmp.lt.s32.totalorder %s34, 3
        %s595 = scalar_select %p594, %s34, 3
        %s596 = smul.addr %s595, 8
        %s597 = scalar_lea.vmem %s0, %s596
        %p598 = scmp.lt.s32.totalorder %s34, 3
        %s599 = scalar_select %p598, %s34, 3
        %s600 = smul.addr %s599, 8
        %s601 = scalar_lea.vmem %s1, %s600
        %p602 = scmp.lt.s32.totalorder %s34, 3
        %s603 = scalar_select %p602, %s34, 3
        %s604 = smul.addr %s603, 8
        %s605 = scalar_lea.vmem %s2, %s604
        %p606 = scmp.lt.s32.totalorder %s34, 3
        %s607 = scalar_select %p606, %s34, 3
        %s608 = smul.addr %s607, 4
        %s609 = scalar_lea.vmem %s5, %s608
        %v610 = vld [vmem:[%s597] sm:$0xff]
        %v611 = vld [vmem:[%s601] sm:$0xff]
        %v612 = vld [vmem:[%s605] sm:$0xff]
        %v613 = vld [vmem:[%s497] sm:$0xf]
        %v614 = vunpack.c.l.bf16 %v613
        %v615 = vld [vmem:[%s506] sm:$0xf]
        %v616 = vunpack.c.l.bf16 %v615
        %v617 = vld [vmem:[%s609] sm:$0xf]
        %v618 = vunpack.c.l.bf16 %v617
        %v619 = vld [vmem:[%s515] sm:$0xf]
        %v620 = vunpack.c.l.bf16 %v619
        %v621 = vld [vmem:[#allocation8] sm:$0xff]
        %v622 = vld [vmem:[#allocation8 + $0x8] sm:$0x7f]
        %v623 = vld [vmem:[#allocation10] sm:$0x1f]
        %v624 = vld [vmem:[%s9] sm:$0xff]
        %v625 = vld [vmem:[%s9 + $0x8] sm:$0xff]
        %v626 = vld [vmem:[%s9 + $0x10] sm:$0xff]
        %v627 = vld [vmem:[%s9 + $0x18] sm:$0xff]
        %v628 = vld [vmem:[#allocation11] sm:$0xff]
        %v629 = vld [vmem:[#allocation11 + $0x8] sm:$0x7f]
        %v630 = vld [vmem:[%s11] sm:$0xff]
        %v631 = vld [vmem:[%s11 + $0x8] sm:$0xff]
        %v632 = vld [vmem:[%s11 + $0x10] sm:$0xff]
        %v633 = vld [vmem:[%s11 + $0x18] sm:$0xff]
        %vm634 = vcmask 64512
        %v636 = vsel %vm634, %v614, 0
        %638 = vmatprep.subr.mxu0 0.0
        %639 = vmatpush1.msra.mxu0 0.0
        %640 = vmatprep.subr.mxu0 0.0
        %641 = vmatpush1.msra.mxu0 0.0
        %642 = vmatprep.subr.mxu0 0.0
        %643 = vmatpush1.msra.mxu0 0.0
        %644 = vmatprep.subr.mxu0 0.0
        %645 = vmatpush1.msra.mxu0 0.0
        %646 = vmatprep.subr.mxu0 0.0
        %647 = vmatpush1.msra.mxu0 0.0
        %648 = vmatprep.subr.mxu0 0.0
        %649 = vmatpush1.msra.mxu0 0.0
        %650 = vmatprep.subr.mxu0 0.0
        %651 = vmatpush1.msra.mxu0 0.0
        %652 = vmatprep.subr.mxu0 0.0
        %653 = vmatpush1.msra.mxu0 0.0
        %654 = vmatprep.subr.mxu0 0.0
        %655 = vmatpush1.msra.mxu0 0.0
        %656 = vmatprep.subr.mxu0 0.0
        %657 = vmatpush1.msra.mxu0 0.0
        %658 = vmatprep.subr.mxu0 0.0
        %659 = vmatpush1.msra.mxu0 0.0
        %660 = vmatprep.subr.mxu0 0.0
        %661 = vmatpush1.msra.mxu0 0.0
        %662 = vmatprep.subr.mxu0 0.0
        %663 = vmatpush1.msra.mxu0 0.0
        %664 = vmatprep.subr.mxu0 0.0
        %665 = vmatpush1.msra.mxu0 0.0
        %666 = vmatprep.subr.mxu0 0.0
        %667 = vmatpush1.msra.mxu0 0.0
        %668 = vmatprep.subr.mxu0 0.0
        %669 = vmatpush1.msra.mxu0 %v610
        %670 = vmatprep.subr.mxu0 0.0
        %671 = vmatpush2.msra.mxu0 0.0
        %672 = vmatprep.subr.mxu0 0.0
        %673 = vmatpush2.msra.mxu0 0.0
        %674 = vmatprep.subr.mxu0 0.0
        %675 = vmatpush2.msra.mxu0 0.0
        %676 = vmatprep.subr.mxu0 0.0
        %677 = vmatpush2.msra.mxu0 0.0
        %678 = vmatprep.subr.mxu0 0.0
        %679 = vmatpush2.msra.mxu0 0.0
        %680 = vmatprep.subr.mxu0 0.0
        %681 = vmatpush2.msra.mxu0 0.0
        %682 = vmatprep.subr.mxu0 0.0
        %683 = vmatpush2.msra.mxu0 0.0
        %684 = vmatprep.subr.mxu0 0.0
        %685 = vmatpush2.msra.mxu0 0.0
        %686 = vmatprep.subr.mxu0 0.0
        %687 = vmatpush2.msra.mxu0 0.0
        %688 = vmatprep.subr.mxu0 0.0
        %689 = vmatpush2.msra.mxu0 0.0
        %690 = vmatprep.subr.mxu0 0.0
        %691 = vmatpush2.msra.mxu0 0.0
        %692 = vmatprep.subr.mxu0 0.0
        %693 = vmatpush2.msra.mxu0 0.0
        %694 = vmatprep.subr.mxu0 0.0
        %695 = vmatpush2.msra.mxu0 0.0
        %696 = vmatprep.subr.mxu0 0.0
        %697 = vmatpush2.msra.mxu0 0.0
        %698 = vmatprep.subr.mxu0 0.0
        %699 = vmatpush2.msra.mxu0 0.0
        %700 = vmatprep.subr.mxu0 0.0
        %701 = vmatpush2.msra.mxu0 0.0
        %702 = vmatprep.mubr.f32.mxu0 0.0
        %703 = vmatmul.mubr.f32.gmra.mxu0 %v636
        %v704 = vpop.f32.mrf.mxu0
        %v705 = vadd.f32 0.0, %v704
        %v706 = vpop.f32.mrf.mxu0
        %707 = vdwg.mxu0
        %vm708 = vcmask 39936
        %v710 = vsel %vm708, %v611, 0
        %vm712 = vcmask 1044480
        %v714 = vsel %vm712, %v623, 0
        %716 = vmatprep.subr.mxu0 0.0
        %717 = vmatpush1.msra.mxu0 0.0
        %718 = vmatprep.subr.mxu0 0.0
        %719 = vmatpush1.msra.mxu0 0.0
        %720 = vmatprep.subr.mxu0 0.0
        %721 = vmatpush1.msra.mxu0 0.0
        %722 = vmatprep.subr.mxu0 0.0
        %723 = vmatpush1.msra.mxu0 0.0
        %724 = vmatprep.subr.mxu0 0.0
        %725 = vmatpush1.msra.mxu0 0.0
        %726 = vmatprep.subr.mxu0 0.0
        %727 = vmatpush1.msra.mxu0 0.0
        %728 = vmatprep.subr.mxu0 0.0
        %729 = vmatpush1.msra.mxu0 0.0
        %730 = vmatprep.subr.mxu0 0.0
        %731 = vmatpush1.msra.mxu0 0.0
        %732 = vmatprep.subr.mxu0 0.0
        %733 = vmatpush1.msra.mxu0 0.0
        %734 = vmatprep.subr.mxu0 0.0
        %735 = vmatpush1.msra.mxu0 0.0
        %736 = vmatprep.subr.mxu0 0.0
        %737 = vmatpush1.msra.mxu0 0.0
        %738 = vmatprep.subr.mxu0 0.0
        %739 = vmatpush1.msra.mxu0 0.0
        %740 = vmatprep.subr.mxu0 0.0
        %741 = vmatpush1.msra.mxu0 0.0
        %742 = vmatprep.subr.mxu0 0.0
        %743 = vmatpush1.msra.mxu0 0.0
        %744 = vmatprep.subr.mxu0 0.0
        %745 = vmatpush1.msra.mxu0 0.0
        %746 = vmatprep.subr.mxu0 0.0
        %747 = vmatpush1.msra.mxu0 %v714
        %748 = vmatprep.subr.mxu0 0.0
        %749 = vmatpush2.msra.mxu0 0.0
        %750 = vmatprep.subr.mxu0 0.0
        %751 = vmatpush2.msra.mxu0 0.0
        %752 = vmatprep.subr.mxu0 0.0
        %753 = vmatpush2.msra.mxu0 0.0
        %754 = vmatprep.subr.mxu0 0.0
        %755 = vmatpush2.msra.mxu0 0.0
        %756 = vmatprep.subr.mxu0 0.0
        %757 = vmatpush2.msra.mxu0 0.0
        %758 = vmatprep.subr.mxu0 0.0
        %759 = vmatpush2.msra.mxu0 0.0
        %760 = vmatprep.subr.mxu0 0.0
        %761 = vmatpush2.msra.mxu0 0.0
        %762 = vmatprep.subr.mxu0 0.0
        %763 = vmatpush2.msra.mxu0 0.0
        %764 = vmatprep.subr.mxu0 0.0
        %765 = vmatpush2.msra.mxu0 0.0
        %766 = vmatprep.subr.mxu0 0.0
        %767 = vmatpush2.msra.mxu0 0.0
        %768 = vmatprep.subr.mxu0 0.0
        %769 = vmatpush2.msra.mxu0 0.0
        %770 = vmatprep.subr.mxu0 0.0
        %771 = vmatpush2.msra.mxu0 0.0
        %772 = vmatprep.subr.mxu0 0.0
        %773 = vmatpush2.msra.mxu0 0.0
        %774 = vmatprep.subr.mxu0 0.0
        %775 = vmatpush2.msra.mxu0 0.0
        %776 = vmatprep.subr.mxu0 0.0
        %777 = vmatpush2.msra.mxu0 0.0
        %778 = vmatprep.subr.mxu0 0.0
        %779 = vmatpush2.msra.mxu0 0.0
        %780 = vmatprep.mubr.f32.mxu0 0.0
        %781 = vmatmul.mubr.f32.gmra.mxu0 %v710
        %v782 = vpop.f32.mrf.mxu0
        %v783 = vadd.f32 0.0, %v782
        %v784 = vpop.f32.mrf.mxu0
        %785 = vdwg.mxu0
        %vm786 = vcmask 121856
        %v788 = vsel %vm786, %v705, 0
        %vm790 = vcmask 1046528
        %v792 = vsel %vm790, %v622, 0
        %794 = vmatprep.subr.mxu0 0.0
        %795 = vmatpush1.msra.mxu0 0.0
        %796 = vmatprep.subr.mxu0 0.0
        %797 = vmatpush1.msra.mxu0 0.0
        %798 = vmatprep.subr.mxu0 0.0
        %799 = vmatpush1.msra.mxu0 0.0
        %800 = vmatprep.subr.mxu0 0.0
        %801 = vmatpush1.msra.mxu0 0.0
        %802 = vmatprep.subr.mxu0 0.0
        %803 = vmatpush1.msra.mxu0 0.0
        %804 = vmatprep.subr.mxu0 0.0
        %805 = vmatpush1.msra.mxu0 0.0
        %806 = vmatprep.subr.mxu0 0.0
        %807 = vmatpush1.msra.mxu0 0.0
        %808 = vmatprep.subr.mxu0 0.0
        %809 = vmatpush1.msra.mxu0 0.0
        %810 = vmatprep.subr.mxu0 0.0
        %811 = vmatpush1.msra.mxu0 0.0
        %812 = vmatprep.subr.mxu0 0.0
        %813 = vmatpush1.msra.mxu0 0.0
        %814 = vmatprep.subr.mxu0 0.0
        %815 = vmatpush1.msra.mxu0 0.0
        %816 = vmatprep.subr.mxu0 0.0
        %817 = vmatpush1.msra.mxu0 0.0
        %818 = vmatprep.subr.mxu0 0.0
        %819 = vmatpush1.msra.mxu0 0.0
        %820 = vmatprep.subr.mxu0 0.0
        %821 = vmatpush1.msra.mxu0 0.0
        %822 = vmatprep.subr.mxu0 0.0
        %823 = vmatpush1.msra.mxu0 %v792
        %824 = vmatprep.subr.mxu0 0.0
        %825 = vmatpush1.msra.mxu0 %v621
        %826 = vmatprep.subr.mxu0 0.0
        %827 = vmatpush2.msra.mxu0 0.0
        %828 = vmatprep.subr.mxu0 0.0
        %829 = vmatpush2.msra.mxu0 0.0
        %830 = vmatprep.subr.mxu0 0.0
        %831 = vmatpush2.msra.mxu0 0.0
        %832 = vmatprep.subr.mxu0 0.0
        %833 = vmatpush2.msra.mxu0 0.0
        %834 = vmatprep.subr.mxu0 0.0
        %835 = vmatpush2.msra.mxu0 0.0
        %836 = vmatprep.subr.mxu0 0.0
        %837 = vmatpush2.msra.mxu0 0.0
        %838 = vmatprep.subr.mxu0 0.0
        %839 = vmatpush2.msra.mxu0 0.0
        %840 = vmatprep.subr.mxu0 0.0
        %841 = vmatpush2.msra.mxu0 0.0
        %842 = vmatprep.subr.mxu0 0.0
        %843 = vmatpush2.msra.mxu0 0.0
        %844 = vmatprep.subr.mxu0 0.0
        %845 = vmatpush2.msra.mxu0 0.0
        %846 = vmatprep.subr.mxu0 0.0
        %847 = vmatpush2.msra.mxu0 0.0
        %848 = vmatprep.subr.mxu0 0.0
        %849 = vmatpush2.msra.mxu0 0.0
        %850 = vmatprep.subr.mxu0 0.0
        %851 = vmatpush2.msra.mxu0 0.0
        %852 = vmatprep.subr.mxu0 0.0
        %853 = vmatpush2.msra.mxu0 0.0
        %854 = vmatprep.subr.mxu0 0.0
        %855 = vmatpush2.msra.mxu0 0.0
        %856 = vmatprep.subr.mxu0 0.0
        %857 = vmatpush2.msra.mxu0 0.0
        %858 = vmatprep.mubr.f32.mxu0 0.0
        %859 = vmatmul.mubr.f32.gmra.mxu0 %v788
        %v860 = vpop.f32.mrf.mxu0
        %v861 = vadd.f32 %v783, %v860
        %v862 = vpop.f32.mrf.mxu0
        %863 = vdwg.mxu0
        %v864 = vmax.f32 %v861, 0.0
        %v866 = vsel %vm634, %v616, 0
        %868 = vmatprep.subr.mxu0 0.0
        %869 = vmatpush1.msra.mxu0 0.0
        %870 = vmatprep.subr.mxu0 0.0
        %871 = vmatpush1.msra.mxu0 0.0
        %872 = vmatprep.subr.mxu0 0.0
        %873 = vmatpush1.msra.mxu0 0.0
        %874 = vmatprep.subr.mxu0 0.0
        %875 = vmatpush1.msra.mxu0 0.0
        %876 = vmatprep.subr.mxu0 0.0
        %877 = vmatpush1.msra.mxu0 0.0
        %878 = vmatprep.subr.mxu0 0.0
        %879 = vmatpush1.msra.mxu0 0.0
        %880 = vmatprep.subr.mxu0 0.0
        %881 = vmatpush1.msra.mxu0 0.0
        %882 = vmatprep.subr.mxu0 0.0
        %883 = vmatpush1.msra.mxu0 0.0
        %884 = vmatprep.subr.mxu0 0.0
        %885 = vmatpush1.msra.mxu0 0.0
        %886 = vmatprep.subr.mxu0 0.0
        %887 = vmatpush1.msra.mxu0 0.0
        %888 = vmatprep.subr.mxu0 0.0
        %889 = vmatpush1.msra.mxu0 0.0
        %890 = vmatprep.subr.mxu0 0.0
        %891 = vmatpush1.msra.mxu0 0.0
        %892 = vmatprep.subr.mxu0 0.0
        %893 = vmatpush1.msra.mxu0 0.0
        %894 = vmatprep.subr.mxu0 0.0
        %895 = vmatpush1.msra.mxu0 0.0
        %896 = vmatprep.subr.mxu0 0.0
        %897 = vmatpush1.msra.mxu0 0.0
        %898 = vmatprep.subr.mxu0 0.0
        %899 = vmatpush1.msra.mxu0 %v610
        %900 = vmatprep.subr.mxu0 0.0
        %901 = vmatpush2.msra.mxu0 0.0
        %902 = vmatprep.subr.mxu0 0.0
        %903 = vmatpush2.msra.mxu0 0.0
        %904 = vmatprep.subr.mxu0 0.0
        %905 = vmatpush2.msra.mxu0 0.0
        %906 = vmatprep.subr.mxu0 0.0
        %907 = vmatpush2.msra.mxu0 0.0
        %908 = vmatprep.subr.mxu0 0.0
        %909 = vmatpush2.msra.mxu0 0.0
        %910 = vmatprep.subr.mxu0 0.0
        %911 = vmatpush2.msra.mxu0 0.0
        %912 = vmatprep.subr.mxu0 0.0
        %913 = vmatpush2.msra.mxu0 0.0
        %914 = vmatprep.subr.mxu0 0.0
        %915 = vmatpush2.msra.mxu0 0.0
        %916 = vmatprep.subr.mxu0 0.0
        %917 = vmatpush2.msra.mxu0 0.0
        %918 = vmatprep.subr.mxu0 0.0
        %919 = vmatpush2.msra.mxu0 0.0
        %920 = vmatprep.subr.mxu0 0.0
        %921 = vmatpush2.msra.mxu0 0.0
        %922 = vmatprep.subr.mxu0 0.0
        %923 = vmatpush2.msra.mxu0 0.0
        %924 = vmatprep.subr.mxu0 0.0
        %925 = vmatpush2.msra.mxu0 0.0
        %926 = vmatprep.subr.mxu0 0.0
        %927 = vmatpush2.msra.mxu0 0.0
        %928 = vmatprep.subr.mxu0 0.0
        %929 = vmatpush2.msra.mxu0 0.0
        %930 = vmatprep.subr.mxu0 0.0
        %931 = vmatpush2.msra.mxu0 0.0
        %932 = vmatprep.mubr.f32.mxu0 0.0
        %933 = vmatmul.mubr.f32.gmra.mxu0 %v866
        %v934 = vpop.f32.mrf.mxu0
        %v935 = vadd.f32 0.0, %v934
        %v936 = vpop.f32.mrf.mxu0
        %937 = vdwg.mxu0
        %v939 = vsel %vm708, %v612, 0
        %941 = vmatprep.subr.mxu0 0.0
        %942 = vmatpush1.msra.mxu0 0.0
        %943 = vmatprep.subr.mxu0 0.0
        %944 = vmatpush1.msra.mxu0 0.0
        %945 = vmatprep.subr.mxu0 0.0
        %946 = vmatpush1.msra.mxu0 0.0
        %947 = vmatprep.subr.mxu0 0.0
        %948 = vmatpush1.msra.mxu0 0.0
        %949 = vmatprep.subr.mxu0 0.0
        %950 = vmatpush1.msra.mxu0 0.0
        %951 = vmatprep.subr.mxu0 0.0
        %952 = vmatpush1.msra.mxu0 0.0
        %953 = vmatprep.subr.mxu0 0.0
        %954 = vmatpush1.msra.mxu0 0.0
        %955 = vmatprep.subr.mxu0 0.0
        %956 = vmatpush1.msra.mxu0 0.0
        %957 = vmatprep.subr.mxu0 0.0
        %958 = vmatpush1.msra.mxu0 0.0
        %959 = vmatprep.subr.mxu0 0.0
        %960 = vmatpush1.msra.mxu0 0.0
        %961 = vmatprep.subr.mxu0 0.0
        %962 = vmatpush1.msra.mxu0 0.0
        %963 = vmatprep.subr.mxu0 0.0
        %964 = vmatpush1.msra.mxu0 0.0
        %965 = vmatprep.subr.mxu0 0.0
        %966 = vmatpush1.msra.mxu0 0.0
        %967 = vmatprep.subr.mxu0 0.0
        %968 = vmatpush1.msra.mxu0 0.0
        %969 = vmatprep.subr.mxu0 0.0
        %970 = vmatpush1.msra.mxu0 0.0
        %971 = vmatprep.subr.mxu0 0.0
        %972 = vmatpush1.msra.mxu0 %v714
        %973 = vmatprep.subr.mxu0 0.0
        %974 = vmatpush2.msra.mxu0 0.0
        %975 = vmatprep.subr.mxu0 0.0
        %976 = vmatpush2.msra.mxu0 0.0
        %977 = vmatprep.subr.mxu0 0.0
        %978 = vmatpush2.msra.mxu0 0.0
        %979 = vmatprep.subr.mxu0 0.0
        %980 = vmatpush2.msra.mxu0 0.0
        %981 = vmatprep.subr.mxu0 0.0
        %982 = vmatpush2.msra.mxu0 0.0
        %983 = vmatprep.subr.mxu0 0.0
        %984 = vmatpush2.msra.mxu0 0.0
        %985 = vmatprep.subr.mxu0 0.0
        %986 = vmatpush2.msra.mxu0 0.0
        %987 = vmatprep.subr.mxu0 0.0
        %988 = vmatpush2.msra.mxu0 0.0
        %989 = vmatprep.subr.mxu0 0.0
        %990 = vmatpush2.msra.mxu0 0.0
        %991 = vmatprep.subr.mxu0 0.0
        %992 = vmatpush2.msra.mxu0 0.0
        %993 = vmatprep.subr.mxu0 0.0
        %994 = vmatpush2.msra.mxu0 0.0
        %995 = vmatprep.subr.mxu0 0.0
        %996 = vmatpush2.msra.mxu0 0.0
        %997 = vmatprep.subr.mxu0 0.0
        %998 = vmatpush2.msra.mxu0 0.0
        %999 = vmatprep.subr.mxu0 0.0
        %1000 = vmatpush2.msra.mxu0 0.0
        %1001 = vmatprep.subr.mxu0 0.0
        %1002 = vmatpush2.msra.mxu0 0.0
        %1003 = vmatprep.subr.mxu0 0.0
        %1004 = vmatpush2.msra.mxu0 0.0
        %1005 = vmatprep.mubr.f32.mxu0 0.0
        %1006 = vmatmul.mubr.f32.gmra.mxu0 %v939
        %v1007 = vpop.f32.mrf.mxu0
        %v1008 = vadd.f32 0.0, %v1007
        %v1009 = vpop.f32.mrf.mxu0
        %1010 = vdwg.mxu0
        %v1012 = vsel %vm786, %v935, 0
        %1014 = vmatprep.subr.mxu0 0.0
        %1015 = vmatpush1.msra.mxu0 0.0
        %1016 = vmatprep.subr.mxu0 0.0
        %1017 = vmatpush1.msra.mxu0 0.0
        %1018 = vmatprep.subr.mxu0 0.0
        %1019 = vmatpush1.msra.mxu0 0.0
        %1020 = vmatprep.subr.mxu0 0.0
        %1021 = vmatpush1.msra.mxu0 0.0
        %1022 = vmatprep.subr.mxu0 0.0
        %1023 = vmatpush1.msra.mxu0 0.0
        %1024 = vmatprep.subr.mxu0 0.0
        %1025 = vmatpush1.msra.mxu0 0.0
        %1026 = vmatprep.subr.mxu0 0.0
        %1027 = vmatpush1.msra.mxu0 0.0
        %1028 = vmatprep.subr.mxu0 0.0
        %1029 = vmatpush1.msra.mxu0 0.0
        %1030 = vmatprep.subr.mxu0 0.0
        %1031 = vmatpush1.msra.mxu0 0.0
        %1032 = vmatprep.subr.mxu0 0.0
        %1033 = vmatpush1.msra.mxu0 0.0
        %1034 = vmatprep.subr.mxu0 0.0
        %1035 = vmatpush1.msra.mxu0 0.0
        %1036 = vmatprep.subr.mxu0 0.0
        %1037 = vmatpush1.msra.mxu0 0.0
        %1038 = vmatprep.subr.mxu0 0.0
        %1039 = vmatpush1.msra.mxu0 0.0
        %1040 = vmatprep.subr.mxu0 0.0
        %1041 = vmatpush1.msra.mxu0 0.0
        %1042 = vmatprep.subr.mxu0 0.0
        %1043 = vmatpush1.msra.mxu0 %v792
        %1044 = vmatprep.subr.mxu0 0.0
        %1045 = vmatpush1.msra.mxu0 %v621
        %1046 = vmatprep.subr.mxu0 0.0
        %1047 = vmatpush2.msra.mxu0 0.0
        %1048 = vmatprep.subr.mxu0 0.0
        %1049 = vmatpush2.msra.mxu0 0.0
        %1050 = vmatprep.subr.mxu0 0.0
        %1051 = vmatpush2.msra.mxu0 0.0
        %1052 = vmatprep.subr.mxu0 0.0
        %1053 = vmatpush2.msra.mxu0 0.0
        %1054 = vmatprep.subr.mxu0 0.0
        %1055 = vmatpush2.msra.mxu0 0.0
        %1056 = vmatprep.subr.mxu0 0.0
        %1057 = vmatpush2.msra.mxu0 0.0
        %1058 = vmatprep.subr.mxu0 0.0
        %1059 = vmatpush2.msra.mxu0 0.0
        %1060 = vmatprep.subr.mxu0 0.0
        %1061 = vmatpush2.msra.mxu0 0.0
        %1062 = vmatprep.subr.mxu0 0.0
        %1063 = vmatpush2.msra.mxu0 0.0
        %1064 = vmatprep.subr.mxu0 0.0
        %1065 = vmatpush2.msra.mxu0 0.0
        %1066 = vmatprep.subr.mxu0 0.0
        %1067 = vmatpush2.msra.mxu0 0.0
        %1068 = vmatprep.subr.mxu0 0.0
        %1069 = vmatpush2.msra.mxu0 0.0
        %1070 = vmatprep.subr.mxu0 0.0
        %1071 = vmatpush2.msra.mxu0 0.0
        %1072 = vmatprep.subr.mxu0 0.0
        %1073 = vmatpush2.msra.mxu0 0.0
        %1074 = vmatprep.subr.mxu0 0.0
        %1075 = vmatpush2.msra.mxu0 0.0
        %1076 = vmatprep.subr.mxu0 0.0
        %1077 = vmatpush2.msra.mxu0 0.0
        %1078 = vmatprep.mubr.f32.mxu0 0.0
        %1079 = vmatmul.mubr.f32.gmra.mxu0 %v1012
        %v1080 = vpop.f32.mrf.mxu0
        %v1081 = vadd.f32 %v1008, %v1080
        %v1082 = vpop.f32.mrf.mxu0
        %1083 = vdwg.mxu0
        %v1084 = vmax.f32 %v1081, 0.0
        %v1086 = vsel %vm634, %v620, 0
        %1088 = vmatprep.subr.mxu0 0.0
        %1089 = vmatpush1.msra.mxu0 0.0
        %1090 = vmatprep.subr.mxu0 0.0
        %1091 = vmatpush1.msra.mxu0 0.0
        %1092 = vmatprep.subr.mxu0 0.0
        %1093 = vmatpush1.msra.mxu0 0.0
        %1094 = vmatprep.subr.mxu0 0.0
        %1095 = vmatpush1.msra.mxu0 0.0
        %1096 = vmatprep.subr.mxu0 0.0
        %1097 = vmatpush1.msra.mxu0 0.0
        %1098 = vmatprep.subr.mxu0 0.0
        %1099 = vmatpush1.msra.mxu0 0.0
        %1100 = vmatprep.subr.mxu0 0.0
        %1101 = vmatpush1.msra.mxu0 0.0
        %1102 = vmatprep.subr.mxu0 0.0
        %1103 = vmatpush1.msra.mxu0 0.0
        %1104 = vmatprep.subr.mxu0 0.0
        %1105 = vmatpush1.msra.mxu0 0.0
        %1106 = vmatprep.subr.mxu0 0.0
        %1107 = vmatpush1.msra.mxu0 0.0
        %1108 = vmatprep.subr.mxu0 0.0
        %1109 = vmatpush1.msra.mxu0 0.0
        %1110 = vmatprep.subr.mxu0 0.0
        %1111 = vmatpush1.msra.mxu0 0.0
        %1112 = vmatprep.subr.mxu0 0.0
        %1113 = vmatpush1.msra.mxu0 0.0
        %1114 = vmatprep.subr.mxu0 0.0
        %1115 = vmatpush1.msra.mxu0 0.0
        %1116 = vmatprep.subr.mxu0 0.0
        %1117 = vmatpush1.msra.mxu0 0.0
        %1118 = vmatprep.subr.mxu0 0.0
        %1119 = vmatpush1.msra.mxu0 %v1084
        %1120 = vmatprep.subr.mxu0 0.0
        %1121 = vmatpush2.msra.mxu0 0.0
        %1122 = vmatprep.subr.mxu0 0.0
        %1123 = vmatpush2.msra.mxu0 0.0
        %1124 = vmatprep.subr.mxu0 0.0
        %1125 = vmatpush2.msra.mxu0 0.0
        %1126 = vmatprep.subr.mxu0 0.0
        %1127 = vmatpush2.msra.mxu0 0.0
        %1128 = vmatprep.subr.mxu0 0.0
        %1129 = vmatpush2.msra.mxu0 0.0
        %1130 = vmatprep.subr.mxu0 0.0
        %1131 = vmatpush2.msra.mxu0 0.0
        %1132 = vmatprep.subr.mxu0 0.0
        %1133 = vmatpush2.msra.mxu0 0.0
        %1134 = vmatprep.subr.mxu0 0.0
        %1135 = vmatpush2.msra.mxu0 0.0
        %1136 = vmatprep.subr.mxu0 0.0
        %1137 = vmatpush2.msra.mxu0 0.0
        %1138 = vmatprep.subr.mxu0 0.0
        %1139 = vmatpush2.msra.mxu0 0.0
        %1140 = vmatprep.subr.mxu0 0.0
        %1141 = vmatpush2.msra.mxu0 0.0
        %1142 = vmatprep.subr.mxu0 0.0
        %1143 = vmatpush2.msra.mxu0 0.0
        %1144 = vmatprep.subr.mxu0 0.0
        %1145 = vmatpush2.msra.mxu0 0.0
        %1146 = vmatprep.subr.mxu0 0.0
        %1147 = vmatpush2.msra.mxu0 0.0
        %1148 = vmatprep.subr.mxu0 0.0
        %1149 = vmatpush2.msra.mxu0 0.0
        %1150 = vmatprep.subr.mxu0 0.0
        %1151 = vmatpush2.msra.mxu0 0.0
        %1152 = vmatprep.mubr.f32.mxu0 0.0
        %1153 = vmatmul.mubr.f32.gmra.mxu0 %v1086
        %v1154 = vpop.f32.mrf.mxu0
        %v1155 = vadd.f32 0.0, %v1154
        %v1156 = vpop.f32.mrf.mxu0
        %1157 = vdwg.mxu0
        %v1159 = vsel %vm634, %v618, 0
        %1161 = vmatprep.subr.mxu0 0.0
        %1162 = vmatpush1.msra.mxu0 0.0
        %1163 = vmatprep.subr.mxu0 0.0
        %1164 = vmatpush1.msra.mxu0 0.0
        %1165 = vmatprep.subr.mxu0 0.0
        %1166 = vmatpush1.msra.mxu0 0.0
        %1167 = vmatprep.subr.mxu0 0.0
        %1168 = vmatpush1.msra.mxu0 0.0
        %1169 = vmatprep.subr.mxu0 0.0
        %1170 = vmatpush1.msra.mxu0 0.0
        %1171 = vmatprep.subr.mxu0 0.0
        %1172 = vmatpush1.msra.mxu0 0.0
        %1173 = vmatprep.subr.mxu0 0.0
        %1174 = vmatpush1.msra.mxu0 0.0
        %1175 = vmatprep.subr.mxu0 0.0
        %1176 = vmatpush1.msra.mxu0 0.0
        %1177 = vmatprep.subr.mxu0 0.0
        %1178 = vmatpush1.msra.mxu0 0.0
        %1179 = vmatprep.subr.mxu0 0.0
        %1180 = vmatpush1.msra.mxu0 0.0
        %1181 = vmatprep.subr.mxu0 0.0
        %1182 = vmatpush1.msra.mxu0 0.0
        %1183 = vmatprep.subr.mxu0 0.0
        %1184 = vmatpush1.msra.mxu0 0.0
        %1185 = vmatprep.subr.mxu0 0.0
        %1186 = vmatpush1.msra.mxu0 0.0
        %1187 = vmatprep.subr.mxu0 0.0
        %1188 = vmatpush1.msra.mxu0 0.0
        %1189 = vmatprep.subr.mxu0 0.0
        %1190 = vmatpush1.msra.mxu0 0.0
        %1191 = vmatprep.subr.mxu0 0.0
        %1192 = vmatpush1.msra.mxu0 %v864
        %1193 = vmatprep.subr.mxu0 0.0
        %1194 = vmatpush2.msra.mxu0 0.0
        %1195 = vmatprep.subr.mxu0 0.0
        %1196 = vmatpush2.msra.mxu0 0.0
        %1197 = vmatprep.subr.mxu0 0.0
        %1198 = vmatpush2.msra.mxu0 0.0
        %1199 = vmatprep.subr.mxu0 0.0
        %1200 = vmatpush2.msra.mxu0 0.0
        %1201 = vmatprep.subr.mxu0 0.0
        %1202 = vmatpush2.msra.mxu0 0.0
        %1203 = vmatprep.subr.mxu0 0.0
        %1204 = vmatpush2.msra.mxu0 0.0
        %1205 = vmatprep.subr.mxu0 0.0
        %1206 = vmatpush2.msra.mxu0 0.0
        %1207 = vmatprep.subr.mxu0 0.0
        %1208 = vmatpush2.msra.mxu0 0.0
        %1209 = vmatprep.subr.mxu0 0.0
        %1210 = vmatpush2.msra.mxu0 0.0
        %1211 = vmatprep.subr.mxu0 0.0
        %1212 = vmatpush2.msra.mxu0 0.0
        %1213 = vmatprep.subr.mxu0 0.0
        %1214 = vmatpush2.msra.mxu0 0.0
        %1215 = vmatprep.subr.mxu0 0.0
        %1216 = vmatpush2.msra.mxu0 0.0
        %1217 = vmatprep.subr.mxu0 0.0
        %1218 = vmatpush2.msra.mxu0 0.0
        %1219 = vmatprep.subr.mxu0 0.0
        %1220 = vmatpush2.msra.mxu0 0.0
        %1221 = vmatprep.subr.mxu0 0.0
        %1222 = vmatpush2.msra.mxu0 0.0
        %1223 = vmatprep.subr.mxu0 0.0
        %1224 = vmatpush2.msra.mxu0 0.0
        %1225 = vmatprep.mubr.f32.mxu0 0.0
        %1226 = vmatmul.mubr.f32.gmra.mxu0 %v1159
        %v1227 = vpop.f32.mrf.mxu0
        %v1228 = vadd.f32 %v1155, %v1227
        %v1229 = vpop.f32.mrf.mxu0
        %1230 = vdwg.mxu0
        %1231 = vmatprep.subr.mxu0 0.0
        %1232 = vmatpush1.msra.mxu0 0.0
        %1233 = vmatprep.subr.mxu0 0.0
        %1234 = vmatpush1.msra.mxu0 0.0
        %1235 = vmatprep.subr.mxu0 0.0
        %1236 = vmatpush1.msra.mxu0 0.0
        %1237 = vmatprep.subr.mxu0 0.0
        %1238 = vmatpush1.msra.mxu0 0.0
        %1239 = vmatprep.subr.mxu0 0.0
        %1240 = vmatpush1.msra.mxu0 0.0
        %1241 = vmatprep.subr.mxu0 0.0
        %1242 = vmatpush1.msra.mxu0 0.0
        %1243 = vmatprep.subr.mxu0 0.0
        %1244 = vmatpush1.msra.mxu0 0.0
        %1245 = vmatprep.subr.mxu0 0.0
        %1246 = vmatpush1.msra.mxu0 0.0
        %1247 = vmatprep.subr.mxu0 0.0
        %1248 = vmatpush1.msra.mxu0 0.0
        %1249 = vmatprep.subr.mxu0 0.0
        %1250 = vmatpush1.msra.mxu0 0.0
        %1251 = vmatprep.subr.mxu0 0.0
        %1252 = vmatpush1.msra.mxu0 0.0
        %1253 = vmatprep.subr.mxu0 0.0
        %1254 = vmatpush1.msra.mxu0 0.0
        %1255 = vmatprep.subr.mxu0 0.0
        %1256 = vmatpush1.msra.mxu0 0.0
        %1257 = vmatprep.subr.mxu0 0.0
        %1258 = vmatpush1.msra.mxu0 0.0
        %1259 = vmatprep.subr.mxu0 0.0
        %1260 = vmatpush1.msra.mxu0 0.0
        %1261 = vmatprep.subr.mxu0 0.0
        %1262 = vmatpush1.msra.mxu0 %v1228
        %1263 = vmatprep.subr.mxu0 0.0
        %1264 = vmatpush2.msra.mxu0 0.0
        %1265 = vmatprep.subr.mxu0 0.0
        %1266 = vmatpush2.msra.mxu0 0.0
        %1267 = vmatprep.subr.mxu0 0.0
        %1268 = vmatpush2.msra.mxu0 0.0
        %1269 = vmatprep.subr.mxu0 0.0
        %1270 = vmatpush2.msra.mxu0 0.0
        %1271 = vmatprep.subr.mxu0 0.0
        %1272 = vmatpush2.msra.mxu0 0.0
        %1273 = vmatprep.subr.mxu0 0.0
        %1274 = vmatpush2.msra.mxu0 0.0
        %1275 = vmatprep.subr.mxu0 0.0
        %1276 = vmatpush2.msra.mxu0 0.0
        %1277 = vmatprep.subr.mxu0 0.0
        %1278 = vmatpush2.msra.mxu0 0.0
        %1279 = vmatprep.subr.mxu0 0.0
        %1280 = vmatpush2.msra.mxu0 0.0
        %1281 = vmatprep.subr.mxu0 0.0
        %1282 = vmatpush2.msra.mxu0 0.0
        %1283 = vmatprep.subr.mxu0 0.0
        %1284 = vmatpush2.msra.mxu0 0.0
        %1285 = vmatprep.subr.mxu0 0.0
        %1286 = vmatpush2.msra.mxu0 0.0
        %1287 = vmatprep.subr.mxu0 0.0
        %1288 = vmatpush2.msra.mxu0 0.0
        %1289 = vmatprep.subr.mxu0 0.0
        %1290 = vmatpush2.msra.mxu0 0.0
        %1291 = vmatprep.subr.mxu0 0.0
        %1292 = vmatpush2.msra.mxu0 0.0
        %1293 = vmatprep.subr.mxu0 0.0
        %1294 = vmatpush2.msra.mxu0 0.0
        %1295 = vmatprep.mubr.f32.mxu0 0.0
        %1296 = vmatmul.mubr.f32.gmra.mxu0 %v636
        %v1297 = vpop.f32.mrf.mxu0
        %v1298 = vadd.f32 0.0, %v1297
        %v1299 = vpop.f32.mrf.mxu0
        %1300 = vdwg.mxu0
        %1301 = vmatprep.subr.mxu0 0.0
        %1302 = vmatpush1.msra.mxu0 0.0
        %1303 = vmatprep.subr.mxu0 0.0
        %1304 = vmatpush1.msra.mxu0 0.0
        %1305 = vmatprep.subr.mxu0 0.0
        %1306 = vmatpush1.msra.mxu0 0.0
        %1307 = vmatprep.subr.mxu0 0.0
        %1308 = vmatpush1.msra.mxu0 0.0
        %1309 = vmatprep.subr.mxu0 0.0
        %1310 = vmatpush1.msra.mxu0 0.0
        %1311 = vmatprep.subr.mxu0 0.0
        %1312 = vmatpush1.msra.mxu0 0.0
        %1313 = vmatprep.subr.mxu0 0.0
        %1314 = vmatpush1.msra.mxu0 0.0
        %1315 = vmatprep.subr.mxu0 0.0
        %1316 = vmatpush1.msra.mxu0 0.0
        %1317 = vmatprep.subr.mxu0 0.0
        %1318 = vmatpush1.msra.mxu0 0.0
        %1319 = vmatprep.subr.mxu0 0.0
        %1320 = vmatpush1.msra.mxu0 0.0
        %1321 = vmatprep.subr.mxu0 0.0
        %1322 = vmatpush1.msra.mxu0 0.0
        %1323 = vmatprep.subr.mxu0 0.0
        %1324 = vmatpush1.msra.mxu0 0.0
        %1325 = vmatprep.subr.mxu0 0.0
        %1326 = vmatpush1.msra.mxu0 0.0
        %1327 = vmatprep.subr.mxu0 0.0
        %1328 = vmatpush1.msra.mxu0 0.0
        %1329 = vmatprep.subr.mxu0 0.0
        %1330 = vmatpush1.msra.mxu0 0.0
        %1331 = vmatprep.subr.mxu0 0.0
        %1332 = vmatpush1.msra.mxu0 %v1228
        %1333 = vmatprep.subr.mxu0 0.0
        %1334 = vmatpush2.msra.mxu0 0.0
        %1335 = vmatprep.subr.mxu0 0.0
        %1336 = vmatpush2.msra.mxu0 0.0
        %1337 = vmatprep.subr.mxu0 0.0
        %1338 = vmatpush2.msra.mxu0 0.0
        %1339 = vmatprep.subr.mxu0 0.0
        %1340 = vmatpush2.msra.mxu0 0.0
        %1341 = vmatprep.subr.mxu0 0.0
        %1342 = vmatpush2.msra.mxu0 0.0
        %1343 = vmatprep.subr.mxu0 0.0
        %1344 = vmatpush2.msra.mxu0 0.0
        %1345 = vmatprep.subr.mxu0 0.0
        %1346 = vmatpush2.msra.mxu0 0.0
        %1347 = vmatprep.subr.mxu0 0.0
        %1348 = vmatpush2.msra.mxu0 0.0
        %1349 = vmatprep.subr.mxu0 0.0
        %1350 = vmatpush2.msra.mxu0 0.0
        %1351 = vmatprep.subr.mxu0 0.0
        %1352 = vmatpush2.msra.mxu0 0.0
        %1353 = vmatprep.subr.mxu0 0.0
        %1354 = vmatpush2.msra.mxu0 0.0
        %1355 = vmatprep.subr.mxu0 0.0
        %1356 = vmatpush2.msra.mxu0 0.0
        %1357 = vmatprep.subr.mxu0 0.0
        %1358 = vmatpush2.msra.mxu0 0.0
        %1359 = vmatprep.subr.mxu0 0.0
        %1360 = vmatpush2.msra.mxu0 0.0
        %1361 = vmatprep.subr.mxu0 0.0
        %1362 = vmatpush2.msra.mxu0 0.0
        %1363 = vmatprep.subr.mxu0 0.0
        %1364 = vmatpush2.msra.mxu0 0.0
        %1365 = vmatprep.mubr.f32.mxu0 0.0
        %1366 = vmatmul.mubr.f32.gmra.mxu0 %v866
        %v1367 = vpop.f32.mrf.mxu0
        %v1368 = vadd.f32 0.0, %v1367
        %v1369 = vpop.f32.mrf.mxu0
        %1370 = vdwg.mxu0
        %v1371 = vsub.f32 %v1298, %v1084
        %v1372 = vsub.f32 %v1368, %v864
        %vm1373 = vcmask 261120
        %v1375 = vsel %vm1373, %v1371, 0
        %1377 = vmatprep.subr.mxu0 0.0
        %1378 = vmatpush1.msra.mxu0 0.0
        %1379 = vmatprep.subr.mxu0 0.0
        %1380 = vmatpush1.msra.mxu0 0.0
        %1381 = vmatprep.subr.mxu0 0.0
        %1382 = vmatpush1.msra.mxu0 0.0
        %1383 = vmatprep.subr.mxu0 0.0
        %1384 = vmatpush1.msra.mxu0 0.0
        %1385 = vmatprep.subr.mxu0 0.0
        %1386 = vmatpush1.msra.mxu0 0.0
        %1387 = vmatprep.subr.mxu0 0.0
        %1388 = vmatpush1.msra.mxu0 0.0
        %1389 = vmatprep.subr.mxu0 0.0
        %1390 = vmatpush1.msra.mxu0 0.0
        %1391 = vmatprep.subr.mxu0 0.0
        %1392 = vmatpush1.msra.mxu0 0.0
        %1393 = vmatprep.subr.mxu0 0.0
        %1394 = vmatpush1.msra.mxu0 0.0
        %1395 = vmatprep.subr.mxu0 0.0
        %1396 = vmatpush1.msra.mxu0 0.0
        %1397 = vmatprep.subr.mxu0 0.0
        %1398 = vmatpush1.msra.mxu0 0.0
        %1399 = vmatprep.subr.mxu0 0.0
        %1400 = vmatpush1.msra.mxu0 0.0
        %1401 = vmatprep.subr.mxu0 0.0
        %1402 = vmatpush1.msra.mxu0 %v627
        %1403 = vmatprep.subr.mxu0 0.0
        %1404 = vmatpush1.msra.mxu0 %v626
        %1405 = vmatprep.subr.mxu0 0.0
        %1406 = vmatpush1.msra.mxu0 %v625
        %1407 = vmatprep.subr.mxu0 0.0
        %1408 = vmatpush1.msra.mxu0 %v624
        %1409 = vmatprep.subr.mxu0 0.0
        %1410 = vmatpush2.msra.mxu0 0.0
        %1411 = vmatprep.subr.mxu0 0.0
        %1412 = vmatpush2.msra.mxu0 0.0
        %1413 = vmatprep.subr.mxu0 0.0
        %1414 = vmatpush2.msra.mxu0 0.0
        %1415 = vmatprep.subr.mxu0 0.0
        %1416 = vmatpush2.msra.mxu0 0.0
        %1417 = vmatprep.subr.mxu0 0.0
        %1418 = vmatpush2.msra.mxu0 0.0
        %1419 = vmatprep.subr.mxu0 0.0
        %1420 = vmatpush2.msra.mxu0 0.0
        %1421 = vmatprep.subr.mxu0 0.0
        %1422 = vmatpush2.msra.mxu0 0.0
        %1423 = vmatprep.subr.mxu0 0.0
        %1424 = vmatpush2.msra.mxu0 0.0
        %1425 = vmatprep.subr.mxu0 0.0
        %1426 = vmatpush2.msra.mxu0 0.0
        %1427 = vmatprep.subr.mxu0 0.0
        %1428 = vmatpush2.msra.mxu0 0.0
        %1429 = vmatprep.subr.mxu0 0.0
        %1430 = vmatpush2.msra.mxu0 0.0
        %1431 = vmatprep.subr.mxu0 0.0
        %1432 = vmatpush2.msra.mxu0 0.0
        %1433 = vmatprep.subr.mxu0 0.0
        %1434 = vmatpush2.msra.mxu0 0.0
        %1435 = vmatprep.subr.mxu0 0.0
        %1436 = vmatpush2.msra.mxu0 0.0
        %1437 = vmatprep.subr.mxu0 0.0
        %1438 = vmatpush2.msra.mxu0 0.0
        %1439 = vmatprep.subr.mxu0 0.0
        %1440 = vmatpush2.msra.mxu0 0.0
        %1441 = vmatprep.mubr.f32.mxu0 0.0
        %1442 = vmatmul.mubr.f32.gmra.mxu0 %v1375
        %v1443 = vpop.f32.mrf.mxu0
        %v1444 = vadd.f32 0.0, %v1443
        %v1445 = vpop.f32.mrf.mxu0
        %1446 = vdwg.mxu0
        %v1447 = vadd.f32 %v864, %v1444
        %v1448 = vmax.f32 %v1447, 0.0
        %v1450 = vsel %vm1373, %v1372, 0
        %1452 = vmatprep.subr.mxu0 0.0
        %1453 = vmatpush1.msra.mxu0 0.0
        %1454 = vmatprep.subr.mxu0 0.0
        %1455 = vmatpush1.msra.mxu0 0.0
        %1456 = vmatprep.subr.mxu0 0.0
        %1457 = vmatpush1.msra.mxu0 0.0
        %1458 = vmatprep.subr.mxu0 0.0
        %1459 = vmatpush1.msra.mxu0 0.0
        %1460 = vmatprep.subr.mxu0 0.0
        %1461 = vmatpush1.msra.mxu0 0.0
        %1462 = vmatprep.subr.mxu0 0.0
        %1463 = vmatpush1.msra.mxu0 0.0
        %1464 = vmatprep.subr.mxu0 0.0
        %1465 = vmatpush1.msra.mxu0 0.0
        %1466 = vmatprep.subr.mxu0 0.0
        %1467 = vmatpush1.msra.mxu0 0.0
        %1468 = vmatprep.subr.mxu0 0.0
        %1469 = vmatpush1.msra.mxu0 0.0
        %1470 = vmatprep.subr.mxu0 0.0
        %1471 = vmatpush1.msra.mxu0 0.0
        %1472 = vmatprep.subr.mxu0 0.0
        %1473 = vmatpush1.msra.mxu0 0.0
        %1474 = vmatprep.subr.mxu0 0.0
        %1475 = vmatpush1.msra.mxu0 0.0
        %1476 = vmatprep.subr.mxu0 0.0
        %1477 = vmatpush1.msra.mxu0 %v627
        %1478 = vmatprep.subr.mxu0 0.0
        %1479 = vmatpush1.msra.mxu0 %v626
        %1480 = vmatprep.subr.mxu0 0.0
        %1481 = vmatpush1.msra.mxu0 %v625
        %1482 = vmatprep.subr.mxu0 0.0
        %1483 = vmatpush1.msra.mxu0 %v624
        %1484 = vmatprep.subr.mxu0 0.0
        %1485 = vmatpush2.msra.mxu0 0.0
        %1486 = vmatprep.subr.mxu0 0.0
        %1487 = vmatpush2.msra.mxu0 0.0
        %1488 = vmatprep.subr.mxu0 0.0
        %1489 = vmatpush2.msra.mxu0 0.0
        %1490 = vmatprep.subr.mxu0 0.0
        %1491 = vmatpush2.msra.mxu0 0.0
        %1492 = vmatprep.subr.mxu0 0.0
        %1493 = vmatpush2.msra.mxu0 0.0
        %1494 = vmatprep.subr.mxu0 0.0
        %1495 = vmatpush2.msra.mxu0 0.0
        %1496 = vmatprep.subr.mxu0 0.0
        %1497 = vmatpush2.msra.mxu0 0.0
        %1498 = vmatprep.subr.mxu0 0.0
        %1499 = vmatpush2.msra.mxu0 0.0
        %1500 = vmatprep.subr.mxu0 0.0
        %1501 = vmatpush2.msra.mxu0 0.0
        %1502 = vmatprep.subr.mxu0 0.0
        %1503 = vmatpush2.msra.mxu0 0.0
        %1504 = vmatprep.subr.mxu0 0.0
        %1505 = vmatpush2.msra.mxu0 0.0
        %1506 = vmatprep.subr.mxu0 0.0
        %1507 = vmatpush2.msra.mxu0 0.0
        %1508 = vmatprep.subr.mxu0 0.0
        %1509 = vmatpush2.msra.mxu0 0.0
        %1510 = vmatprep.subr.mxu0 0.0
        %1511 = vmatpush2.msra.mxu0 0.0
        %1512 = vmatprep.subr.mxu0 0.0
        %1513 = vmatpush2.msra.mxu0 0.0
        %1514 = vmatprep.subr.mxu0 0.0
        %1515 = vmatpush2.msra.mxu0 0.0
        %1516 = vmatprep.mubr.f32.mxu0 0.0
        %1517 = vmatmul.mubr.f32.gmra.mxu0 %v1450
        %v1518 = vpop.f32.mrf.mxu0
        %v1519 = vadd.f32 0.0, %v1518
        %v1520 = vpop.f32.mrf.mxu0
        %1521 = vdwg.mxu0
        %v1522 = vadd.f32 %v1084, %v1519
        %v1523 = vmax.f32 %v1522, 0.0
        %1524 = vmatprep.subr.mxu0 0.0
        %1525 = vmatpush1.msra.mxu0 0.0
        %1526 = vmatprep.subr.mxu0 0.0
        %1527 = vmatpush1.msra.mxu0 0.0
        %1528 = vmatprep.subr.mxu0 0.0
        %1529 = vmatpush1.msra.mxu0 0.0
        %1530 = vmatprep.subr.mxu0 0.0
        %1531 = vmatpush1.msra.mxu0 0.0
        %1532 = vmatprep.subr.mxu0 0.0
        %1533 = vmatpush1.msra.mxu0 0.0
        %1534 = vmatprep.subr.mxu0 0.0
        %1535 = vmatpush1.msra.mxu0 0.0
        %1536 = vmatprep.subr.mxu0 0.0
        %1537 = vmatpush1.msra.mxu0 0.0
        %1538 = vmatprep.subr.mxu0 0.0
        %1539 = vmatpush1.msra.mxu0 0.0
        %1540 = vmatprep.subr.mxu0 0.0
        %1541 = vmatpush1.msra.mxu0 0.0
        %1542 = vmatprep.subr.mxu0 0.0
        %1543 = vmatpush1.msra.mxu0 0.0
        %1544 = vmatprep.subr.mxu0 0.0
        %1545 = vmatpush1.msra.mxu0 0.0
        %1546 = vmatprep.subr.mxu0 0.0
        %1547 = vmatpush1.msra.mxu0 0.0
        %1548 = vmatprep.subr.mxu0 0.0
        %1549 = vmatpush1.msra.mxu0 0.0
        %1550 = vmatprep.subr.mxu0 0.0
        %1551 = vmatpush1.msra.mxu0 0.0
        %1552 = vmatprep.subr.mxu0 0.0
        %1553 = vmatpush1.msra.mxu0 0.0
        %1554 = vmatprep.subr.mxu0 0.0
        %1555 = vmatpush1.msra.mxu0 %v1523
        %1556 = vmatprep.subr.mxu0 0.0
        %1557 = vmatpush2.msra.mxu0 0.0
        %1558 = vmatprep.subr.mxu0 0.0
        %1559 = vmatpush2.msra.mxu0 0.0
        %1560 = vmatprep.subr.mxu0 0.0
        %1561 = vmatpush2.msra.mxu0 0.0
        %1562 = vmatprep.subr.mxu0 0.0
        %1563 = vmatpush2.msra.mxu0 0.0
        %1564 = vmatprep.subr.mxu0 0.0
        %1565 = vmatpush2.msra.mxu0 0.0
        %1566 = vmatprep.subr.mxu0 0.0
        %1567 = vmatpush2.msra.mxu0 0.0
        %1568 = vmatprep.subr.mxu0 0.0
        %1569 = vmatpush2.msra.mxu0 0.0
        %1570 = vmatprep.subr.mxu0 0.0
        %1571 = vmatpush2.msra.mxu0 0.0
        %1572 = vmatprep.subr.mxu0 0.0
        %1573 = vmatpush2.msra.mxu0 0.0
        %1574 = vmatprep.subr.mxu0 0.0
        %1575 = vmatpush2.msra.mxu0 0.0
        %1576 = vmatprep.subr.mxu0 0.0
        %1577 = vmatpush2.msra.mxu0 0.0
        %1578 = vmatprep.subr.mxu0 0.0
        %1579 = vmatpush2.msra.mxu0 0.0
        %1580 = vmatprep.subr.mxu0 0.0
        %1581 = vmatpush2.msra.mxu0 0.0
        %1582 = vmatprep.subr.mxu0 0.0
        %1583 = vmatpush2.msra.mxu0 0.0
        %1584 = vmatprep.subr.mxu0 0.0
        %1585 = vmatpush2.msra.mxu0 0.0
        %1586 = vmatprep.subr.mxu0 0.0
        %1587 = vmatpush2.msra.mxu0 0.0
        %1588 = vmatprep.mubr.f32.mxu0 0.0
        %1589 = vmatmul.mubr.f32.gmra.mxu0 %v1086
        %v1590 = vpop.f32.mrf.mxu0
        %v1591 = vadd.f32 0.0, %v1590
        %v1592 = vpop.f32.mrf.mxu0
        %1593 = vdwg.mxu0
        %1594 = vmatprep.subr.mxu0 0.0
        %1595 = vmatpush1.msra.mxu0 0.0
        %1596 = vmatprep.subr.mxu0 0.0
        %1597 = vmatpush1.msra.mxu0 0.0
        %1598 = vmatprep.subr.mxu0 0.0
        %1599 = vmatpush1.msra.mxu0 0.0
        %1600 = vmatprep.subr.mxu0 0.0
        %1601 = vmatpush1.msra.mxu0 0.0
        %1602 = vmatprep.subr.mxu0 0.0
        %1603 = vmatpush1.msra.mxu0 0.0
        %1604 = vmatprep.subr.mxu0 0.0
        %1605 = vmatpush1.msra.mxu0 0.0
        %1606 = vmatprep.subr.mxu0 0.0
        %1607 = vmatpush1.msra.mxu0 0.0
        %1608 = vmatprep.subr.mxu0 0.0
        %1609 = vmatpush1.msra.mxu0 0.0
        %1610 = vmatprep.subr.mxu0 0.0
        %1611 = vmatpush1.msra.mxu0 0.0
        %1612 = vmatprep.subr.mxu0 0.0
        %1613 = vmatpush1.msra.mxu0 0.0
        %1614 = vmatprep.subr.mxu0 0.0
        %1615 = vmatpush1.msra.mxu0 0.0
        %1616 = vmatprep.subr.mxu0 0.0
        %1617 = vmatpush1.msra.mxu0 0.0
        %1618 = vmatprep.subr.mxu0 0.0
        %1619 = vmatpush1.msra.mxu0 0.0
        %1620 = vmatprep.subr.mxu0 0.0
        %1621 = vmatpush1.msra.mxu0 0.0
        %1622 = vmatprep.subr.mxu0 0.0
        %1623 = vmatpush1.msra.mxu0 0.0
        %1624 = vmatprep.subr.mxu0 0.0
        %1625 = vmatpush1.msra.mxu0 %v1448
        %1626 = vmatprep.subr.mxu0 0.0
        %1627 = vmatpush2.msra.mxu0 0.0
        %1628 = vmatprep.subr.mxu0 0.0
        %1629 = vmatpush2.msra.mxu0 0.0
        %1630 = vmatprep.subr.mxu0 0.0
        %1631 = vmatpush2.msra.mxu0 0.0
        %1632 = vmatprep.subr.mxu0 0.0
        %1633 = vmatpush2.msra.mxu0 0.0
        %1634 = vmatprep.subr.mxu0 0.0
        %1635 = vmatpush2.msra.mxu0 0.0
        %1636 = vmatprep.subr.mxu0 0.0
        %1637 = vmatpush2.msra.mxu0 0.0
        %1638 = vmatprep.subr.mxu0 0.0
        %1639 = vmatpush2.msra.mxu0 0.0
        %1640 = vmatprep.subr.mxu0 0.0
        %1641 = vmatpush2.msra.mxu0 0.0
        %1642 = vmatprep.subr.mxu0 0.0
        %1643 = vmatpush2.msra.mxu0 0.0
        %1644 = vmatprep.subr.mxu0 0.0
        %1645 = vmatpush2.msra.mxu0 0.0
        %1646 = vmatprep.subr.mxu0 0.0
        %1647 = vmatpush2.msra.mxu0 0.0
        %1648 = vmatprep.subr.mxu0 0.0
        %1649 = vmatpush2.msra.mxu0 0.0
        %1650 = vmatprep.subr.mxu0 0.0
        %1651 = vmatpush2.msra.mxu0 0.0
        %1652 = vmatprep.subr.mxu0 0.0
        %1653 = vmatpush2.msra.mxu0 0.0
        %1654 = vmatprep.subr.mxu0 0.0
        %1655 = vmatpush2.msra.mxu0 0.0
        %1656 = vmatprep.subr.mxu0 0.0
        %1657 = vmatpush2.msra.mxu0 0.0
        %1658 = vmatprep.mubr.f32.mxu0 0.0
        %1659 = vmatmul.mubr.f32.gmra.mxu0 %v1159
        %v1660 = vpop.f32.mrf.mxu0
        %v1661 = vadd.f32 %v1591, %v1660
        %v1662 = vpop.f32.mrf.mxu0
        %1663 = vdwg.mxu0
        %1664 = vmatprep.subr.mxu0 0.0
        %1665 = vmatpush1.msra.mxu0 0.0
        %1666 = vmatprep.subr.mxu0 0.0
        %1667 = vmatpush1.msra.mxu0 0.0
        %1668 = vmatprep.subr.mxu0 0.0
        %1669 = vmatpush1.msra.mxu0 0.0
        %1670 = vmatprep.subr.mxu0 0.0
        %1671 = vmatpush1.msra.mxu0 0.0
        %1672 = vmatprep.subr.mxu0 0.0
        %1673 = vmatpush1.msra.mxu0 0.0
        %1674 = vmatprep.subr.mxu0 0.0
        %1675 = vmatpush1.msra.mxu0 0.0
        %1676 = vmatprep.subr.mxu0 0.0
        %1677 = vmatpush1.msra.mxu0 0.0
        %1678 = vmatprep.subr.mxu0 0.0
        %1679 = vmatpush1.msra.mxu0 0.0
        %1680 = vmatprep.subr.mxu0 0.0
        %1681 = vmatpush1.msra.mxu0 0.0
        %1682 = vmatprep.subr.mxu0 0.0
        %1683 = vmatpush1.msra.mxu0 0.0
        %1684 = vmatprep.subr.mxu0 0.0
        %1685 = vmatpush1.msra.mxu0 0.0
        %1686 = vmatprep.subr.mxu0 0.0
        %1687 = vmatpush1.msra.mxu0 0.0
        %1688 = vmatprep.subr.mxu0 0.0
        %1689 = vmatpush1.msra.mxu0 0.0
        %1690 = vmatprep.subr.mxu0 0.0
        %1691 = vmatpush1.msra.mxu0 0.0
        %1692 = vmatprep.subr.mxu0 0.0
        %1693 = vmatpush1.msra.mxu0 0.0
        %1694 = vmatprep.subr.mxu0 0.0
        %1695 = vmatpush1.msra.mxu0 %v1661
        %1696 = vmatprep.subr.mxu0 0.0
        %1697 = vmatpush2.msra.mxu0 0.0
        %1698 = vmatprep.subr.mxu0 0.0
        %1699 = vmatpush2.msra.mxu0 0.0
        %1700 = vmatprep.subr.mxu0 0.0
        %1701 = vmatpush2.msra.mxu0 0.0
        %1702 = vmatprep.subr.mxu0 0.0
        %1703 = vmatpush2.msra.mxu0 0.0
        %1704 = vmatprep.subr.mxu0 0.0
        %1705 = vmatpush2.msra.mxu0 0.0
        %1706 = vmatprep.subr.mxu0 0.0
        %1707 = vmatpush2.msra.mxu0 0.0
        %1708 = vmatprep.subr.mxu0 0.0
        %1709 = vmatpush2.msra.mxu0 0.0
        %1710 = vmatprep.subr.mxu0 0.0
        %1711 = vmatpush2.msra.mxu0 0.0
        %1712 = vmatprep.subr.mxu0 0.0
        %1713 = vmatpush2.msra.mxu0 0.0
        %1714 = vmatprep.subr.mxu0 0.0
        %1715 = vmatpush2.msra.mxu0 0.0
        %1716 = vmatprep.subr.mxu0 0.0
        %1717 = vmatpush2.msra.mxu0 0.0
        %1718 = vmatprep.subr.mxu0 0.0
        %1719 = vmatpush2.msra.mxu0 0.0
        %1720 = vmatprep.subr.mxu0 0.0
        %1721 = vmatpush2.msra.mxu0 0.0
        %1722 = vmatprep.subr.mxu0 0.0
        %1723 = vmatpush2.msra.mxu0 0.0
        %1724 = vmatprep.subr.mxu0 0.0
        %1725 = vmatpush2.msra.mxu0 0.0
        %1726 = vmatprep.subr.mxu0 0.0
        %1727 = vmatpush2.msra.mxu0 0.0
        %1728 = vmatprep.mubr.f32.mxu0 0.0
        %1729 = vmatmul.mubr.f32.gmra.mxu0 %v636
        %v1730 = vpop.f32.mrf.mxu0
        %v1731 = vadd.f32 0.0, %v1730
        %v1732 = vpop.f32.mrf.mxu0
        %1733 = vdwg.mxu0
        %1734 = vmatprep.subr.mxu0 0.0
        %1735 = vmatpush1.msra.mxu0 0.0
        %1736 = vmatprep.subr.mxu0 0.0
        %1737 = vmatpush1.msra.mxu0 0.0
        %1738 = vmatprep.subr.mxu0 0.0
        %1739 = vmatpush1.msra.mxu0 0.0
        %1740 = vmatprep.subr.mxu0 0.0
        %1741 = vmatpush1.msra.mxu0 0.0
        %1742 = vmatprep.subr.mxu0 0.0
        %1743 = vmatpush1.msra.mxu0 0.0
        %1744 = vmatprep.subr.mxu0 0.0
        %1745 = vmatpush1.msra.mxu0 0.0
        %1746 = vmatprep.subr.mxu0 0.0
        %1747 = vmatpush1.msra.mxu0 0.0
        %1748 = vmatprep.subr.mxu0 0.0
        %1749 = vmatpush1.msra.mxu0 0.0
        %1750 = vmatprep.subr.mxu0 0.0
        %1751 = vmatpush1.msra.mxu0 0.0
        %1752 = vmatprep.subr.mxu0 0.0
        %1753 = vmatpush1.msra.mxu0 0.0
        %1754 = vmatprep.subr.mxu0 0.0
        %1755 = vmatpush1.msra.mxu0 0.0
        %1756 = vmatprep.subr.mxu0 0.0
        %1757 = vmatpush1.msra.mxu0 0.0
        %1758 = vmatprep.subr.mxu0 0.0
        %1759 = vmatpush1.msra.mxu0 0.0
        %1760 = vmatprep.subr.mxu0 0.0
        %1761 = vmatpush1.msra.mxu0 0.0
        %1762 = vmatprep.subr.mxu0 0.0
        %1763 = vmatpush1.msra.mxu0 0.0
        %1764 = vmatprep.subr.mxu0 0.0
        %1765 = vmatpush1.msra.mxu0 %v1661
        %1766 = vmatprep.subr.mxu0 0.0
        %1767 = vmatpush2.msra.mxu0 0.0
        %1768 = vmatprep.subr.mxu0 0.0
        %1769 = vmatpush2.msra.mxu0 0.0
        %1770 = vmatprep.subr.mxu0 0.0
        %1771 = vmatpush2.msra.mxu0 0.0
        %1772 = vmatprep.subr.mxu0 0.0
        %1773 = vmatpush2.msra.mxu0 0.0
        %1774 = vmatprep.subr.mxu0 0.0
        %1775 = vmatpush2.msra.mxu0 0.0
        %1776 = vmatprep.subr.mxu0 0.0
        %1777 = vmatpush2.msra.mxu0 0.0
        %1778 = vmatprep.subr.mxu0 0.0
        %1779 = vmatpush2.msra.mxu0 0.0
        %1780 = vmatprep.subr.mxu0 0.0
        %1781 = vmatpush2.msra.mxu0 0.0
        %1782 = vmatprep.subr.mxu0 0.0
        %1783 = vmatpush2.msra.mxu0 0.0
        %1784 = vmatprep.subr.mxu0 0.0
        %1785 = vmatpush2.msra.mxu0 0.0
        %1786 = vmatprep.subr.mxu0 0.0
        %1787 = vmatpush2.msra.mxu0 0.0
        %1788 = vmatprep.subr.mxu0 0.0
        %1789 = vmatpush2.msra.mxu0 0.0
        %1790 = vmatprep.subr.mxu0 0.0
        %1791 = vmatpush2.msra.mxu0 0.0
        %1792 = vmatprep.subr.mxu0 0.0
        %1793 = vmatpush2.msra.mxu0 0.0
        %1794 = vmatprep.subr.mxu0 0.0
        %1795 = vmatpush2.msra.mxu0 0.0
        %1796 = vmatprep.subr.mxu0 0.0
        %1797 = vmatpush2.msra.mxu0 0.0
        %1798 = vmatprep.mubr.f32.mxu0 0.0
        %1799 = vmatmul.mubr.f32.gmra.mxu0 %v866
        %v1800 = vpop.f32.mrf.mxu0
        %v1801 = vadd.f32 0.0, %v1800
        %v1802 = vpop.f32.mrf.mxu0
        %1803 = vdwg.mxu0
        %v1804 = vsub.f32 %v1731, %v1523
        %v1805 = vsub.f32 %v1801, %v1448
        %v1807 = vsel %vm1373, %v1804, 0
        %1809 = vmatprep.subr.mxu0 0.0
        %1810 = vmatpush1.msra.mxu0 0.0
        %1811 = vmatprep.subr.mxu0 0.0
        %1812 = vmatpush1.msra.mxu0 0.0
        %1813 = vmatprep.subr.mxu0 0.0
        %1814 = vmatpush1.msra.mxu0 0.0
        %1815 = vmatprep.subr.mxu0 0.0
        %1816 = vmatpush1.msra.mxu0 0.0
        %1817 = vmatprep.subr.mxu0 0.0
        %1818 = vmatpush1.msra.mxu0 0.0
        %1819 = vmatprep.subr.mxu0 0.0
        %1820 = vmatpush1.msra.mxu0 0.0
        %1821 = vmatprep.subr.mxu0 0.0
        %1822 = vmatpush1.msra.mxu0 0.0
        %1823 = vmatprep.subr.mxu0 0.0
        %1824 = vmatpush1.msra.mxu0 0.0
        %1825 = vmatprep.subr.mxu0 0.0
        %1826 = vmatpush1.msra.mxu0 0.0
        %1827 = vmatprep.subr.mxu0 0.0
        %1828 = vmatpush1.msra.mxu0 0.0
        %1829 = vmatprep.subr.mxu0 0.0
        %1830 = vmatpush1.msra.mxu0 0.0
        %1831 = vmatprep.subr.mxu0 0.0
        %1832 = vmatpush1.msra.mxu0 0.0
        %1833 = vmatprep.subr.mxu0 0.0
        %1834 = vmatpush1.msra.mxu0 %v627
        %1835 = vmatprep.subr.mxu0 0.0
        %1836 = vmatpush1.msra.mxu0 %v626
        %1837 = vmatprep.subr.mxu0 0.0
        %1838 = vmatpush1.msra.mxu0 %v625
        %1839 = vmatprep.subr.mxu0 0.0
        %1840 = vmatpush1.msra.mxu0 %v624
        %1841 = vmatprep.subr.mxu0 0.0
        %1842 = vmatpush2.msra.mxu0 0.0
        %1843 = vmatprep.subr.mxu0 0.0
        %1844 = vmatpush2.msra.mxu0 0.0
        %1845 = vmatprep.subr.mxu0 0.0
        %1846 = vmatpush2.msra.mxu0 0.0
        %1847 = vmatprep.subr.mxu0 0.0
        %1848 = vmatpush2.msra.mxu0 0.0
        %1849 = vmatprep.subr.mxu0 0.0
        %1850 = vmatpush2.msra.mxu0 0.0
        %1851 = vmatprep.subr.mxu0 0.0
        %1852 = vmatpush2.msra.mxu0 0.0
        %1853 = vmatprep.subr.mxu0 0.0
        %1854 = vmatpush2.msra.mxu0 0.0
        %1855 = vmatprep.subr.mxu0 0.0
        %1856 = vmatpush2.msra.mxu0 0.0
        %1857 = vmatprep.subr.mxu0 0.0
        %1858 = vmatpush2.msra.mxu0 0.0
        %1859 = vmatprep.subr.mxu0 0.0
        %1860 = vmatpush2.msra.mxu0 0.0
        %1861 = vmatprep.subr.mxu0 0.0
        %1862 = vmatpush2.msra.mxu0 0.0
        %1863 = vmatprep.subr.mxu0 0.0
        %1864 = vmatpush2.msra.mxu0 0.0
        %1865 = vmatprep.subr.mxu0 0.0
        %1866 = vmatpush2.msra.mxu0 0.0
        %1867 = vmatprep.subr.mxu0 0.0
        %1868 = vmatpush2.msra.mxu0 0.0
        %1869 = vmatprep.subr.mxu0 0.0
        %1870 = vmatpush2.msra.mxu0 0.0
        %1871 = vmatprep.subr.mxu0 0.0
        %1872 = vmatpush2.msra.mxu0 0.0
        %1873 = vmatprep.mubr.f32.mxu0 0.0
        %1874 = vmatmul.mubr.f32.gmra.mxu0 %v1807
        %v1875 = vpop.f32.mrf.mxu0
        %v1876 = vadd.f32 0.0, %v1875
        %v1877 = vpop.f32.mrf.mxu0
        %1878 = vdwg.mxu0
        %v1879 = vadd.f32 %v864, %v1876
        %v1880 = vmax.f32 %v1879, 0.0
        %v1882 = vsel %vm1373, %v1805, 0
        %1884 = vmatprep.subr.mxu0 0.0
        %1885 = vmatpush1.msra.mxu0 0.0
        %1886 = vmatprep.subr.mxu0 0.0
        %1887 = vmatpush1.msra.mxu0 0.0
        %1888 = vmatprep.subr.mxu0 0.0
        %1889 = vmatpush1.msra.mxu0 0.0
        %1890 = vmatprep.subr.mxu0 0.0
        %1891 = vmatpush1.msra.mxu0 0.0
        %1892 = vmatprep.subr.mxu0 0.0
        %1893 = vmatpush1.msra.mxu0 0.0
        %1894 = vmatprep.subr.mxu0 0.0
        %1895 = vmatpush1.msra.mxu0 0.0
        %1896 = vmatprep.subr.mxu0 0.0
        %1897 = vmatpush1.msra.mxu0 0.0
        %1898 = vmatprep.subr.mxu0 0.0
        %1899 = vmatpush1.msra.mxu0 0.0
        %1900 = vmatprep.subr.mxu0 0.0
        %1901 = vmatpush1.msra.mxu0 0.0
        %1902 = vmatprep.subr.mxu0 0.0
        %1903 = vmatpush1.msra.mxu0 0.0
        %1904 = vmatprep.subr.mxu0 0.0
        %1905 = vmatpush1.msra.mxu0 0.0
        %1906 = vmatprep.subr.mxu0 0.0
        %1907 = vmatpush1.msra.mxu0 0.0
        %1908 = vmatprep.subr.mxu0 0.0
        %1909 = vmatpush1.msra.mxu0 %v627
        %1910 = vmatprep.subr.mxu0 0.0
        %1911 = vmatpush1.msra.mxu0 %v626
        %1912 = vmatprep.subr.mxu0 0.0
        %1913 = vmatpush1.msra.mxu0 %v625
        %1914 = vmatprep.subr.mxu0 0.0
        %1915 = vmatpush1.msra.mxu0 %v624
        %1916 = vmatprep.subr.mxu0 0.0
        %1917 = vmatpush2.msra.mxu0 0.0
        %1918 = vmatprep.subr.mxu0 0.0
        %1919 = vmatpush2.msra.mxu0 0.0
        %1920 = vmatprep.subr.mxu0 0.0
        %1921 = vmatpush2.msra.mxu0 0.0
        %1922 = vmatprep.subr.mxu0 0.0
        %1923 = vmatpush2.msra.mxu0 0.0
        %1924 = vmatprep.subr.mxu0 0.0
        %1925 = vmatpush2.msra.mxu0 0.0
        %1926 = vmatprep.subr.mxu0 0.0
        %1927 = vmatpush2.msra.mxu0 0.0
        %1928 = vmatprep.subr.mxu0 0.0
        %1929 = vmatpush2.msra.mxu0 0.0
        %1930 = vmatprep.subr.mxu0 0.0
        %1931 = vmatpush2.msra.mxu0 0.0
        %1932 = vmatprep.subr.mxu0 0.0
        %1933 = vmatpush2.msra.mxu0 0.0
        %1934 = vmatprep.subr.mxu0 0.0
        %1935 = vmatpush2.msra.mxu0 0.0
        %1936 = vmatprep.subr.mxu0 0.0
        %1937 = vmatpush2.msra.mxu0 0.0
        %1938 = vmatprep.subr.mxu0 0.0
        %1939 = vmatpush2.msra.mxu0 0.0
        %1940 = vmatprep.subr.mxu0 0.0
        %1941 = vmatpush2.msra.mxu0 0.0
        %1942 = vmatprep.subr.mxu0 0.0
        %1943 = vmatpush2.msra.mxu0 0.0
        %1944 = vmatprep.subr.mxu0 0.0
        %1945 = vmatpush2.msra.mxu0 0.0
        %1946 = vmatprep.subr.mxu0 0.0
        %1947 = vmatpush2.msra.mxu0 0.0
        %1948 = vmatprep.mubr.f32.mxu0 0.0
        %1949 = vmatmul.mubr.f32.gmra.mxu0 %v1882
        %v1950 = vpop.f32.mrf.mxu0
        %v1951 = vadd.f32 0.0, %v1950
        %v1952 = vpop.f32.mrf.mxu0
        %1953 = vdwg.mxu0
        %v1954 = vadd.f32 %v1084, %v1951
        %v1955 = vmax.f32 %v1954, 0.0
        %1956 = vmatprep.subr.mxu0 0.0
        %1957 = vmatpush1.msra.mxu0 0.0
        %1958 = vmatprep.subr.mxu0 0.0
        %1959 = vmatpush1.msra.mxu0 0.0
        %1960 = vmatprep.subr.mxu0 0.0
        %1961 = vmatpush1.msra.mxu0 0.0
        %1962 = vmatprep.subr.mxu0 0.0
        %1963 = vmatpush1.msra.mxu0 0.0
        %1964 = vmatprep.subr.mxu0 0.0
        %1965 = vmatpush1.msra.mxu0 0.0
        %1966 = vmatprep.subr.mxu0 0.0
        %1967 = vmatpush1.msra.mxu0 0.0
        %1968 = vmatprep.subr.mxu0 0.0
        %1969 = vmatpush1.msra.mxu0 0.0
        %1970 = vmatprep.subr.mxu0 0.0
        %1971 = vmatpush1.msra.mxu0 0.0
        %1972 = vmatprep.subr.mxu0 0.0
        %1973 = vmatpush1.msra.mxu0 0.0
        %1974 = vmatprep.subr.mxu0 0.0
        %1975 = vmatpush1.msra.mxu0 0.0
        %1976 = vmatprep.subr.mxu0 0.0
        %1977 = vmatpush1.msra.mxu0 0.0
        %1978 = vmatprep.subr.mxu0 0.0
        %1979 = vmatpush1.msra.mxu0 0.0
        %1980 = vmatprep.subr.mxu0 0.0
        %1981 = vmatpush1.msra.mxu0 0.0
        %1982 = vmatprep.subr.mxu0 0.0
        %1983 = vmatpush1.msra.mxu0 0.0
        %1984 = vmatprep.subr.mxu0 0.0
        %1985 = vmatpush1.msra.mxu0 0.0
        %1986 = vmatprep.subr.mxu0 0.0
        %1987 = vmatpush1.msra.mxu0 %v1955
        %1988 = vmatprep.subr.mxu0 0.0
        %1989 = vmatpush2.msra.mxu0 0.0
        %1990 = vmatprep.subr.mxu0 0.0
        %1991 = vmatpush2.msra.mxu0 0.0
        %1992 = vmatprep.subr.mxu0 0.0
        %1993 = vmatpush2.msra.mxu0 0.0
        %1994 = vmatprep.subr.mxu0 0.0
        %1995 = vmatpush2.msra.mxu0 0.0
        %1996 = vmatprep.subr.mxu0 0.0
        %1997 = vmatpush2.msra.mxu0 0.0
        %1998 = vmatprep.subr.mxu0 0.0
        %1999 = vmatpush2.msra.mxu0 0.0
        %2000 = vmatprep.subr.mxu0 0.0
        %2001 = vmatpush2.msra.mxu0 0.0
        %2002 = vmatprep.subr.mxu0 0.0
        %2003 = vmatpush2.msra.mxu0 0.0
        %2004 = vmatprep.subr.mxu0 0.0
        %2005 = vmatpush2.msra.mxu0 0.0
        %2006 = vmatprep.subr.mxu0 0.0
        %2007 = vmatpush2.msra.mxu0 0.0
        %2008 = vmatprep.subr.mxu0 0.0
        %2009 = vmatpush2.msra.mxu0 0.0
        %2010 = vmatprep.subr.mxu0 0.0
        %2011 = vmatpush2.msra.mxu0 0.0
        %2012 = vmatprep.subr.mxu0 0.0
        %2013 = vmatpush2.msra.mxu0 0.0
        %2014 = vmatprep.subr.mxu0 0.0
        %2015 = vmatpush2.msra.mxu0 0.0
        %2016 = vmatprep.subr.mxu0 0.0
        %2017 = vmatpush2.msra.mxu0 0.0
        %2018 = vmatprep.subr.mxu0 0.0
        %2019 = vmatpush2.msra.mxu0 0.0
        %2020 = vmatprep.mubr.f32.mxu0 0.0
        %2021 = vmatmul.mubr.f32.gmra.mxu0 %v1086
        %v2022 = vpop.f32.mrf.mxu0
        %v2023 = vadd.f32 0.0, %v2022
        %v2024 = vpop.f32.mrf.mxu0
        %2025 = vdwg.mxu0
        %2026 = vmatprep.subr.mxu0 0.0
        %2027 = vmatpush1.msra.mxu0 0.0
        %2028 = vmatprep.subr.mxu0 0.0
        %2029 = vmatpush1.msra.mxu0 0.0
        %2030 = vmatprep.subr.mxu0 0.0
        %2031 = vmatpush1.msra.mxu0 0.0
        %2032 = vmatprep.subr.mxu0 0.0
        %2033 = vmatpush1.msra.mxu0 0.0
        %2034 = vmatprep.subr.mxu0 0.0
        %2035 = vmatpush1.msra.mxu0 0.0
        %2036 = vmatprep.subr.mxu0 0.0
        %2037 = vmatpush1.msra.mxu0 0.0
        %2038 = vmatprep.subr.mxu0 0.0
        %2039 = vmatpush1.msra.mxu0 0.0
        %2040 = vmatprep.subr.mxu0 0.0
        %2041 = vmatpush1.msra.mxu0 0.0
        %2042 = vmatprep.subr.mxu0 0.0
        %2043 = vmatpush1.msra.mxu0 0.0
        %2044 = vmatprep.subr.mxu0 0.0
        %2045 = vmatpush1.msra.mxu0 0.0
        %2046 = vmatprep.subr.mxu0 0.0
        %2047 = vmatpush1.msra.mxu0 0.0
        %2048 = vmatprep.subr.mxu0 0.0
        %2049 = vmatpush1.msra.mxu0 0.0
        %2050 = vmatprep.subr.mxu0 0.0
        %2051 = vmatpush1.msra.mxu0 0.0
        %2052 = vmatprep.subr.mxu0 0.0
        %2053 = vmatpush1.msra.mxu0 0.0
        %2054 = vmatprep.subr.mxu0 0.0
        %2055 = vmatpush1.msra.mxu0 0.0
        %2056 = vmatprep.subr.mxu0 0.0
        %2057 = vmatpush1.msra.mxu0 %v1880
        %2058 = vmatprep.subr.mxu0 0.0
        %2059 = vmatpush2.msra.mxu0 0.0
        %2060 = vmatprep.subr.mxu0 0.0
        %2061 = vmatpush2.msra.mxu0 0.0
        %2062 = vmatprep.subr.mxu0 0.0
        %2063 = vmatpush2.msra.mxu0 0.0
        %2064 = vmatprep.subr.mxu0 0.0
        %2065 = vmatpush2.msra.mxu0 0.0
        %2066 = vmatprep.subr.mxu0 0.0
        %2067 = vmatpush2.msra.mxu0 0.0
        %2068 = vmatprep.subr.mxu0 0.0
        %2069 = vmatpush2.msra.mxu0 0.0
        %2070 = vmatprep.subr.mxu0 0.0
        %2071 = vmatpush2.msra.mxu0 0.0
        %2072 = vmatprep.subr.mxu0 0.0
        %2073 = vmatpush2.msra.mxu0 0.0
        %2074 = vmatprep.subr.mxu0 0.0
        %2075 = vmatpush2.msra.mxu0 0.0
        %2076 = vmatprep.subr.mxu0 0.0
        %2077 = vmatpush2.msra.mxu0 0.0
        %2078 = vmatprep.subr.mxu0 0.0
        %2079 = vmatpush2.msra.mxu0 0.0
        %2080 = vmatprep.subr.mxu0 0.0
        %2081 = vmatpush2.msra.mxu0 0.0
        %2082 = vmatprep.subr.mxu0 0.0
        %2083 = vmatpush2.msra.mxu0 0.0
        %2084 = vmatprep.subr.mxu0 0.0
        %2085 = vmatpush2.msra.mxu0 0.0
        %2086 = vmatprep.subr.mxu0 0.0
        %2087 = vmatpush2.msra.mxu0 0.0
        %2088 = vmatprep.subr.mxu0 0.0
        %2089 = vmatpush2.msra.mxu0 0.0
        %2090 = vmatprep.mubr.f32.mxu0 0.0
        %2091 = vmatmul.mubr.f32.gmra.mxu0 %v1159
        %v2092 = vpop.f32.mrf.mxu0
        %v2093 = vadd.f32 %v2023, %v2092
        %v2094 = vpop.f32.mrf.mxu0
        %2095 = vdwg.mxu0
        %2096 = vmatprep.subr.mxu0 0.0
        %2097 = vmatpush1.msra.mxu0 0.0
        %2098 = vmatprep.subr.mxu0 0.0
        %2099 = vmatpush1.msra.mxu0 0.0
        %2100 = vmatprep.subr.mxu0 0.0
        %2101 = vmatpush1.msra.mxu0 0.0
        %2102 = vmatprep.subr.mxu0 0.0
        %2103 = vmatpush1.msra.mxu0 0.0
        %2104 = vmatprep.subr.mxu0 0.0
        %2105 = vmatpush1.msra.mxu0 0.0
        %2106 = vmatprep.subr.mxu0 0.0
        %2107 = vmatpush1.msra.mxu0 0.0
        %2108 = vmatprep.subr.mxu0 0.0
        %2109 = vmatpush1.msra.mxu0 0.0
        %2110 = vmatprep.subr.mxu0 0.0
        %2111 = vmatpush1.msra.mxu0 0.0
        %2112 = vmatprep.subr.mxu0 0.0
        %2113 = vmatpush1.msra.mxu0 0.0
        %2114 = vmatprep.subr.mxu0 0.0
        %2115 = vmatpush1.msra.mxu0 0.0
        %2116 = vmatprep.subr.mxu0 0.0
        %2117 = vmatpush1.msra.mxu0 0.0
        %2118 = vmatprep.subr.mxu0 0.0
        %2119 = vmatpush1.msra.mxu0 0.0
        %2120 = vmatprep.subr.mxu0 0.0
        %2121 = vmatpush1.msra.mxu0 0.0
        %2122 = vmatprep.subr.mxu0 0.0
        %2123 = vmatpush1.msra.mxu0 0.0
        %2124 = vmatprep.subr.mxu0 0.0
        %2125 = vmatpush1.msra.mxu0 0.0
        %2126 = vmatprep.subr.mxu0 0.0
        %2127 = vmatpush1.msra.mxu0 %v2093
        %2128 = vmatprep.subr.mxu0 0.0
        %2129 = vmatpush2.msra.mxu0 0.0
        %2130 = vmatprep.subr.mxu0 0.0
        %2131 = vmatpush2.msra.mxu0 0.0
        %2132 = vmatprep.subr.mxu0 0.0
        %2133 = vmatpush2.msra.mxu0 0.0
        %2134 = vmatprep.subr.mxu0 0.0
        %2135 = vmatpush2.msra.mxu0 0.0
        %2136 = vmatprep.subr.mxu0 0.0
        %2137 = vmatpush2.msra.mxu0 0.0
        %2138 = vmatprep.subr.mxu0 0.0
        %2139 = vmatpush2.msra.mxu0 0.0
        %2140 = vmatprep.subr.mxu0 0.0
        %2141 = vmatpush2.msra.mxu0 0.0
        %2142 = vmatprep.subr.mxu0 0.0
        %2143 = vmatpush2.msra.mxu0 0.0
        %2144 = vmatprep.subr.mxu0 0.0
        %2145 = vmatpush2.msra.mxu0 0.0
        %2146 = vmatprep.subr.mxu0 0.0
        %2147 = vmatpush2.msra.mxu0 0.0
        %2148 = vmatprep.subr.mxu0 0.0
        %2149 = vmatpush2.msra.mxu0 0.0
        %2150 = vmatprep.subr.mxu0 0.0
        %2151 = vmatpush2.msra.mxu0 0.0
        %2152 = vmatprep.subr.mxu0 0.0
        %2153 = vmatpush2.msra.mxu0 0.0
        %2154 = vmatprep.subr.mxu0 0.0
        %2155 = vmatpush2.msra.mxu0 0.0
        %2156 = vmatprep.subr.mxu0 0.0
        %2157 = vmatpush2.msra.mxu0 0.0
        %2158 = vmatprep.subr.mxu0 0.0
        %2159 = vmatpush2.msra.mxu0 0.0
        %2160 = vmatprep.mubr.f32.mxu0 0.0
        %2161 = vmatmul.mubr.f32.gmra.mxu0 %v636
        %v2162 = vpop.f32.mrf.mxu0
        %v2163 = vadd.f32 0.0, %v2162
        %v2164 = vpop.f32.mrf.mxu0
        %2165 = vdwg.mxu0
        %2166 = vmatprep.subr.mxu0 0.0
        %2167 = vmatpush1.msra.mxu0 0.0
        %2168 = vmatprep.subr.mxu0 0.0
        %2169 = vmatpush1.msra.mxu0 0.0
        %2170 = vmatprep.subr.mxu0 0.0
        %2171 = vmatpush1.msra.mxu0 0.0
        %2172 = vmatprep.subr.mxu0 0.0
        %2173 = vmatpush1.msra.mxu0 0.0
        %2174 = vmatprep.subr.mxu0 0.0
        %2175 = vmatpush1.msra.mxu0 0.0
        %2176 = vmatprep.subr.mxu0 0.0
        %2177 = vmatpush1.msra.mxu0 0.0
        %2178 = vmatprep.subr.mxu0 0.0
        %2179 = vmatpush1.msra.mxu0 0.0
        %2180 = vmatprep.subr.mxu0 0.0
        %2181 = vmatpush1.msra.mxu0 0.0
        %2182 = vmatprep.subr.mxu0 0.0
        %2183 = vmatpush1.msra.mxu0 0.0
        %2184 = vmatprep.subr.mxu0 0.0
        %2185 = vmatpush1.msra.mxu0 0.0
        %2186 = vmatprep.subr.mxu0 0.0
        %2187 = vmatpush1.msra.mxu0 0.0
        %2188 = vmatprep.subr.mxu0 0.0
        %2189 = vmatpush1.msra.mxu0 0.0
        %2190 = vmatprep.subr.mxu0 0.0
        %2191 = vmatpush1.msra.mxu0 0.0
        %2192 = vmatprep.subr.mxu0 0.0
        %2193 = vmatpush1.msra.mxu0 0.0
        %2194 = vmatprep.subr.mxu0 0.0
        %2195 = vmatpush1.msra.mxu0 0.0
        %2196 = vmatprep.subr.mxu0 0.0
        %2197 = vmatpush1.msra.mxu0 %v2093
        %2198 = vmatprep.subr.mxu0 0.0
        %2199 = vmatpush2.msra.mxu0 0.0
        %2200 = vmatprep.subr.mxu0 0.0
        %2201 = vmatpush2.msra.mxu0 0.0
        %2202 = vmatprep.subr.mxu0 0.0
        %2203 = vmatpush2.msra.mxu0 0.0
        %2204 = vmatprep.subr.mxu0 0.0
        %2205 = vmatpush2.msra.mxu0 0.0
        %2206 = vmatprep.subr.mxu0 0.0
        %2207 = vmatpush2.msra.mxu0 0.0
        %2208 = vmatprep.subr.mxu0 0.0
        %2209 = vmatpush2.msra.mxu0 0.0
        %2210 = vmatprep.subr.mxu0 0.0
        %2211 = vmatpush2.msra.mxu0 0.0
        %2212 = vmatprep.subr.mxu0 0.0
        %2213 = vmatpush2.msra.mxu0 0.0
        %2214 = vmatprep.subr.mxu0 0.0
        %2215 = vmatpush2.msra.mxu0 0.0
        %2216 = vmatprep.subr.mxu0 0.0
        %2217 = vmatpush2.msra.mxu0 0.0
        %2218 = vmatprep.subr.mxu0 0.0
        %2219 = vmatpush2.msra.mxu0 0.0
        %2220 = vmatprep.subr.mxu0 0.0
        %2221 = vmatpush2.msra.mxu0 0.0
        %2222 = vmatprep.subr.mxu0 0.0
        %2223 = vmatpush2.msra.mxu0 0.0
        %2224 = vmatprep.subr.mxu0 0.0
        %2225 = vmatpush2.msra.mxu0 0.0
        %2226 = vmatprep.subr.mxu0 0.0
        %2227 = vmatpush2.msra.mxu0 0.0
        %2228 = vmatprep.subr.mxu0 0.0
        %2229 = vmatpush2.msra.mxu0 0.0
        %2230 = vmatprep.mubr.f32.mxu0 0.0
        %2231 = vmatmul.mubr.f32.gmra.mxu0 %v866
        %v2232 = vpop.f32.mrf.mxu0
        %v2233 = vadd.f32 0.0, %v2232
        %v2234 = vpop.f32.mrf.mxu0
        %2235 = vdwg.mxu0
        %v2236 = vsub.f32 %v2163, %v1955
        %v2237 = vsub.f32 %v2233, %v1880
        %v2239 = vsel %vm1373, %v2236, 0
        %2241 = vmatprep.subr.mxu0 0.0
        %2242 = vmatpush1.msra.mxu0 0.0
        %2243 = vmatprep.subr.mxu0 0.0
        %2244 = vmatpush1.msra.mxu0 0.0
        %2245 = vmatprep.subr.mxu0 0.0
        %2246 = vmatpush1.msra.mxu0 0.0
        %2247 = vmatprep.subr.mxu0 0.0
        %2248 = vmatpush1.msra.mxu0 0.0
        %2249 = vmatprep.subr.mxu0 0.0
        %2250 = vmatpush1.msra.mxu0 0.0
        %2251 = vmatprep.subr.mxu0 0.0
        %2252 = vmatpush1.msra.mxu0 0.0
        %2253 = vmatprep.subr.mxu0 0.0
        %2254 = vmatpush1.msra.mxu0 0.0
        %2255 = vmatprep.subr.mxu0 0.0
        %2256 = vmatpush1.msra.mxu0 0.0
        %2257 = vmatprep.subr.mxu0 0.0
        %2258 = vmatpush1.msra.mxu0 0.0
        %2259 = vmatprep.subr.mxu0 0.0
        %2260 = vmatpush1.msra.mxu0 0.0
        %2261 = vmatprep.subr.mxu0 0.0
        %2262 = vmatpush1.msra.mxu0 0.0
        %2263 = vmatprep.subr.mxu0 0.0
        %2264 = vmatpush1.msra.mxu0 0.0
        %2265 = vmatprep.subr.mxu0 0.0
        %2266 = vmatpush1.msra.mxu0 %v627
        %2267 = vmatprep.subr.mxu0 0.0
        %2268 = vmatpush1.msra.mxu0 %v626
        %2269 = vmatprep.subr.mxu0 0.0
        %2270 = vmatpush1.msra.mxu0 %v625
        %2271 = vmatprep.subr.mxu0 0.0
        %2272 = vmatpush1.msra.mxu0 %v624
        %2273 = vmatprep.subr.mxu0 0.0
        %2274 = vmatpush2.msra.mxu0 0.0
        %2275 = vmatprep.subr.mxu0 0.0
        %2276 = vmatpush2.msra.mxu0 0.0
        %2277 = vmatprep.subr.mxu0 0.0
        %2278 = vmatpush2.msra.mxu0 0.0
        %2279 = vmatprep.subr.mxu0 0.0
        %2280 = vmatpush2.msra.mxu0 0.0
        %2281 = vmatprep.subr.mxu0 0.0
        %2282 = vmatpush2.msra.mxu0 0.0
        %2283 = vmatprep.subr.mxu0 0.0
        %2284 = vmatpush2.msra.mxu0 0.0
        %2285 = vmatprep.subr.mxu0 0.0
        %2286 = vmatpush2.msra.mxu0 0.0
        %2287 = vmatprep.subr.mxu0 0.0
        %2288 = vmatpush2.msra.mxu0 0.0
        %2289 = vmatprep.subr.mxu0 0.0
        %2290 = vmatpush2.msra.mxu0 0.0
        %2291 = vmatprep.subr.mxu0 0.0
        %2292 = vmatpush2.msra.mxu0 0.0
        %2293 = vmatprep.subr.mxu0 0.0
        %2294 = vmatpush2.msra.mxu0 0.0
        %2295 = vmatprep.subr.mxu0 0.0
        %2296 = vmatpush2.msra.mxu0 0.0
        %2297 = vmatprep.subr.mxu0 0.0
        %2298 = vmatpush2.msra.mxu0 0.0
        %2299 = vmatprep.subr.mxu0 0.0
        %2300 = vmatpush2.msra.mxu0 0.0
        %2301 = vmatprep.subr.mxu0 0.0
        %2302 = vmatpush2.msra.mxu0 0.0
        %2303 = vmatprep.subr.mxu0 0.0
        %2304 = vmatpush2.msra.mxu0 0.0
        %2305 = vmatprep.mubr.f32.mxu0 0.0
        %2306 = vmatmul.mubr.f32.gmra.mxu0 %v2239
        %v2307 = vpop.f32.mrf.mxu0
        %v2308 = vadd.f32 0.0, %v2307
        %v2309 = vpop.f32.mrf.mxu0
        %2310 = vdwg.mxu0
        %v2311 = vadd.f32 %v864, %v2308
        %v2312 = vmax.f32 %v2311, 0.0
        %v2314 = vsel %vm1373, %v2237, 0
        %2316 = vmatprep.subr.mxu0 0.0
        %2317 = vmatpush1.msra.mxu0 0.0
        %2318 = vmatprep.subr.mxu0 0.0
        %2319 = vmatpush1.msra.mxu0 0.0
        %2320 = vmatprep.subr.mxu0 0.0
        %2321 = vmatpush1.msra.mxu0 0.0
        %2322 = vmatprep.subr.mxu0 0.0
        %2323 = vmatpush1.msra.mxu0 0.0
        %2324 = vmatprep.subr.mxu0 0.0
        %2325 = vmatpush1.msra.mxu0 0.0
        %2326 = vmatprep.subr.mxu0 0.0
        %2327 = vmatpush1.msra.mxu0 0.0
        %2328 = vmatprep.subr.mxu0 0.0
        %2329 = vmatpush1.msra.mxu0 0.0
        %2330 = vmatprep.subr.mxu0 0.0
        %2331 = vmatpush1.msra.mxu0 0.0
        %2332 = vmatprep.subr.mxu0 0.0
        %2333 = vmatpush1.msra.mxu0 0.0
        %2334 = vmatprep.subr.mxu0 0.0
        %2335 = vmatpush1.msra.mxu0 0.0
        %2336 = vmatprep.subr.mxu0 0.0
        %2337 = vmatpush1.msra.mxu0 0.0
        %2338 = vmatprep.subr.mxu0 0.0
        %2339 = vmatpush1.msra.mxu0 0.0
        %2340 = vmatprep.subr.mxu0 0.0
        %2341 = vmatpush1.msra.mxu0 %v627
        %2342 = vmatprep.subr.mxu0 0.0
        %2343 = vmatpush1.msra.mxu0 %v626
        %2344 = vmatprep.subr.mxu0 0.0
        %2345 = vmatpush1.msra.mxu0 %v625
        %2346 = vmatprep.subr.mxu0 0.0
        %2347 = vmatpush1.msra.mxu0 %v624
        %2348 = vmatprep.subr.mxu0 0.0
        %2349 = vmatpush2.msra.mxu0 0.0
        %2350 = vmatprep.subr.mxu0 0.0
        %2351 = vmatpush2.msra.mxu0 0.0
        %2352 = vmatprep.subr.mxu0 0.0
        %2353 = vmatpush2.msra.mxu0 0.0
        %2354 = vmatprep.subr.mxu0 0.0
        %2355 = vmatpush2.msra.mxu0 0.0
        %2356 = vmatprep.subr.mxu0 0.0
        %2357 = vmatpush2.msra.mxu0 0.0
        %2358 = vmatprep.subr.mxu0 0.0
        %2359 = vmatpush2.msra.mxu0 0.0
        %2360 = vmatprep.subr.mxu0 0.0
        %2361 = vmatpush2.msra.mxu0 0.0
        %2362 = vmatprep.subr.mxu0 0.0
        %2363 = vmatpush2.msra.mxu0 0.0
        %2364 = vmatprep.subr.mxu0 0.0
        %2365 = vmatpush2.msra.mxu0 0.0
        %2366 = vmatprep.subr.mxu0 0.0
        %2367 = vmatpush2.msra.mxu0 0.0
        %2368 = vmatprep.subr.mxu0 0.0
        %2369 = vmatpush2.msra.mxu0 0.0
        %2370 = vmatprep.subr.mxu0 0.0
        %2371 = vmatpush2.msra.mxu0 0.0
        %2372 = vmatprep.subr.mxu0 0.0
        %2373 = vmatpush2.msra.mxu0 0.0
        %2374 = vmatprep.subr.mxu0 0.0
        %2375 = vmatpush2.msra.mxu0 0.0
        %2376 = vmatprep.subr.mxu0 0.0
        %2377 = vmatpush2.msra.mxu0 0.0
        %2378 = vmatprep.subr.mxu0 0.0
        %2379 = vmatpush2.msra.mxu0 0.0
        %2380 = vmatprep.mubr.f32.mxu0 0.0
        %2381 = vmatmul.mubr.f32.gmra.mxu0 %v2314
        %v2382 = vpop.f32.mrf.mxu0
        %v2383 = vadd.f32 0.0, %v2382
        %v2384 = vpop.f32.mrf.mxu0
        %2385 = vdwg.mxu0
        %v2386 = vadd.f32 %v1084, %v2383
        %v2387 = vmax.f32 %v2386, 0.0
        %2388 = vmatprep.subr.mxu0 0.0
        %2389 = vmatpush1.msra.mxu0 0.0
        %2390 = vmatprep.subr.mxu0 0.0
        %2391 = vmatpush1.msra.mxu0 0.0
        %2392 = vmatprep.subr.mxu0 0.0
        %2393 = vmatpush1.msra.mxu0 0.0
        %2394 = vmatprep.subr.mxu0 0.0
        %2395 = vmatpush1.msra.mxu0 0.0
        %2396 = vmatprep.subr.mxu0 0.0
        %2397 = vmatpush1.msra.mxu0 0.0
        %2398 = vmatprep.subr.mxu0 0.0
        %2399 = vmatpush1.msra.mxu0 0.0
        %2400 = vmatprep.subr.mxu0 0.0
        %2401 = vmatpush1.msra.mxu0 0.0
        %2402 = vmatprep.subr.mxu0 0.0
        %2403 = vmatpush1.msra.mxu0 0.0
        %2404 = vmatprep.subr.mxu0 0.0
        %2405 = vmatpush1.msra.mxu0 0.0
        %2406 = vmatprep.subr.mxu0 0.0
        %2407 = vmatpush1.msra.mxu0 0.0
        %2408 = vmatprep.subr.mxu0 0.0
        %2409 = vmatpush1.msra.mxu0 0.0
        %2410 = vmatprep.subr.mxu0 0.0
        %2411 = vmatpush1.msra.mxu0 0.0
        %2412 = vmatprep.subr.mxu0 0.0
        %2413 = vmatpush1.msra.mxu0 0.0
        %2414 = vmatprep.subr.mxu0 0.0
        %2415 = vmatpush1.msra.mxu0 0.0
        %2416 = vmatprep.subr.mxu0 0.0
        %2417 = vmatpush1.msra.mxu0 0.0
        %2418 = vmatprep.subr.mxu0 0.0
        %2419 = vmatpush1.msra.mxu0 %v2387
        %2420 = vmatprep.subr.mxu0 0.0
        %2421 = vmatpush2.msra.mxu0 0.0
        %2422 = vmatprep.subr.mxu0 0.0
        %2423 = vmatpush2.msra.mxu0 0.0
        %2424 = vmatprep.subr.mxu0 0.0
        %2425 = vmatpush2.msra.mxu0 0.0
        %2426 = vmatprep.subr.mxu0 0.0
        %2427 = vmatpush2.msra.mxu0 0.0
        %2428 = vmatprep.subr.mxu0 0.0
        %2429 = vmatpush2.msra.mxu0 0.0
        %2430 = vmatprep.subr.mxu0 0.0
        %2431 = vmatpush2.msra.mxu0 0.0
        %2432 = vmatprep.subr.mxu0 0.0
        %2433 = vmatpush2.msra.mxu0 0.0
        %2434 = vmatprep.subr.mxu0 0.0
        %2435 = vmatpush2.msra.mxu0 0.0
        %2436 = vmatprep.subr.mxu0 0.0
        %2437 = vmatpush2.msra.mxu0 0.0
        %2438 = vmatprep.subr.mxu0 0.0
        %2439 = vmatpush2.msra.mxu0 0.0
        %2440 = vmatprep.subr.mxu0 0.0
        %2441 = vmatpush2.msra.mxu0 0.0
        %2442 = vmatprep.subr.mxu0 0.0
        %2443 = vmatpush2.msra.mxu0 0.0
        %2444 = vmatprep.subr.mxu0 0.0
        %2445 = vmatpush2.msra.mxu0 0.0
        %2446 = vmatprep.subr.mxu0 0.0
        %2447 = vmatpush2.msra.mxu0 0.0
        %2448 = vmatprep.subr.mxu0 0.0
        %2449 = vmatpush2.msra.mxu0 0.0
        %2450 = vmatprep.subr.mxu0 0.0
        %2451 = vmatpush2.msra.mxu0 0.0
        %2452 = vmatprep.mubr.f32.mxu0 0.0
        %2453 = vmatmul.mubr.f32.gmra.mxu0 %v1086
        %v2454 = vpop.f32.mrf.mxu0
        %v2455 = vadd.f32 0.0, %v2454
        %v2456 = vpop.f32.mrf.mxu0
        %2457 = vdwg.mxu0
        %2458 = vmatprep.subr.mxu0 0.0
        %2459 = vmatpush1.msra.mxu0 0.0
        %2460 = vmatprep.subr.mxu0 0.0
        %2461 = vmatpush1.msra.mxu0 0.0
        %2462 = vmatprep.subr.mxu0 0.0
        %2463 = vmatpush1.msra.mxu0 0.0
        %2464 = vmatprep.subr.mxu0 0.0
        %2465 = vmatpush1.msra.mxu0 0.0
        %2466 = vmatprep.subr.mxu0 0.0
        %2467 = vmatpush1.msra.mxu0 0.0
        %2468 = vmatprep.subr.mxu0 0.0
        %2469 = vmatpush1.msra.mxu0 0.0
        %2470 = vmatprep.subr.mxu0 0.0
        %2471 = vmatpush1.msra.mxu0 0.0
        %2472 = vmatprep.subr.mxu0 0.0
        %2473 = vmatpush1.msra.mxu0 0.0
        %2474 = vmatprep.subr.mxu0 0.0
        %2475 = vmatpush1.msra.mxu0 0.0
        %2476 = vmatprep.subr.mxu0 0.0
        %2477 = vmatpush1.msra.mxu0 0.0
        %2478 = vmatprep.subr.mxu0 0.0
        %2479 = vmatpush1.msra.mxu0 0.0
        %2480 = vmatprep.subr.mxu0 0.0
        %2481 = vmatpush1.msra.mxu0 0.0
        %2482 = vmatprep.subr.mxu0 0.0
        %2483 = vmatpush1.msra.mxu0 0.0
        %2484 = vmatprep.subr.mxu0 0.0
        %2485 = vmatpush1.msra.mxu0 0.0
        %2486 = vmatprep.subr.mxu0 0.0
        %2487 = vmatpush1.msra.mxu0 0.0
        %2488 = vmatprep.subr.mxu0 0.0
        %2489 = vmatpush1.msra.mxu0 %v2312
        %2490 = vmatprep.subr.mxu0 0.0
        %2491 = vmatpush2.msra.mxu0 0.0
        %2492 = vmatprep.subr.mxu0 0.0
        %2493 = vmatpush2.msra.mxu0 0.0
        %2494 = vmatprep.subr.mxu0 0.0
        %2495 = vmatpush2.msra.mxu0 0.0
        %2496 = vmatprep.subr.mxu0 0.0
        %2497 = vmatpush2.msra.mxu0 0.0
        %2498 = vmatprep.subr.mxu0 0.0
        %2499 = vmatpush2.msra.mxu0 0.0
        %2500 = vmatprep.subr.mxu0 0.0
        %2501 = vmatpush2.msra.mxu0 0.0
        %2502 = vmatprep.subr.mxu0 0.0
        %2503 = vmatpush2.msra.mxu0 0.0
        %2504 = vmatprep.subr.mxu0 0.0
        %2505 = vmatpush2.msra.mxu0 0.0
        %2506 = vmatprep.subr.mxu0 0.0
        %2507 = vmatpush2.msra.mxu0 0.0
        %2508 = vmatprep.subr.mxu0 0.0
        %2509 = vmatpush2.msra.mxu0 0.0
        %2510 = vmatprep.subr.mxu0 0.0
        %2511 = vmatpush2.msra.mxu0 0.0
        %2512 = vmatprep.subr.mxu0 0.0
        %2513 = vmatpush2.msra.mxu0 0.0
        %2514 = vmatprep.subr.mxu0 0.0
        %2515 = vmatpush2.msra.mxu0 0.0
        %2516 = vmatprep.subr.mxu0 0.0
        %2517 = vmatpush2.msra.mxu0 0.0
        %2518 = vmatprep.subr.mxu0 0.0
        %2519 = vmatpush2.msra.mxu0 0.0
        %2520 = vmatprep.subr.mxu0 0.0
        %2521 = vmatpush2.msra.mxu0 0.0
        %2522 = vmatprep.mubr.f32.mxu0 0.0
        %2523 = vmatmul.mubr.f32.gmra.mxu0 %v1159
        %v2524 = vpop.f32.mrf.mxu0
        %v2525 = vadd.f32 %v2455, %v2524
        %v2526 = vpop.f32.mrf.mxu0
        %2527 = vdwg.mxu0
        %2528 = vmatprep.subr.mxu0 0.0
        %2529 = vmatpush1.msra.mxu0 0.0
        %2530 = vmatprep.subr.mxu0 0.0
        %2531 = vmatpush1.msra.mxu0 0.0
        %2532 = vmatprep.subr.mxu0 0.0
        %2533 = vmatpush1.msra.mxu0 0.0
        %2534 = vmatprep.subr.mxu0 0.0
        %2535 = vmatpush1.msra.mxu0 0.0
        %2536 = vmatprep.subr.mxu0 0.0
        %2537 = vmatpush1.msra.mxu0 0.0
        %2538 = vmatprep.subr.mxu0 0.0
        %2539 = vmatpush1.msra.mxu0 0.0
        %2540 = vmatprep.subr.mxu0 0.0
        %2541 = vmatpush1.msra.mxu0 0.0
        %2542 = vmatprep.subr.mxu0 0.0
        %2543 = vmatpush1.msra.mxu0 0.0
        %2544 = vmatprep.subr.mxu0 0.0
        %2545 = vmatpush1.msra.mxu0 0.0
        %2546 = vmatprep.subr.mxu0 0.0
        %2547 = vmatpush1.msra.mxu0 0.0
        %2548 = vmatprep.subr.mxu0 0.0
        %2549 = vmatpush1.msra.mxu0 0.0
        %2550 = vmatprep.subr.mxu0 0.0
        %2551 = vmatpush1.msra.mxu0 0.0
        %2552 = vmatprep.subr.mxu0 0.0
        %2553 = vmatpush1.msra.mxu0 0.0
        %2554 = vmatprep.subr.mxu0 0.0
        %2555 = vmatpush1.msra.mxu0 0.0
        %2556 = vmatprep.subr.mxu0 0.0
        %2557 = vmatpush1.msra.mxu0 0.0
        %2558 = vmatprep.subr.mxu0 0.0
        %2559 = vmatpush1.msra.mxu0 %v2525
        %2560 = vmatprep.subr.mxu0 0.0
        %2561 = vmatpush2.msra.mxu0 0.0
        %2562 = vmatprep.subr.mxu0 0.0
        %2563 = vmatpush2.msra.mxu0 0.0
        %2564 = vmatprep.subr.mxu0 0.0
        %2565 = vmatpush2.msra.mxu0 0.0
        %2566 = vmatprep.subr.mxu0 0.0
        %2567 = vmatpush2.msra.mxu0 0.0
        %2568 = vmatprep.subr.mxu0 0.0
        %2569 = vmatpush2.msra.mxu0 0.0
        %2570 = vmatprep.subr.mxu0 0.0
        %2571 = vmatpush2.msra.mxu0 0.0
        %2572 = vmatprep.subr.mxu0 0.0
        %2573 = vmatpush2.msra.mxu0 0.0
        %2574 = vmatprep.subr.mxu0 0.0
        %2575 = vmatpush2.msra.mxu0 0.0
        %2576 = vmatprep.subr.mxu0 0.0
        %2577 = vmatpush2.msra.mxu0 0.0
        %2578 = vmatprep.subr.mxu0 0.0
        %2579 = vmatpush2.msra.mxu0 0.0
        %2580 = vmatprep.subr.mxu0 0.0
        %2581 = vmatpush2.msra.mxu0 0.0
        %2582 = vmatprep.subr.mxu0 0.0
        %2583 = vmatpush2.msra.mxu0 0.0
        %2584 = vmatprep.subr.mxu0 0.0
        %2585 = vmatpush2.msra.mxu0 0.0
        %2586 = vmatprep.subr.mxu0 0.0
        %2587 = vmatpush2.msra.mxu0 0.0
        %2588 = vmatprep.subr.mxu0 0.0
        %2589 = vmatpush2.msra.mxu0 0.0
        %2590 = vmatprep.subr.mxu0 0.0
        %2591 = vmatpush2.msra.mxu0 0.0
        %2592 = vmatprep.mubr.f32.mxu0 0.0
        %2593 = vmatmul.mubr.f32.gmra.mxu0 %v636
        %v2594 = vpop.f32.mrf.mxu0
        %v2595 = vadd.f32 0.0, %v2594
        %v2596 = vpop.f32.mrf.mxu0
        %2597 = vdwg.mxu0
        %2598 = vmatprep.subr.mxu0 0.0
        %2599 = vmatpush1.msra.mxu0 0.0
        %2600 = vmatprep.subr.mxu0 0.0
        %2601 = vmatpush1.msra.mxu0 0.0
        %2602 = vmatprep.subr.mxu0 0.0
        %2603 = vmatpush1.msra.mxu0 0.0
        %2604 = vmatprep.subr.mxu0 0.0
        %2605 = vmatpush1.msra.mxu0 0.0
        %2606 = vmatprep.subr.mxu0 0.0
        %2607 = vmatpush1.msra.mxu0 0.0
        %2608 = vmatprep.subr.mxu0 0.0
        %2609 = vmatpush1.msra.mxu0 0.0
        %2610 = vmatprep.subr.mxu0 0.0
        %2611 = vmatpush1.msra.mxu0 0.0
        %2612 = vmatprep.subr.mxu0 0.0
        %2613 = vmatpush1.msra.mxu0 0.0
        %2614 = vmatprep.subr.mxu0 0.0
        %2615 = vmatpush1.msra.mxu0 0.0
        %2616 = vmatprep.subr.mxu0 0.0
        %2617 = vmatpush1.msra.mxu0 0.0
        %2618 = vmatprep.subr.mxu0 0.0
        %2619 = vmatpush1.msra.mxu0 0.0
        %2620 = vmatprep.subr.mxu0 0.0
        %2621 = vmatpush1.msra.mxu0 0.0
        %2622 = vmatprep.subr.mxu0 0.0
        %2623 = vmatpush1.msra.mxu0 0.0
        %2624 = vmatprep.subr.mxu0 0.0
        %2625 = vmatpush1.msra.mxu0 0.0
        %2626 = vmatprep.subr.mxu0 0.0
        %2627 = vmatpush1.msra.mxu0 0.0
        %2628 = vmatprep.subr.mxu0 0.0
        %2629 = vmatpush1.msra.mxu0 %v2525
        %2630 = vmatprep.subr.mxu0 0.0
        %2631 = vmatpush2.msra.mxu0 0.0
        %2632 = vmatprep.subr.mxu0 0.0
        %2633 = vmatpush2.msra.mxu0 0.0
        %2634 = vmatprep.subr.mxu0 0.0
        %2635 = vmatpush2.msra.mxu0 0.0
        %2636 = vmatprep.subr.mxu0 0.0
        %2637 = vmatpush2.msra.mxu0 0.0
        %2638 = vmatprep.subr.mxu0 0.0
        %2639 = vmatpush2.msra.mxu0 0.0
        %2640 = vmatprep.subr.mxu0 0.0
        %2641 = vmatpush2.msra.mxu0 0.0
        %2642 = vmatprep.subr.mxu0 0.0
        %2643 = vmatpush2.msra.mxu0 0.0
        %2644 = vmatprep.subr.mxu0 0.0
        %2645 = vmatpush2.msra.mxu0 0.0
        %2646 = vmatprep.subr.mxu0 0.0
        %2647 = vmatpush2.msra.mxu0 0.0
        %2648 = vmatprep.subr.mxu0 0.0
        %2649 = vmatpush2.msra.mxu0 0.0
        %2650 = vmatprep.subr.mxu0 0.0
        %2651 = vmatpush2.msra.mxu0 0.0
        %2652 = vmatprep.subr.mxu0 0.0
        %2653 = vmatpush2.msra.mxu0 0.0
        %2654 = vmatprep.subr.mxu0 0.0
        %2655 = vmatpush2.msra.mxu0 0.0
        %2656 = vmatprep.subr.mxu0 0.0
        %2657 = vmatpush2.msra.mxu0 0.0
        %2658 = vmatprep.subr.mxu0 0.0
        %2659 = vmatpush2.msra.mxu0 0.0
        %2660 = vmatprep.subr.mxu0 0.0
        %2661 = vmatpush2.msra.mxu0 0.0
        %2662 = vmatprep.mubr.f32.mxu0 0.0
        %2663 = vmatmul.mubr.f32.gmra.mxu0 %v866
        %v2664 = vpop.f32.mrf.mxu0
        %v2665 = vadd.f32 0.0, %v2664
        %v2666 = vpop.f32.mrf.mxu0
        %2667 = vdwg.mxu0
        %v2668 = vsub.f32 %v2595, %v2387
        %v2669 = vsub.f32 %v2665, %v2312
        %v2671 = vsel %vm1373, %v2668, 0
        %2673 = vmatprep.subr.mxu0 0.0
        %2674 = vmatpush1.msra.mxu0 0.0
        %2675 = vmatprep.subr.mxu0 0.0
        %2676 = vmatpush1.msra.mxu0 0.0
        %2677 = vmatprep.subr.mxu0 0.0
        %2678 = vmatpush1.msra.mxu0 0.0
        %2679 = vmatprep.subr.mxu0 0.0
        %2680 = vmatpush1.msra.mxu0 0.0
        %2681 = vmatprep.subr.mxu0 0.0
        %2682 = vmatpush1.msra.mxu0 0.0
        %2683 = vmatprep.subr.mxu0 0.0
        %2684 = vmatpush1.msra.mxu0 0.0
        %2685 = vmatprep.subr.mxu0 0.0
        %2686 = vmatpush1.msra.mxu0 0.0
        %2687 = vmatprep.subr.mxu0 0.0
        %2688 = vmatpush1.msra.mxu0 0.0
        %2689 = vmatprep.subr.mxu0 0.0
        %2690 = vmatpush1.msra.mxu0 0.0
        %2691 = vmatprep.subr.mxu0 0.0
        %2692 = vmatpush1.msra.mxu0 0.0
        %2693 = vmatprep.subr.mxu0 0.0
        %2694 = vmatpush1.msra.mxu0 0.0
        %2695 = vmatprep.subr.mxu0 0.0
        %2696 = vmatpush1.msra.mxu0 0.0
        %2697 = vmatprep.subr.mxu0 0.0
        %2698 = vmatpush1.msra.mxu0 %v627
        %2699 = vmatprep.subr.mxu0 0.0
        %2700 = vmatpush1.msra.mxu0 %v626
        %2701 = vmatprep.subr.mxu0 0.0
        %2702 = vmatpush1.msra.mxu0 %v625
        %2703 = vmatprep.subr.mxu0 0.0
        %2704 = vmatpush1.msra.mxu0 %v624
        %2705 = vmatprep.subr.mxu0 0.0
        %2706 = vmatpush2.msra.mxu0 0.0
        %2707 = vmatprep.subr.mxu0 0.0
        %2708 = vmatpush2.msra.mxu0 0.0
        %2709 = vmatprep.subr.mxu0 0.0
        %2710 = vmatpush2.msra.mxu0 0.0
        %2711 = vmatprep.subr.mxu0 0.0
        %2712 = vmatpush2.msra.mxu0 0.0
        %2713 = vmatprep.subr.mxu0 0.0
        %2714 = vmatpush2.msra.mxu0 0.0
        %2715 = vmatprep.subr.mxu0 0.0
        %2716 = vmatpush2.msra.mxu0 0.0
        %2717 = vmatprep.subr.mxu0 0.0
        %2718 = vmatpush2.msra.mxu0 0.0
        %2719 = vmatprep.subr.mxu0 0.0
        %2720 = vmatpush2.msra.mxu0 0.0
        %2721 = vmatprep.subr.mxu0 0.0
        %2722 = vmatpush2.msra.mxu0 0.0
        %2723 = vmatprep.subr.mxu0 0.0
        %2724 = vmatpush2.msra.mxu0 0.0
        %2725 = vmatprep.subr.mxu0 0.0
        %2726 = vmatpush2.msra.mxu0 0.0
        %2727 = vmatprep.subr.mxu0 0.0
        %2728 = vmatpush2.msra.mxu0 0.0
        %2729 = vmatprep.subr.mxu0 0.0
        %2730 = vmatpush2.msra.mxu0 0.0
        %2731 = vmatprep.subr.mxu0 0.0
        %2732 = vmatpush2.msra.mxu0 0.0
        %2733 = vmatprep.subr.mxu0 0.0
        %2734 = vmatpush2.msra.mxu0 0.0
        %2735 = vmatprep.subr.mxu0 0.0
        %2736 = vmatpush2.msra.mxu0 0.0
        %2737 = vmatprep.mubr.f32.mxu0 0.0
        %2738 = vmatmul.mubr.f32.gmra.mxu0 %v2671
        %v2739 = vpop.f32.mrf.mxu0
        %v2740 = vadd.f32 0.0, %v2739
        %v2741 = vpop.f32.mrf.mxu0
        %2742 = vdwg.mxu0
        %v2743 = vadd.f32 %v864, %v2740
        %v2744 = vmax.f32 %v2743, 0.0
        %v2746 = vsel %vm1373, %v2669, 0
        %2748 = vmatprep.subr.mxu0 0.0
        %2749 = vmatpush1.msra.mxu0 0.0
        %2750 = vmatprep.subr.mxu0 0.0
        %2751 = vmatpush1.msra.mxu0 0.0
        %2752 = vmatprep.subr.mxu0 0.0
        %2753 = vmatpush1.msra.mxu0 0.0
        %2754 = vmatprep.subr.mxu0 0.0
        %2755 = vmatpush1.msra.mxu0 0.0
        %2756 = vmatprep.subr.mxu0 0.0
        %2757 = vmatpush1.msra.mxu0 0.0
        %2758 = vmatprep.subr.mxu0 0.0
        %2759 = vmatpush1.msra.mxu0 0.0
        %2760 = vmatprep.subr.mxu0 0.0
        %2761 = vmatpush1.msra.mxu0 0.0
        %2762 = vmatprep.subr.mxu0 0.0
        %2763 = vmatpush1.msra.mxu0 0.0
        %2764 = vmatprep.subr.mxu0 0.0
        %2765 = vmatpush1.msra.mxu0 0.0
        %2766 = vmatprep.subr.mxu0 0.0
        %2767 = vmatpush1.msra.mxu0 0.0
        %2768 = vmatprep.subr.mxu0 0.0
        %2769 = vmatpush1.msra.mxu0 0.0
        %2770 = vmatprep.subr.mxu0 0.0
        %2771 = vmatpush1.msra.mxu0 0.0
        %2772 = vmatprep.subr.mxu0 0.0
        %2773 = vmatpush1.msra.mxu0 %v627
        %2774 = vmatprep.subr.mxu0 0.0
        %2775 = vmatpush1.msra.mxu0 %v626
        %2776 = vmatprep.subr.mxu0 0.0
        %2777 = vmatpush1.msra.mxu0 %v625
        %2778 = vmatprep.subr.mxu0 0.0
        %2779 = vmatpush1.msra.mxu0 %v624
        %2780 = vmatprep.subr.mxu0 0.0
        %2781 = vmatpush2.msra.mxu0 0.0
        %2782 = vmatprep.subr.mxu0 0.0
        %2783 = vmatpush2.msra.mxu0 0.0
        %2784 = vmatprep.subr.mxu0 0.0
        %2785 = vmatpush2.msra.mxu0 0.0
        %2786 = vmatprep.subr.mxu0 0.0
        %2787 = vmatpush2.msra.mxu0 0.0
        %2788 = vmatprep.subr.mxu0 0.0
        %2789 = vmatpush2.msra.mxu0 0.0
        %2790 = vmatprep.subr.mxu0 0.0
        %2791 = vmatpush2.msra.mxu0 0.0
        %2792 = vmatprep.subr.mxu0 0.0
        %2793 = vmatpush2.msra.mxu0 0.0
        %2794 = vmatprep.subr.mxu0 0.0
        %2795 = vmatpush2.msra.mxu0 0.0
        %2796 = vmatprep.subr.mxu0 0.0
        %2797 = vmatpush2.msra.mxu0 0.0
        %2798 = vmatprep.subr.mxu0 0.0
        %2799 = vmatpush2.msra.mxu0 0.0
        %2800 = vmatprep.subr.mxu0 0.0
        %2801 = vmatpush2.msra.mxu0 0.0
        %2802 = vmatprep.subr.mxu0 0.0
        %2803 = vmatpush2.msra.mxu0 0.0
        %2804 = vmatprep.subr.mxu0 0.0
        %2805 = vmatpush2.msra.mxu0 0.0
        %2806 = vmatprep.subr.mxu0 0.0
        %2807 = vmatpush2.msra.mxu0 0.0
        %2808 = vmatprep.subr.mxu0 0.0
        %2809 = vmatpush2.msra.mxu0 0.0
        %2810 = vmatprep.subr.mxu0 0.0
        %2811 = vmatpush2.msra.mxu0 0.0
        %2812 = vmatprep.mubr.f32.mxu0 0.0
        %2813 = vmatmul.mubr.f32.gmra.mxu0 %v2746
        %v2814 = vpop.f32.mrf.mxu0
        %v2815 = vadd.f32 0.0, %v2814
        %v2816 = vpop.f32.mrf.mxu0
        %2817 = vdwg.mxu0
        %v2818 = vadd.f32 %v1084, %v2815
        %v2819 = vmax.f32 %v2818, 0.0
        %2820 = vmatprep.subr.mxu0 0.0
        %2821 = vmatpush1.msra.mxu0 0.0
        %2822 = vmatprep.subr.mxu0 0.0
        %2823 = vmatpush1.msra.mxu0 0.0
        %2824 = vmatprep.subr.mxu0 0.0
        %2825 = vmatpush1.msra.mxu0 0.0
        %2826 = vmatprep.subr.mxu0 0.0
        %2827 = vmatpush1.msra.mxu0 0.0
        %2828 = vmatprep.subr.mxu0 0.0
        %2829 = vmatpush1.msra.mxu0 0.0
        %2830 = vmatprep.subr.mxu0 0.0
        %2831 = vmatpush1.msra.mxu0 0.0
        %2832 = vmatprep.subr.mxu0 0.0
        %2833 = vmatpush1.msra.mxu0 0.0
        %2834 = vmatprep.subr.mxu0 0.0
        %2835 = vmatpush1.msra.mxu0 0.0
        %2836 = vmatprep.subr.mxu0 0.0
        %2837 = vmatpush1.msra.mxu0 0.0
        %2838 = vmatprep.subr.mxu0 0.0
        %2839 = vmatpush1.msra.mxu0 0.0
        %2840 = vmatprep.subr.mxu0 0.0
        %2841 = vmatpush1.msra.mxu0 0.0
        %2842 = vmatprep.subr.mxu0 0.0
        %2843 = vmatpush1.msra.mxu0 0.0
        %2844 = vmatprep.subr.mxu0 0.0
        %2845 = vmatpush1.msra.mxu0 0.0
        %2846 = vmatprep.subr.mxu0 0.0
        %2847 = vmatpush1.msra.mxu0 0.0
        %2848 = vmatprep.subr.mxu0 0.0
        %2849 = vmatpush1.msra.mxu0 0.0
        %2850 = vmatprep.subr.mxu0 0.0
        %2851 = vmatpush1.msra.mxu0 %v2819
        %2852 = vmatprep.subr.mxu0 0.0
        %2853 = vmatpush2.msra.mxu0 0.0
        %2854 = vmatprep.subr.mxu0 0.0
        %2855 = vmatpush2.msra.mxu0 0.0
        %2856 = vmatprep.subr.mxu0 0.0
        %2857 = vmatpush2.msra.mxu0 0.0
        %2858 = vmatprep.subr.mxu0 0.0
        %2859 = vmatpush2.msra.mxu0 0.0
        %2860 = vmatprep.subr.mxu0 0.0
        %2861 = vmatpush2.msra.mxu0 0.0
        %2862 = vmatprep.subr.mxu0 0.0
        %2863 = vmatpush2.msra.mxu0 0.0
        %2864 = vmatprep.subr.mxu0 0.0
        %2865 = vmatpush2.msra.mxu0 0.0
        %2866 = vmatprep.subr.mxu0 0.0
        %2867 = vmatpush2.msra.mxu0 0.0
        %2868 = vmatprep.subr.mxu0 0.0
        %2869 = vmatpush2.msra.mxu0 0.0
        %2870 = vmatprep.subr.mxu0 0.0
        %2871 = vmatpush2.msra.mxu0 0.0
        %2872 = vmatprep.subr.mxu0 0.0
        %2873 = vmatpush2.msra.mxu0 0.0
        %2874 = vmatprep.subr.mxu0 0.0
        %2875 = vmatpush2.msra.mxu0 0.0
        %2876 = vmatprep.subr.mxu0 0.0
        %2877 = vmatpush2.msra.mxu0 0.0
        %2878 = vmatprep.subr.mxu0 0.0
        %2879 = vmatpush2.msra.mxu0 0.0
        %2880 = vmatprep.subr.mxu0 0.0
        %2881 = vmatpush2.msra.mxu0 0.0
        %2882 = vmatprep.subr.mxu0 0.0
        %2883 = vmatpush2.msra.mxu0 0.0
        %2884 = vmatprep.mubr.f32.mxu0 0.0
        %2885 = vmatmul.mubr.f32.gmra.mxu0 %v1086
        %v2886 = vpop.f32.mrf.mxu0
        %v2887 = vadd.f32 0.0, %v2886
        %v2888 = vpop.f32.mrf.mxu0
        %2889 = vdwg.mxu0
        %2890 = vmatprep.subr.mxu0 0.0
        %2891 = vmatpush1.msra.mxu0 0.0
        %2892 = vmatprep.subr.mxu0 0.0
        %2893 = vmatpush1.msra.mxu0 0.0
        %2894 = vmatprep.subr.mxu0 0.0
        %2895 = vmatpush1.msra.mxu0 0.0
        %2896 = vmatprep.subr.mxu0 0.0
        %2897 = vmatpush1.msra.mxu0 0.0
        %2898 = vmatprep.subr.mxu0 0.0
        %2899 = vmatpush1.msra.mxu0 0.0
        %2900 = vmatprep.subr.mxu0 0.0
        %2901 = vmatpush1.msra.mxu0 0.0
        %2902 = vmatprep.subr.mxu0 0.0
        %2903 = vmatpush1.msra.mxu0 0.0
        %2904 = vmatprep.subr.mxu0 0.0
        %2905 = vmatpush1.msra.mxu0 0.0
        %2906 = vmatprep.subr.mxu0 0.0
        %2907 = vmatpush1.msra.mxu0 0.0
        %2908 = vmatprep.subr.mxu0 0.0
        %2909 = vmatpush1.msra.mxu0 0.0
        %2910 = vmatprep.subr.mxu0 0.0
        %2911 = vmatpush1.msra.mxu0 0.0
        %2912 = vmatprep.subr.mxu0 0.0
        %2913 = vmatpush1.msra.mxu0 0.0
        %2914 = vmatprep.subr.mxu0 0.0
        %2915 = vmatpush1.msra.mxu0 0.0
        %2916 = vmatprep.subr.mxu0 0.0
        %2917 = vmatpush1.msra.mxu0 0.0
        %2918 = vmatprep.subr.mxu0 0.0
        %2919 = vmatpush1.msra.mxu0 0.0
        %2920 = vmatprep.subr.mxu0 0.0
        %2921 = vmatpush1.msra.mxu0 %v2744
        %2922 = vmatprep.subr.mxu0 0.0
        %2923 = vmatpush2.msra.mxu0 0.0
        %2924 = vmatprep.subr.mxu0 0.0
        %2925 = vmatpush2.msra.mxu0 0.0
        %2926 = vmatprep.subr.mxu0 0.0
        %2927 = vmatpush2.msra.mxu0 0.0
        %2928 = vmatprep.subr.mxu0 0.0
        %2929 = vmatpush2.msra.mxu0 0.0
        %2930 = vmatprep.subr.mxu0 0.0
        %2931 = vmatpush2.msra.mxu0 0.0
        %2932 = vmatprep.subr.mxu0 0.0
        %2933 = vmatpush2.msra.mxu0 0.0
        %2934 = vmatprep.subr.mxu0 0.0
        %2935 = vmatpush2.msra.mxu0 0.0
        %2936 = vmatprep.subr.mxu0 0.0
        %2937 = vmatpush2.msra.mxu0 0.0
        %2938 = vmatprep.subr.mxu0 0.0
        %2939 = vmatpush2.msra.mxu0 0.0
        %2940 = vmatprep.subr.mxu0 0.0
        %2941 = vmatpush2.msra.mxu0 0.0
        %2942 = vmatprep.subr.mxu0 0.0
        %2943 = vmatpush2.msra.mxu0 0.0
        %2944 = vmatprep.subr.mxu0 0.0
        %2945 = vmatpush2.msra.mxu0 0.0
        %2946 = vmatprep.subr.mxu0 0.0
        %2947 = vmatpush2.msra.mxu0 0.0
        %2948 = vmatprep.subr.mxu0 0.0
        %2949 = vmatpush2.msra.mxu0 0.0
        %2950 = vmatprep.subr.mxu0 0.0
        %2951 = vmatpush2.msra.mxu0 0.0
        %2952 = vmatprep.subr.mxu0 0.0
        %2953 = vmatpush2.msra.mxu0 0.0
        %2954 = vmatprep.mubr.f32.mxu0 0.0
        %2955 = vmatmul.mubr.f32.gmra.mxu0 %v1159
        %v2956 = vpop.f32.mrf.mxu0
        %v2957 = vadd.f32 %v2887, %v2956
        %v2958 = vpop.f32.mrf.mxu0
        %2959 = vdwg.mxu0
        %v2961 = vsel %vm1373, %v2957, 0
        %2963 = vmatprep.subr.mxu0 0.0
        %2964 = vmatpush1.msra.mxu0 0.0
        %2965 = vmatprep.subr.mxu0 0.0
        %2966 = vmatpush1.msra.mxu0 0.0
        %2967 = vmatprep.subr.mxu0 0.0
        %2968 = vmatpush1.msra.mxu0 0.0
        %2969 = vmatprep.subr.mxu0 0.0
        %2970 = vmatpush1.msra.mxu0 0.0
        %2971 = vmatprep.subr.mxu0 0.0
        %2972 = vmatpush1.msra.mxu0 0.0
        %2973 = vmatprep.subr.mxu0 0.0
        %2974 = vmatpush1.msra.mxu0 0.0
        %2975 = vmatprep.subr.mxu0 0.0
        %2976 = vmatpush1.msra.mxu0 0.0
        %2977 = vmatprep.subr.mxu0 0.0
        %2978 = vmatpush1.msra.mxu0 0.0
        %2979 = vmatprep.subr.mxu0 0.0
        %2980 = vmatpush1.msra.mxu0 0.0
        %2981 = vmatprep.subr.mxu0 0.0
        %2982 = vmatpush1.msra.mxu0 0.0
        %2983 = vmatprep.subr.mxu0 0.0
        %2984 = vmatpush1.msra.mxu0 0.0
        %2985 = vmatprep.subr.mxu0 0.0
        %2986 = vmatpush1.msra.mxu0 0.0
        %2987 = vmatprep.subr.mxu0 0.0
        %2988 = vmatpush1.msra.mxu0 %v633
        %2989 = vmatprep.subr.mxu0 0.0
        %2990 = vmatpush1.msra.mxu0 %v632
        %2991 = vmatprep.subr.mxu0 0.0
        %2992 = vmatpush1.msra.mxu0 %v631
        %2993 = vmatprep.subr.mxu0 0.0
        %2994 = vmatpush1.msra.mxu0 %v630
        %2995 = vmatprep.subr.mxu0 0.0
        %2996 = vmatpush2.msra.mxu0 0.0
        %2997 = vmatprep.subr.mxu0 0.0
        %2998 = vmatpush2.msra.mxu0 0.0
        %2999 = vmatprep.subr.mxu0 0.0
        %3000 = vmatpush2.msra.mxu0 0.0
        %3001 = vmatprep.subr.mxu0 0.0
        %3002 = vmatpush2.msra.mxu0 0.0
        %3003 = vmatprep.subr.mxu0 0.0
        %3004 = vmatpush2.msra.mxu0 0.0
        %3005 = vmatprep.subr.mxu0 0.0
        %3006 = vmatpush2.msra.mxu0 0.0
        %3007 = vmatprep.subr.mxu0 0.0
        %3008 = vmatpush2.msra.mxu0 0.0
        %3009 = vmatprep.subr.mxu0 0.0
        %3010 = vmatpush2.msra.mxu0 0.0
        %3011 = vmatprep.subr.mxu0 0.0
        %3012 = vmatpush2.msra.mxu0 0.0
        %3013 = vmatprep.subr.mxu0 0.0
        %3014 = vmatpush2.msra.mxu0 0.0
        %3015 = vmatprep.subr.mxu0 0.0
        %3016 = vmatpush2.msra.mxu0 0.0
        %3017 = vmatprep.subr.mxu0 0.0
        %3018 = vmatpush2.msra.mxu0 0.0
        %3019 = vmatprep.subr.mxu0 0.0
        %3020 = vmatpush2.msra.mxu0 0.0
        %3021 = vmatprep.subr.mxu0 0.0
        %3022 = vmatpush2.msra.mxu0 0.0
        %3023 = vmatprep.subr.mxu0 0.0
        %3024 = vmatpush2.msra.mxu0 0.0
        %3025 = vmatprep.subr.mxu0 0.0
        %3026 = vmatpush2.msra.mxu0 0.0
        %3027 = vmatprep.mubr.f32.mxu0 0.0
        %3028 = vmatmul.mubr.f32.gmra.mxu0 %v2961
        %v3029 = vpop.f32.mrf.mxu0
        %v3030 = vadd.f32 0.0, %v3029
        %v3031 = vpop.f32.mrf.mxu0
        %3032 = vdwg.mxu0
        %v3034 = vsel %vm786, %v610, 0
        %v3037 = vsel %vm790, %v629, 0
        %3039 = vmatprep.subr.mxu0 0.0
        %3040 = vmatpush1.msra.mxu0 0.0
        %3041 = vmatprep.subr.mxu0 0.0
        %3042 = vmatpush1.msra.mxu0 0.0
        %3043 = vmatprep.subr.mxu0 0.0
        %3044 = vmatpush1.msra.mxu0 0.0
        %3045 = vmatprep.subr.mxu0 0.0
        %3046 = vmatpush1.msra.mxu0 0.0
        %3047 = vmatprep.subr.mxu0 0.0
        %3048 = vmatpush1.msra.mxu0 0.0
        %3049 = vmatprep.subr.mxu0 0.0
        %3050 = vmatpush1.msra.mxu0 0.0
        %3051 = vmatprep.subr.mxu0 0.0
        %3052 = vmatpush1.msra.mxu0 0.0
        %3053 = vmatprep.subr.mxu0 0.0
        %3054 = vmatpush1.msra.mxu0 0.0
        %3055 = vmatprep.subr.mxu0 0.0
        %3056 = vmatpush1.msra.mxu0 0.0
        %3057 = vmatprep.subr.mxu0 0.0
        %3058 = vmatpush1.msra.mxu0 0.0
        %3059 = vmatprep.subr.mxu0 0.0
        %3060 = vmatpush1.msra.mxu0 0.0
        %3061 = vmatprep.subr.mxu0 0.0
        %3062 = vmatpush1.msra.mxu0 0.0
        %3063 = vmatprep.subr.mxu0 0.0
        %3064 = vmatpush1.msra.mxu0 0.0
        %3065 = vmatprep.subr.mxu0 0.0
        %3066 = vmatpush1.msra.mxu0 0.0
        %3067 = vmatprep.subr.mxu0 0.0
        %3068 = vmatpush1.msra.mxu0 %v3037
        %3069 = vmatprep.subr.mxu0 0.0
        %3070 = vmatpush1.msra.mxu0 %v628
        %3071 = vmatprep.subr.mxu0 0.0
        %3072 = vmatpush2.msra.mxu0 0.0
        %3073 = vmatprep.subr.mxu0 0.0
        %3074 = vmatpush2.msra.mxu0 0.0
        %3075 = vmatprep.subr.mxu0 0.0
        %3076 = vmatpush2.msra.mxu0 0.0
        %3077 = vmatprep.subr.mxu0 0.0
        %3078 = vmatpush2.msra.mxu0 0.0
        %3079 = vmatprep.subr.mxu0 0.0
        %3080 = vmatpush2.msra.mxu0 0.0
        %3081 = vmatprep.subr.mxu0 0.0
        %3082 = vmatpush2.msra.mxu0 0.0
        %3083 = vmatprep.subr.mxu0 0.0
        %3084 = vmatpush2.msra.mxu0 0.0
        %3085 = vmatprep.subr.mxu0 0.0
        %3086 = vmatpush2.msra.mxu0 0.0
        %3087 = vmatprep.subr.mxu0 0.0
        %3088 = vmatpush2.msra.mxu0 0.0
        %3089 = vmatprep.subr.mxu0 0.0
        %3090 = vmatpush2.msra.mxu0 0.0
        %3091 = vmatprep.subr.mxu0 0.0
        %3092 = vmatpush2.msra.mxu0 0.0
        %3093 = vmatprep.subr.mxu0 0.0
        %3094 = vmatpush2.msra.mxu0 0.0
        %3095 = vmatprep.subr.mxu0 0.0
        %3096 = vmatpush2.msra.mxu0 0.0
        %3097 = vmatprep.subr.mxu0 0.0
        %3098 = vmatpush2.msra.mxu0 0.0
        %3099 = vmatprep.subr.mxu0 0.0
        %3100 = vmatpush2.msra.mxu0 0.0
        %3101 = vmatprep.subr.mxu0 0.0
        %3102 = vmatpush2.msra.mxu0 0.0
        %3103 = vmatprep.mubr.f32.mxu0 0.0
        %3104 = vmatmul.mubr.f32.gmra.mxu0 %v3034
        %v3105 = vpop.f32.mrf.mxu0
        %v3106 = vadd.f32 %v3030, %v3105
        %v3107 = vpop.f32.mrf.mxu0
        %3108 = vdwg.mxu0
        %v3109 = vmax.f32 %v3106, 0.0
        %3110 = vst [vmem:[%s593] sm:$0xff] %v3109
        %s3111 = sand.u32 %s329, 1
        %s3112 = scalar_lea.sflag [#allocation4], %s3111
        %s3113 = sand.u32 %s329, 1
        %s3114 = smul.addr %s3113, 8
        %s3115 = scalar_lea.vmem [#allocation13], %s3114
        // Predicated region
        $region93: #{tpu_custom_call.1} parent=67 // pred_check
          %p3116 = pneg %p339
        $region94: #{tpu_custom_call.1} parent=67 // pred_check_branch
          %3118 = sbr.rel (%p3116) target = $region96
        $region95: #{tpu_custom_call.1} parent=67 // pred_region
          %s3120 = ssub.s32 128, 128
          %3121 = vsyncadd %s3112, %s3120
          %s3122 = smul.addr %s34, 128
          %s3123 = scalar_lea.hbm %s12, %s3122
          %s3125 = sshll.u32 %s3115, 4
          %s3126 = int_to_ptr.vmem [resolvable:$true] %s3125
          %3128 = dma.vmem_to_hbm [thread:$0]  %s3126, 128, %s3123, %s3112
        $region96: #{tpu_custom_call.1} parent=67 // pred_fallthru
          _
      $region68: #{tpu_custom_call.1} parent=5 // pred_fallthru
        _
      %p3129 = scmp.le.s32.totalorder 2, %s29
      // Predicated region
      $region97: #{tpu_custom_call.1} parent=5 // pred_check
        %p3130 = pneg %p3129
      $region98: #{tpu_custom_call.1} parent=5 // pred_check_branch
        %3132 = sbr.rel (%p3130) target = $region100
      $region99: #{tpu_custom_call.1} parent=5 // pred_region
        %s3133 = ssub.s32 %s29, 2
        // Predicated region
        $region101: #{tpu_custom_call.1} parent=99 // pred_check
          %p3134 = pneg %p345
        $region102: #{tpu_custom_call.1} parent=99 // pred_check_branch
          %3136 = sbr.rel (%p3134) target = $region104
        $region103: #{tpu_custom_call.1} parent=99 // pred_region
          %s3137 = sand.u32 %s330, 1
          %s3138 = scalar_lea.sflag [#allocation4], %s3137
          %s3139 = sand.u32 %s330, 1
          %s3140 = smul.addr %s3139, 8
          %s3141 = scalar_lea.vmem [#allocation13], %s3140
          %3142 = dma.done %s3138, 128
        $region104: #{tpu_custom_call.1} parent=99 // pred_fallthru
          _
      $region100: #{tpu_custom_call.1} parent=5 // pred_fallthru
        _
    $region6: #{tpu_custom_call.1} parent=1 // loop_footer
      %s33 = sadd.s32 1, %s29
    $region7: #{tpu_custom_call.1} parent=1 // loop_footer_branch
      %28 = sbr.rel target = $region3
    $region8: #{tpu_custom_call.1} parent=1 // loop_exit
      _
    %3143 = vsyncpa [#allocation3], 1
    %s3144 = scalar_lea.sflag [#allocation3], 1
    %3145 = vsyncpa %s3144, 1
    %3146 = vsyncpa [#allocation6], 1
    %s3147 = scalar_lea.sflag [#allocation6], 1
    %3148 = vsyncpa %s3147, 1
    %3149 = vsyncpa [#allocation9], 1
    %3150 = vsyncpa [#allocation12], 1
    %3151 = vsyncpa [#allocation4], 1
    %s3152 = scalar_lea.sflag [#allocation4], 1
    %3153 = vsyncpa %s3152, 1

</llo_original>
